<compile_context>
chip_gen: v6e
topology: v6e:2x2x1
jax: 0.10.0
libtpu: 0.0.40
codegen_flags: <defaults>
</compile_context>

<pallas_src>
import jax
import jax.numpy as jnp
from jax import lax
from jax.experimental import pallas as pl
from jax.experimental.pallas import tpu as pltpu


def _round_up(x, m):
    return (x + m - 1) // m * m


def cnn_lstm_fc_kernel(x_ref, w_gi_ref, b_gi_ref, w_hh_ref, w_fc_ref, b_fc_ref,
                       y_ref, h_ref, c_ref, gi_ref, hbuf_ref):
    """One grid step == Tt timesteps of (Conv1d -> input gates) -> LSTM -> fc.

    Shapes (TL = Tt*L, Gp = round_up(4H, 128)):
      x_ref   : (TL, N)   f32   input tile, rows ordered (t, l)
      w_gi_ref: (3N, Gp)  bf16  conv taps folded into input->gate weights,
                                row blocks stacked as [tap l-1; tap l; tap l+1]
      b_gi_ref: (1, Gp)   f32   folded bias  conv_b@Wih^T + b_ih + b_hh
      w_hh_ref: (H, Gp)   bf16  hidden->gates (gate order i|f|g|o, width H each)
      w_fc_ref: (H, N)    bf16  fc weights
      b_fc_ref: (1, N)    f32   fc bias
      y_ref   : (TL, N)   f32   output tile
      h_ref, c_ref : (L, H) f32 recurrent state (persists across grid steps)
      gi_ref  : (TL, Gp)  f32   precomputed input->gate pre-activations
      hbuf_ref: (TL, H)   f32   per-step hidden states for the batched fc
    """
    t = pl.program_id(0)

    @pl.when(t == 0)
    def _init():
        h_ref[...] = jnp.zeros_like(h_ref)
        c_ref[...] = jnp.zeros_like(c_ref)

    TL, N = x_ref.shape
    L, H = h_ref.shape

    # ---- Conv1d(k=3, padding=1) along L, folded into the input->gate matmul.
    # Shifted rows via XLU sublane rolls + boundary mask.  Rolling the
    # flattened (Tt*L) row axis is safe: the rows that wrap across a timestep
    # boundary are exactly the masked (l==0 / l==L-1) rows. ----
    x = x_ref[...]                                               # (TL, N) f32
    l_idx = lax.broadcasted_iota(jnp.int32, (TL, N), 0) % L
    zero = jnp.zeros_like(x)
    x_m1 = jnp.where(l_idx == 0, zero, pltpu.roll(x, 1, 0))       # x[l-1]
    x_p1 = jnp.where(l_idx == L - 1, zero, pltpu.roll(x, TL - 1, 0))  # x[l+1]
    x3 = jnp.concatenate([x_m1, x, x_p1], axis=-1).astype(jnp.bfloat16)

    gi_ref[...] = jnp.dot(x3, w_gi_ref[...],
                          preferred_element_type=jnp.float32) + b_gi_ref[...]

    # ---- Sequential LSTM recurrence: only (L,H)x(H,4H) stays serial. ----
    w_hh = w_hh_ref[...]
    Tt = TL // L

    def step(s, carry):
        h, c = carry                                             # (L, H) f32
        row = s * L
        if L % 8 == 0:
            row = pl.multiple_of(row, 8)
        g = gi_ref[pl.ds(row, L), :] + jnp.dot(
            h.astype(jnp.bfloat16), w_hh, preferred_element_type=jnp.float32)
        i_g = jax.nn.sigmoid(g[:, 0 * H:1 * H])
        f_g = jax.nn.sigmoid(g[:, 1 * H:2 * H])
        g_g = jnp.tanh(g[:, 2 * H:3 * H])
        o_g = jax.nn.sigmoid(g[:, 3 * H:4 * H])
        c_new = f_g * c + i_g * g_g
        h_new = o_g * jnp.tanh(c_new)
        hbuf_ref[pl.ds(row, L), :] = h_new
        return h_new, c_new

    h_last, c_last = lax.fori_loop(0, Tt, step, (h_ref[...], c_ref[...]),
                                   unroll=True)
    h_ref[...] = h_last
    c_ref[...] = c_last

    # ---- Batched fc projection over the whole tile, one store. ----
    y_ref[...] = (jnp.dot(hbuf_ref[...].astype(jnp.bfloat16), w_fc_ref[...],
                          preferred_element_type=jnp.float32)
                  + b_fc_ref[...]).astype(y_ref.dtype)


def cnn_lstm_forward(x, conv_w, conv_b, w_ih, w_hh, b_ih, b_hh, w_fc, b_fc,
                     *, time_tile=None):
    """x: (S, L, N) f32  ->  (S, L, N) f32.  Parameters use PyTorch layouts:
    conv_w (N,N,3), conv_b (N,), w_ih (4H,N), w_hh (4H,H), b_ih/b_hh (4H,),
    w_fc (N,H), b_fc (N,)."""
    S, L, N = x.shape
    H = w_hh.shape[1]
    assert conv_w.shape == (N, N, 3) and conv_b.shape == (N,)
    assert w_ih.shape == (4 * H, N) and w_hh.shape == (4 * H, H)
    assert w_fc.shape == (N, H) and b_fc.shape == (N,)

    Tt = S if time_tile is None else min(time_tile, S)
    assert S % Tt == 0, "sequence length must be a multiple of the time tile"
    TL = Tt * L
    G = 4 * H
    Gp = _round_up(G, 128)                # = 128 for H = 32 (gates fit 1 vreg)

    f32, bf16 = jnp.float32, jnp.bfloat16

    # Flattened, unpadded HBM view (free reshape, no pad/slice passes).
    x2 = x.reshape(S * L, N).astype(f32)

    # Fold Conv1d taps into the LSTM input->gate weights, all in f32.
    # PyTorch:  conv[.., o] = sum_{i,k} x_shift_k[.., i] * conv_w[o, i, k] + b
    #           gates      = conv @ w_ih.T + b_ih + h @ w_hh.T + b_hh
    w_ih_t = w_ih.astype(f32).T                                  # (N, 4H)
    taps = jnp.transpose(conv_w.astype(f32), (2, 1, 0))          # (3, in, out)
    w_gi = jnp.einsum('kio,og->kig', taps, w_ih_t).reshape(3 * N, G)
    b_gi = conv_b.astype(f32) @ w_ih_t + b_ih.astype(f32) + b_hh.astype(f32)

    w_gi_p = jnp.zeros((3 * N, Gp), f32).at[:, :G].set(w_gi).astype(bf16)
    b_gi_p = jnp.zeros((1, Gp), f32).at[0, :G].set(b_gi)
    w_hh_p = jnp.zeros((H, Gp), f32).at[:, :G].set(w_hh.astype(f32).T).astype(bf16)
    w_fc_p = w_fc.astype(f32).T.astype(bf16)                     # (H, N)
    b_fc_p = b_fc.astype(f32).reshape(1, N)

    grid_spec = pltpu.PrefetchScalarGridSpec(
        num_scalar_prefetch=0,
        grid=(S // Tt,),
        in_specs=[
            pl.BlockSpec((TL, N), lambda t: (t, 0)),        # x tile (unpadded)
            pl.BlockSpec((3 * N, Gp), lambda t: (0, 0)),    # folded conv+gates
            pl.BlockSpec((1, Gp), lambda t: (0, 0)),        # folded gate bias
            pl.BlockSpec((H, Gp), lambda t: (0, 0)),        # w_hh
            pl.BlockSpec((H, N), lambda t: (0, 0)),         # w_fc
            pl.BlockSpec((1, N), lambda t: (0, 0)),         # b_fc
        ],
        out_specs=pl.BlockSpec((TL, N), lambda t: (t, 0)),
        scratch_shapes=[
            pltpu.VMEM((L, H), f32),       # h state
            pltpu.VMEM((L, H), f32),       # c state
            pltpu.VMEM((TL, Gp), f32),     # input->gate pre-activations
            pltpu.VMEM((TL, H), f32),      # hidden buffer for the batched fc
        ],
    )

    y2 = pl.pallas_call(
        cnn_lstm_fc_kernel,
        out_shape=jax.ShapeDtypeStruct((S * L, N), f32),
        grid_spec=grid_spec,
        compiler_params=pltpu.CompilerParams(
            dimension_semantics=("arbitrary",),   # serial time recurrence
        ),
    )(x2, w_gi_p, b_gi_p, w_hh_p, w_fc_p, b_fc_p)

    return y2.reshape(S, L, N)


def cnn_lstm_reference(x, conv_w, conv_b, w_ih, w_hh, b_ih, b_hh, w_fc, b_fc):
    """Pure-JAX f32 reference matching PyTorch Conv1d -> nn.LSTM -> Linear."""
    S, L, N = x.shape
    H = w_hh.shape[1]

    xp = jnp.pad(x, ((0, 0), (1, 1), (0, 0)))
    conv = (xp[:, 0:L] @ conv_w[:, :, 0].T
            + xp[:, 1:L + 1] @ conv_w[:, :, 1].T
            + xp[:, 2:L + 2] @ conv_w[:, :, 2].T + conv_b)

    def step(carry, x_t):
        h, c = carry
        g = x_t @ w_ih.T + b_ih + h @ w_hh.T + b_hh
        i, f, gg, o = jnp.split(g, 4, axis=-1)
        i = jax.nn.sigmoid(i)
        f = jax.nn.sigmoid(f)
        gg = jnp.tanh(gg)
        o = jax.nn.sigmoid(o)
        c_new = f * c + i * gg
        h_new = o * jnp.tanh(c_new)
        return (h_new, c_new), h_new

    h0 = jnp.zeros((L, H), jnp.float32)
    _, hs = lax.scan(step, (h0, h0), conv)
    return hs @ w_fc.T + b_fc


if __name__ == "__main__":
    # x: (seq, length/batch, num_nodes); hidden = 32.
    SEQ, LEN, NUM_NODES, HIDDEN = 16, 16, 4, 32

    key = jax.random.PRNGKey(0)
    ks = jax.random.split(key, 9)
    s_lstm = 1.0 / jnp.sqrt(HIDDEN)
    s_conv = 1.0 / jnp.sqrt(3 * NUM_NODES)

    x = jax.random.normal(ks[0], (SEQ, LEN, NUM_NODES), jnp.float32)

    conv_w = jax.random.uniform(ks[1], (NUM_NODES, NUM_NODES, 3), jnp.float32,
                                -s_conv, s_conv)
    conv_b = jax.random.uniform(ks[2], (NUM_NODES,), jnp.float32, -s_conv, s_conv)
    w_ih = jax.random.uniform(ks[3], (4 * HIDDEN, NUM_NODES), jnp.float32,
                              -s_lstm, s_lstm)
    w_hh = jax.random.uniform(ks[4], (4 * HIDDEN, HIDDEN), jnp.float32,
                              -s_lstm, s_lstm)
    b_ih = jax.random.uniform(ks[5], (4 * HIDDEN,), jnp.float32, -s_lstm, s_lstm)
    b_hh = jax.random.uniform(ks[6], (4 * HIDDEN,), jnp.float32, -s_lstm, s_lstm)
    w_fc = jax.random.uniform(ks[7], (NUM_NODES, HIDDEN), jnp.float32,
                              -s_lstm, s_lstm)
    b_fc = jax.random.uniform(ks[8], (NUM_NODES,), jnp.float32, -s_lstm, s_lstm)

    y = cnn_lstm_forward(x, conv_w, conv_b, w_ih, w_hh, b_ih, b_hh, w_fc, b_fc)
    jax.block_until_ready(y)

    y_ref = cnn_lstm_reference(x, conv_w, conv_b, w_ih, w_hh, b_ih, b_hh,
                               w_fc, b_fc)
    assert y.shape == (SEQ, LEN, NUM_NODES)
    # bf16 MXU operands (f32 accumulate / f32 state & gate math) -> relaxed tol.
    assert jnp.allclose(y, y_ref, atol=2e-2, rtol=2e-2), float(
        jnp.max(jnp.abs(y - y_ref)))
    print("KERNEL_OK")
</pallas_src>

<mosaic_0001>
module attributes {stable_mosaic.version = 11 : i64} {
  func.func @cnn_lstm_fc_kernel(%arg0: i32, %arg1: memref<256x4xf32, #tpu.memory_space<vmem>>, %arg2: memref<12x128xbf16, #tpu.memory_space<vmem>>, %arg3: memref<1x128xf32, #tpu.memory_space<vmem>>, %arg4: memref<32x128xbf16, #tpu.memory_space<vmem>>, %arg5: memref<32x4xbf16, #tpu.memory_space<vmem>>, %arg6: memref<1x4xf32, #tpu.memory_space<vmem>>, %arg7: memref<256x4xf32, #tpu.memory_space<vmem>>, %arg8: memref<16x32xf32, #tpu.memory_space<vmem>>, %arg9: memref<16x32xf32, #tpu.memory_space<vmem>>, %arg10: memref<256x128xf32, #tpu.memory_space<vmem>>, %arg11: memref<256x32xf32, #tpu.memory_space<vmem>>) attributes {dimension_semantics = [#tpu.dimension_semantics<arbitrary>], iteration_bounds = array<i64: 1>, scalar_prefetch = 0 : i64, scratch_operands = 4 : i64, tpu.core_type = #tpu.core_type<tc>, window_params = [{transform_indices = @transform_0, window_bounds = array<i64: 256, 4>}, {pipeline_mode = #tpu.pipeline_mode<synchronous>, transform_indices = @transform_1, window_bounds = array<i64: 12, 128>}, {pipeline_mode = #tpu.pipeline_mode<synchronous>, transform_indices = @transform_2, window_bounds = array<i64: 1, 128>}, {pipeline_mode = #tpu.pipeline_mode<synchronous>, transform_indices = @transform_3, window_bounds = array<i64: 32, 128>}, {pipeline_mode = #tpu.pipeline_mode<synchronous>, transform_indices = @transform_4, window_bounds = array<i64: 32, 4>}, {pipeline_mode = #tpu.pipeline_mode<synchronous>, transform_indices = @transform_5, window_bounds = array<i64: 1, 4>}, {transform_indices = @transform_6, window_bounds = array<i64: 256, 4>}]} {
    %c0_i32 = arith.constant 0 : i32
    %0 = arith.cmpi eq, %arg0, %c0_i32 : i32
    %1 = arith.extui %0 : i1 to i32
    %c0_i32_0 = arith.constant 0 : i32
    %2 = arith.cmpi ne, %1, %c0_i32_0 : i32
    scf.if %2 {
      %cst_150 = arith.constant 0.000000e+00 : f32
      %595 = vector.broadcast %cst_150 : f32 to vector<16x32xf32>
      %c0_151 = arith.constant 0 : index
      %c0_152 = arith.constant 0 : index
      %596 = vector.load %arg8[%c0_151, %c0_152] : memref<16x32xf32, #tpu.memory_space<vmem>>, vector<16x32xf32>
      tpu.vector_store %arg8[%c0_151, %c0_152], %595 {strides = array<i32>} : memref<16x32xf32, #tpu.memory_space<vmem>>, vector<16x32xf32>,
      %cst_153 = arith.constant 0.000000e+00 : f32
      %597 = vector.broadcast %cst_153 : f32 to vector<16x32xf32>
      %c0_154 = arith.constant 0 : index
      %c0_155 = arith.constant 0 : index
      %598 = vector.load %arg9[%c0_154, %c0_155] : memref<16x32xf32, #tpu.memory_space<vmem>>, vector<16x32xf32>
      tpu.vector_store %arg9[%c0_154, %c0_155], %597 {strides = array<i32>} : memref<16x32xf32, #tpu.memory_space<vmem>>, vector<16x32xf32>,
    } else {
    }
    %c0 = arith.constant 0 : index
    %c0_1 = arith.constant 0 : index
    %3 = vector.load %arg1[%c0, %c0_1] : memref<256x4xf32, #tpu.memory_space<vmem>>, vector<256x4xf32>
    %4 = tpu.iota {dimensions = array<i32: 0>} : vector<256x4xi32>
    %c16_i32 = arith.constant 16 : i32
    %c0_i32_2 = arith.constant 0 : i32
    %5 = arith.cmpi eq, %c16_i32, %c0_i32_2 : i32
    %c1_i32 = arith.constant 1 : i32
    %6 = arith.select %5, %c1_i32, %c16_i32 : i32
    %7 = vector.broadcast %6 : i32 to vector<256x4xi32>
    %8 = arith.remsi %4, %7 : vector<256x4xi32>
    %c0_i32_3 = arith.constant 0 : i32
    %9 = vector.broadcast %c0_i32_3 : i32 to vector<256x4xi32>
    %10 = arith.cmpi ne, %8, %9 : vector<256x4xi32>
    %c0_i32_4 = arith.constant 0 : i32
    %11 = vector.broadcast %c0_i32_4 : i32 to vector<256x4xi32>
    %12 = arith.cmpi slt, %8, %11 : vector<256x4xi32>
    %c0_i32_5 = arith.constant 0 : i32
    %13 = arith.cmpi slt, %6, %c0_i32_5 : i32
    %14 = vector.broadcast %13 : i1 to vector<256x4xi1>
    %15 = vector.broadcast %14 : vector<256x4xi1> to vector<256x4xi1>
    %16 = arith.xori %12, %15 : vector<256x4xi1>
    %17 = arith.andi %16, %10 : vector<256x4xi1>
    %18 = vector.broadcast %6 : i32 to vector<256x4xi32>
    %19 = arith.addi %8, %18 : vector<256x4xi32>
    %20 = arith.select %17, %19, %8 : vector<256x4xi1>, vector<256x4xi32>
    %cst = arith.constant 0.000000e+00 : f32
    %21 = vector.broadcast %cst : f32 to vector<256x4xf32>
    %c0_i32_6 = arith.constant 0 : i32
    %22 = vector.broadcast %c0_i32_6 : i32 to vector<256x4xi32>
    %23 = arith.cmpi eq, %20, %22 : vector<256x4xi32>
    %c1_i32_7 = arith.constant 1 : i32
    %24 = tpu.dynamic_rotate %3 by %c1_i32_7 dim 0 : vector<256x4xf32>, i32 -> vector<256x4xf32>
    %25 = arith.select %23, %21, %24 : vector<256x4xi1>, vector<256x4xf32>
    %c15_i32 = arith.constant 15 : i32
    %26 = vector.broadcast %c15_i32 : i32 to vector<256x4xi32>
    %27 = arith.cmpi eq, %20, %26 : vector<256x4xi32>
    %c255_i32 = arith.constant 255 : i32
    %28 = tpu.dynamic_rotate %3 by %c255_i32 dim 0 : vector<256x4xf32>, i32 -> vector<256x4xf32>
    %29 = arith.select %27, %21, %28 : vector<256x4xi1>, vector<256x4xf32>
    %30 = tpu.concatenate %25, %3, %29 in 1 : vector<256x4xf32>, vector<256x4xf32>, vector<256x4xf32> -> vector<256x12xf32>
    %31 = arith.truncf %30 : vector<256x12xf32> to vector<256x12xbf16>
    %c0_8 = arith.constant 0 : index
    %c0_9 = arith.constant 0 : index
    %32 = vector.load %arg2[%c0_8, %c0_9] : memref<12x128xbf16, #tpu.memory_space<vmem>>, vector<12x128xbf16>
    %cst_10 = arith.constant dense<0.000000e+00> : vector<256x128xf32>
    %33 = tpu.matmul %31, %32, %cst_10 {dimension_numbers = #tpu.dot_dimension_numbers<[1], [0], [0], [1], [0, 0, 1, 1], [], []>} : vector<256x12xbf16>, vector<12x128xbf16>, vector<256x128xf32> -> vector<256x128xf32>
    %c0_11 = arith.constant 0 : index
    %c0_12 = arith.constant 0 : index
    %34 = vector.load %arg3[%c0_11, %c0_12] : memref<1x128xf32, #tpu.memory_space<vmem>>, vector<1x128xf32>
    %35 = vector.broadcast %34 : vector<1x128xf32> to vector<256x128xf32>
    %36 = arith.addf %33, %35 : vector<256x128xf32>
    %c0_13 = arith.constant 0 : index
    %c0_14 = arith.constant 0 : index
    %37 = vector.load %arg10[%c0_13, %c0_14] : memref<256x128xf32, #tpu.memory_space<vmem>>, vector<256x128xf32>
    tpu.vector_store %arg10[%c0_13, %c0_14], %36 {strides = array<i32>} : memref<256x128xf32, #tpu.memory_space<vmem>>, vector<256x128xf32>,
    %c0_15 = arith.constant 0 : index
    %c0_16 = arith.constant 0 : index
    %38 = vector.load %arg4[%c0_15, %c0_16] : memref<32x128xbf16, #tpu.memory_space<vmem>>, vector<32x128xbf16>
    %c0_17 = arith.constant 0 : index
    %c0_18 = arith.constant 0 : index
    %39 = vector.load %arg8[%c0_17, %c0_18] : memref<16x32xf32, #tpu.memory_space<vmem>>, vector<16x32xf32>
    %c0_19 = arith.constant 0 : index
    %c0_20 = arith.constant 0 : index
    %40 = vector.load %arg9[%c0_19, %c0_20] : memref<16x32xf32, #tpu.memory_space<vmem>>, vector<16x32xf32>
    %c0_i32_21 = arith.constant 0 : i32
    %c16_i32_22 = arith.constant 16 : i32
    %41 = arith.muli %c0_i32_21, %c16_i32_22 : i32
    %42 = tpu.assume_multiple %41, 8 : i32
    %43 = arith.index_cast %42 : i32 to index
    %c0_23 = arith.constant 0 : index
    %44 = vector.load %arg10[%43, %c0_23] : memref<256x128xf32, #tpu.memory_space<vmem>>, vector<16x128xf32>
    %45 = arith.truncf %39 : vector<16x32xf32> to vector<16x32xbf16>
    %cst_24 = arith.constant dense<0.000000e+00> : vector<16x128xf32>
    %46 = tpu.matmul %45, %38, %cst_24 {dimension_numbers = #tpu.dot_dimension_numbers<[1], [0], [0], [1], [0, 0, 1, 1], [], []>} : vector<16x32xbf16>, vector<32x128xbf16>, vector<16x128xf32> -> vector<16x128xf32>
    %47 = arith.addf %44, %46 : vector<16x128xf32>
    %48 = vector.extract_strided_slice %47 {offsets = [0, 0], sizes = [16, 32], strides = [1, 1]} : vector<16x128xf32> to vector<16x32xf32>
    %49 = arith.negf %48 : vector<16x32xf32>
    %50 = math.exp %49 : vector<16x32xf32>
    %cst_25 = arith.constant 1.000000e+00 : f32
    %51 = vector.broadcast %cst_25 : f32 to vector<16x32xf32>
    %52 = arith.addf %51, %50 : vector<16x32xf32>
    %53 = arith.divf %51, %52 : vector<16x32xf32>
    %54 = vector.extract_strided_slice %47 {offsets = [0, 32], sizes = [16, 32], strides = [1, 1]} : vector<16x128xf32> to vector<16x32xf32>
    %55 = arith.negf %54 : vector<16x32xf32>
    %56 = math.exp %55 : vector<16x32xf32>
    %cst_26 = arith.constant 1.000000e+00 : f32
    %57 = vector.broadcast %cst_26 : f32 to vector<16x32xf32>
    %58 = arith.addf %57, %56 : vector<16x32xf32>
    %59 = arith.divf %57, %58 : vector<16x32xf32>
    %60 = vector.extract_strided_slice %47 {offsets = [0, 64], sizes = [16, 32], strides = [1, 1]} : vector<16x128xf32> to vector<16x32xf32>
    %61 = math.tanh %60 : vector<16x32xf32>
    %62 = vector.extract_strided_slice %47 {offsets = [0, 96], sizes = [16, 32], strides = [1, 1]} : vector<16x128xf32> to vector<16x32xf32>
    %63 = arith.negf %62 : vector<16x32xf32>
    %64 = math.exp %63 : vector<16x32xf32>
    %cst_27 = arith.constant 1.000000e+00 : f32
    %65 = vector.broadcast %cst_27 : f32 to vector<16x32xf32>
    %66 = arith.addf %65, %64 : vector<16x32xf32>
    %67 = arith.divf %65, %66 : vector<16x32xf32>
    %68 = arith.mulf %59, %40 : vector<16x32xf32>
    %69 = arith.mulf %53, %61 : vector<16x32xf32>
    %70 = arith.addf %68, %69 : vector<16x32xf32>
    %71 = math.tanh %70 : vector<16x32xf32>
    %72 = arith.mulf %67, %71 : vector<16x32xf32>
    %73 = arith.index_cast %42 : i32 to index
    %c0_28 = arith.constant 0 : index
    %74 = vector.load %arg11[%73, %c0_28] : memref<256x32xf32, #tpu.memory_space<vmem>>, vector<16x32xf32>
    tpu.vector_store %arg11[%73, %c0_28], %72 {strides = array<i32>} : memref<256x32xf32, #tpu.memory_space<vmem>>, vector<16x32xf32>,
    %c1_i32_29 = arith.constant 1 : i32
    %c16_i32_30 = arith.constant 16 : i32
    %75 = arith.muli %c1_i32_29, %c16_i32_30 : i32
    %76 = tpu.assume_multiple %75, 8 : i32
    %77 = arith.index_cast %76 : i32 to index
    %c0_31 = arith.constant 0 : index
    %78 = vector.load %arg10[%77, %c0_31] : memref<256x128xf32, #tpu.memory_space<vmem>>, vector<16x128xf32>
    %79 = arith.truncf %72 : vector<16x32xf32> to vector<16x32xbf16>
    %cst_32 = arith.constant dense<0.000000e+00> : vector<16x128xf32>
    %80 = tpu.matmul %79, %38, %cst_32 {dimension_numbers = #tpu.dot_dimension_numbers<[1], [0], [0], [1], [0, 0, 1, 1], [], []>} : vector<16x32xbf16>, vector<32x128xbf16>, vector<16x128xf32> -> vector<16x128xf32>
    %81 = arith.addf %78, %80 : vector<16x128xf32>
    %82 = vector.extract_strided_slice %81 {offsets = [0, 0], sizes = [16, 32], strides = [1, 1]} : vector<16x128xf32> to vector<16x32xf32>
    %83 = arith.negf %82 : vector<16x32xf32>
    %84 = math.exp %83 : vector<16x32xf32>
    %cst_33 = arith.constant 1.000000e+00 : f32
    %85 = vector.broadcast %cst_33 : f32 to vector<16x32xf32>
    %86 = arith.addf %85, %84 : vector<16x32xf32>
    %87 = arith.divf %85, %86 : vector<16x32xf32>
    %88 = vector.extract_strided_slice %81 {offsets = [0, 32], sizes = [16, 32], strides = [1, 1]} : vector<16x128xf32> to vector<16x32xf32>
    %89 = arith.negf %88 : vector<16x32xf32>
    %90 = math.exp %89 : vector<16x32xf32>
    %cst_34 = arith.constant 1.000000e+00 : f32
    %91 = vector.broadcast %cst_34 : f32 to vector<16x32xf32>
    %92 = arith.addf %91, %90 : vector<16x32xf32>
    %93 = arith.divf %91, %92 : vector<16x32xf32>
    %94 = vector.extract_strided_slice %81 {offsets = [0, 64], sizes = [16, 32], strides = [1, 1]} : vector<16x128xf32> to vector<16x32xf32>
    %95 = math.tanh %94 : vector<16x32xf32>
    %96 = vector.extract_strided_slice %81 {offsets = [0, 96], sizes = [16, 32], strides = [1, 1]} : vector<16x128xf32> to vector<16x32xf32>
    %97 = arith.negf %96 : vector<16x32xf32>
    %98 = math.exp %97 : vector<16x32xf32>
    %cst_35 = arith.constant 1.000000e+00 : f32
    %99 = vector.broadcast %cst_35 : f32 to vector<16x32xf32>
    %100 = arith.addf %99, %98 : vector<16x32xf32>
    %101 = arith.divf %99, %100 : vector<16x32xf32>
    %102 = arith.mulf %93, %70 : vector<16x32xf32>
    %103 = arith.mulf %87, %95 : vector<16x32xf32>
    %104 = arith.addf %102, %103 : vector<16x32xf32>
    %105 = math.tanh %104 : vector<16x32xf32>
    %106 = arith.mulf %101, %105 : vector<16x32xf32>
    %107 = arith.index_cast %76 : i32 to index
    %c0_36 = arith.constant 0 : index
    %108 = vector.load %arg11[%107, %c0_36] : memref<256x32xf32, #tpu.memory_space<vmem>>, vector<16x32xf32>
    tpu.vector_store %arg11[%107, %c0_36], %106 {strides = array<i32>} : memref<256x32xf32, #tpu.memory_space<vmem>>, vector<16x32xf32>,
    %c2_i32 = arith.constant 2 : i32
    %c16_i32_37 = arith.constant 16 : i32
    %109 = arith.muli %c2_i32, %c16_i32_37 : i32
    %110 = tpu.assume_multiple %109, 8 : i32
    %111 = arith.index_cast %110 : i32 to index
    %c0_38 = arith.constant 0 : index
    %112 = vector.load %arg10[%111, %c0_38] : memref<256x128xf32, #tpu.memory_space<vmem>>, vector<16x128xf32>
    %113 = arith.truncf %106 : vector<16x32xf32> to vector<16x32xbf16>
    %cst_39 = arith.constant dense<0.000000e+00> : vector<16x128xf32>
    %114 = tpu.matmul %113, %38, %cst_39 {dimension_numbers = #tpu.dot_dimension_numbers<[1], [0], [0], [1], [0, 0, 1, 1], [], []>} : vector<16x32xbf16>, vector<32x128xbf16>, vector<16x128xf32> -> vector<16x128xf32>
    %115 = arith.addf %112, %114 : vector<16x128xf32>
    %116 = vector.extract_strided_slice %115 {offsets = [0, 0], sizes = [16, 32], strides = [1, 1]} : vector<16x128xf32> to vector<16x32xf32>
    %117 = arith.negf %116 : vector<16x32xf32>
    %118 = math.exp %117 : vector<16x32xf32>
    %cst_40 = arith.constant 1.000000e+00 : f32
    %119 = vector.broadcast %cst_40 : f32 to vector<16x32xf32>
    %120 = arith.addf %119, %118 : vector<16x32xf32>
    %121 = arith.divf %119, %120 : vector<16x32xf32>
    %122 = vector.extract_strided_slice %115 {offsets = [0, 32], sizes = [16, 32], strides = [1, 1]} : vector<16x128xf32> to vector<16x32xf32>
    %123 = arith.negf %122 : vector<16x32xf32>
    %124 = math.exp %123 : vector<16x32xf32>
    %cst_41 = arith.constant 1.000000e+00 : f32
    %125 = vector.broadcast %cst_41 : f32 to vector<16x32xf32>
    %126 = arith.addf %125, %124 : vector<16x32xf32>
    %127 = arith.divf %125, %126 : vector<16x32xf32>
    %128 = vector.extract_strided_slice %115 {offsets = [0, 64], sizes = [16, 32], strides = [1, 1]} : vector<16x128xf32> to vector<16x32xf32>
    %129 = math.tanh %128 : vector<16x32xf32>
    %130 = vector.extract_strided_slice %115 {offsets = [0, 96], sizes = [16, 32], strides = [1, 1]} : vector<16x128xf32> to vector<16x32xf32>
    %131 = arith.negf %130 : vector<16x32xf32>
    %132 = math.exp %131 : vector<16x32xf32>
    %cst_42 = arith.constant 1.000000e+00 : f32
    %133 = vector.broadcast %cst_42 : f32 to vector<16x32xf32>
    %134 = arith.addf %133, %132 : vector<16x32xf32>
    %135 = arith.divf %133, %134 : vector<16x32xf32>
    %136 = arith.mulf %127, %104 : vector<16x32xf32>
    %137 = arith.mulf %121, %129 : vector<16x32xf32>
    %138 = arith.addf %136, %137 : vector<16x32xf32>
    %139 = math.tanh %138 : vector<16x32xf32>
    %140 = arith.mulf %135, %139 : vector<16x32xf32>
    %141 = arith.index_cast %110 : i32 to index
    %c0_43 = arith.constant 0 : index
    %142 = vector.load %arg11[%141, %c0_43] : memref<256x32xf32, #tpu.memory_space<vmem>>, vector<16x32xf32>
    tpu.vector_store %arg11[%141, %c0_43], %140 {strides = array<i32>} : memref<256x32xf32, #tpu.memory_space<vmem>>, vector<16x32xf32>,
    %c3_i32 = arith.constant 3 : i32
    %c16_i32_44 = arith.constant 16 : i32
    %143 = arith.muli %c3_i32, %c16_i32_44 : i32
    %144 = tpu.assume_multiple %143, 8 : i32
    %145 = arith.index_cast %144 : i32 to index
    %c0_45 = arith.constant 0 : index
    %146 = vector.load %arg10[%145, %c0_45] : memref<256x128xf32, #tpu.memory_space<vmem>>, vector<16x128xf32>
    %147 = arith.truncf %140 : vector<16x32xf32> to vector<16x32xbf16>
    %cst_46 = arith.constant dense<0.000000e+00> : vector<16x128xf32>
    %148 = tpu.matmul %147, %38, %cst_46 {dimension_numbers = #tpu.dot_dimension_numbers<[1], [0], [0], [1], [0, 0, 1, 1], [], []>} : vector<16x32xbf16>, vector<32x128xbf16>, vector<16x128xf32> -> vector<16x128xf32>
    %149 = arith.addf %146, %148 : vector<16x128xf32>
    %150 = vector.extract_strided_slice %149 {offsets = [0, 0], sizes = [16, 32], strides = [1, 1]} : vector<16x128xf32> to vector<16x32xf32>
    %151 = arith.negf %150 : vector<16x32xf32>
    %152 = math.exp %151 : vector<16x32xf32>
    %cst_47 = arith.constant 1.000000e+00 : f32
    %153 = vector.broadcast %cst_47 : f32 to vector<16x32xf32>
    %154 = arith.addf %153, %152 : vector<16x32xf32>
    %155 = arith.divf %153, %154 : vector<16x32xf32>
    %156 = vector.extract_strided_slice %149 {offsets = [0, 32], sizes = [16, 32], strides = [1, 1]} : vector<16x128xf32> to vector<16x32xf32>
    %157 = arith.negf %156 : vector<16x32xf32>
    %158 = math.exp %157 : vector<16x32xf32>
    %cst_48 = arith.constant 1.000000e+00 : f32
    %159 = vector.broadcast %cst_48 : f32 to vector<16x32xf32>
    %160 = arith.addf %159, %158 : vector<16x32xf32>
    %161 = arith.divf %159, %160 : vector<16x32xf32>
    %162 = vector.extract_strided_slice %149 {offsets = [0, 64], sizes = [16, 32], strides = [1, 1]} : vector<16x128xf32> to vector<16x32xf32>
    %163 = math.tanh %162 : vector<16x32xf32>
    %164 = vector.extract_strided_slice %149 {offsets = [0, 96], sizes = [16, 32], strides = [1, 1]} : vector<16x128xf32> to vector<16x32xf32>
    %165 = arith.negf %164 : vector<16x32xf32>
    %166 = math.exp %165 : vector<16x32xf32>
    %cst_49 = arith.constant 1.000000e+00 : f32
    %167 = vector.broadcast %cst_49 : f32 to vector<16x32xf32>
    %168 = arith.addf %167, %166 : vector<16x32xf32>
    %169 = arith.divf %167, %168 : vector<16x32xf32>
    %170 = arith.mulf %161, %138 : vector<16x32xf32>
    %171 = arith.mulf %155, %163 : vector<16x32xf32>
    %172 = arith.addf %170, %171 : vector<16x32xf32>
    %173 = math.tanh %172 : vector<16x32xf32>
    %174 = arith.mulf %169, %173 : vector<16x32xf32>
    %175 = arith.index_cast %144 : i32 to index
    %c0_50 = arith.constant 0 : index
    %176 = vector.load %arg11[%175, %c0_50] : memref<256x32xf32, #tpu.memory_space<vmem>>, vector<16x32xf32>
    tpu.vector_store %arg11[%175, %c0_50], %174 {strides = array<i32>} : memref<256x32xf32, #tpu.memory_space<vmem>>, vector<16x32xf32>,
    %c4_i32 = arith.constant 4 : i32
    %c16_i32_51 = arith.constant 16 : i32
    %177 = arith.muli %c4_i32, %c16_i32_51 : i32
    %178 = tpu.assume_multiple %177, 8 : i32
    %179 = arith.index_cast %178 : i32 to index
    %c0_52 = arith.constant 0 : index
    %180 = vector.load %arg10[%179, %c0_52] : memref<256x128xf32, #tpu.memory_space<vmem>>, vector<16x128xf32>
    %181 = arith.truncf %174 : vector<16x32xf32> to vector<16x32xbf16>
    %cst_53 = arith.constant dense<0.000000e+00> : vector<16x128xf32>
    %182 = tpu.matmul %181, %38, %cst_53 {dimension_numbers = #tpu.dot_dimension_numbers<[1], [0], [0], [1], [0, 0, 1, 1], [], []>} : vector<16x32xbf16>, vector<32x128xbf16>, vector<16x128xf32> -> vector<16x128xf32>
    %183 = arith.addf %180, %182 : vector<16x128xf32>
    %184 = vector.extract_strided_slice %183 {offsets = [0, 0], sizes = [16, 32], strides = [1, 1]} : vector<16x128xf32> to vector<16x32xf32>
    %185 = arith.negf %184 : vector<16x32xf32>
    %186 = math.exp %185 : vector<16x32xf32>
    %cst_54 = arith.constant 1.000000e+00 : f32
    %187 = vector.broadcast %cst_54 : f32 to vector<16x32xf32>
    %188 = arith.addf %187, %186 : vector<16x32xf32>
    %189 = arith.divf %187, %188 : vector<16x32xf32>
    %190 = vector.extract_strided_slice %183 {offsets = [0, 32], sizes = [16, 32], strides = [1, 1]} : vector<16x128xf32> to vector<16x32xf32>
    %191 = arith.negf %190 : vector<16x32xf32>
    %192 = math.exp %191 : vector<16x32xf32>
    %cst_55 = arith.constant 1.000000e+00 : f32
    %193 = vector.broadcast %cst_55 : f32 to vector<16x32xf32>
    %194 = arith.addf %193, %192 : vector<16x32xf32>
    %195 = arith.divf %193, %194 : vector<16x32xf32>
    %196 = vector.extract_strided_slice %183 {offsets = [0, 64], sizes = [16, 32], strides = [1, 1]} : vector<16x128xf32> to vector<16x32xf32>
    %197 = math.tanh %196 : vector<16x32xf32>
    %198 = vector.extract_strided_slice %183 {offsets = [0, 96], sizes = [16, 32], strides = [1, 1]} : vector<16x128xf32> to vector<16x32xf32>
    %199 = arith.negf %198 : vector<16x32xf32>
    %200 = math.exp %199 : vector<16x32xf32>
    %cst_56 = arith.constant 1.000000e+00 : f32
    %201 = vector.broadcast %cst_56 : f32 to vector<16x32xf32>
    %202 = arith.addf %201, %200 : vector<16x32xf32>
    %203 = arith.divf %201, %202 : vector<16x32xf32>
    %204 = arith.mulf %195, %172 : vector<16x32xf32>
    %205 = arith.mulf %189, %197 : vector<16x32xf32>
    %206 = arith.addf %204, %205 : vector<16x32xf32>
    %207 = math.tanh %206 : vector<16x32xf32>
    %208 = arith.mulf %203, %207 : vector<16x32xf32>
    %209 = arith.index_cast %178 : i32 to index
    %c0_57 = arith.constant 0 : index
    %210 = vector.load %arg11[%209, %c0_57] : memref<256x32xf32, #tpu.memory_space<vmem>>, vector<16x32xf32>
    tpu.vector_store %arg11[%209, %c0_57], %208 {strides = array<i32>} : memref<256x32xf32, #tpu.memory_space<vmem>>, vector<16x32xf32>,
    %c5_i32 = arith.constant 5 : i32
    %c16_i32_58 = arith.constant 16 : i32
    %211 = arith.muli %c5_i32, %c16_i32_58 : i32
    %212 = tpu.assume_multiple %211, 8 : i32
    %213 = arith.index_cast %212 : i32 to index
    %c0_59 = arith.constant 0 : index
    %214 = vector.load %arg10[%213, %c0_59] : memref<256x128xf32, #tpu.memory_space<vmem>>, vector<16x128xf32>
    %215 = arith.truncf %208 : vector<16x32xf32> to vector<16x32xbf16>
    %cst_60 = arith.constant dense<0.000000e+00> : vector<16x128xf32>
    %216 = tpu.matmul %215, %38, %cst_60 {dimension_numbers = #tpu.dot_dimension_numbers<[1], [0], [0], [1], [0, 0, 1, 1], [], []>} : vector<16x32xbf16>, vector<32x128xbf16>, vector<16x128xf32> -> vector<16x128xf32>
    %217 = arith.addf %214, %216 : vector<16x128xf32>
    %218 = vector.extract_strided_slice %217 {offsets = [0, 0], sizes = [16, 32], strides = [1, 1]} : vector<16x128xf32> to vector<16x32xf32>
    %219 = arith.negf %218 : vector<16x32xf32>
    %220 = math.exp %219 : vector<16x32xf32>
    %cst_61 = arith.constant 1.000000e+00 : f32
    %221 = vector.broadcast %cst_61 : f32 to vector<16x32xf32>
    %222 = arith.addf %221, %220 : vector<16x32xf32>
    %223 = arith.divf %221, %222 : vector<16x32xf32>
    %224 = vector.extract_strided_slice %217 {offsets = [0, 32], sizes = [16, 32], strides = [1, 1]} : vector<16x128xf32> to vector<16x32xf32>
    %225 = arith.negf %224 : vector<16x32xf32>
    %226 = math.exp %225 : vector<16x32xf32>
    %cst_62 = arith.constant 1.000000e+00 : f32
    %227 = vector.broadcast %cst_62 : f32 to vector<16x32xf32>
    %228 = arith.addf %227, %226 : vector<16x32xf32>
    %229 = arith.divf %227, %228 : vector<16x32xf32>
    %230 = vector.extract_strided_slice %217 {offsets = [0, 64], sizes = [16, 32], strides = [1, 1]} : vector<16x128xf32> to vector<16x32xf32>
    %231 = math.tanh %230 : vector<16x32xf32>
    %232 = vector.extract_strided_slice %217 {offsets = [0, 96], sizes = [16, 32], strides = [1, 1]} : vector<16x128xf32> to vector<16x32xf32>
    %233 = arith.negf %232 : vector<16x32xf32>
    %234 = math.exp %233 : vector<16x32xf32>
    %cst_63 = arith.constant 1.000000e+00 : f32
    %235 = vector.broadcast %cst_63 : f32 to vector<16x32xf32>
    %236 = arith.addf %235, %234 : vector<16x32xf32>
    %237 = arith.divf %235, %236 : vector<16x32xf32>
    %238 = arith.mulf %229, %206 : vector<16x32xf32>
    %239 = arith.mulf %223, %231 : vector<16x32xf32>
    %240 = arith.addf %238, %239 : vector<16x32xf32>
    %241 = math.tanh %240 : vector<16x32xf32>
    %242 = arith.mulf %237, %241 : vector<16x32xf32>
    %243 = arith.index_cast %212 : i32 to index
    %c0_64 = arith.constant 0 : index
    %244 = vector.load %arg11[%243, %c0_64] : memref<256x32xf32, #tpu.memory_space<vmem>>, vector<16x32xf32>
    tpu.vector_store %arg11[%243, %c0_64], %242 {strides = array<i32>} : memref<256x32xf32, #tpu.memory_space<vmem>>, vector<16x32xf32>,
    %c6_i32 = arith.constant 6 : i32
    %c16_i32_65 = arith.constant 16 : i32
    %245 = arith.muli %c6_i32, %c16_i32_65 : i32
    %246 = tpu.assume_multiple %245, 8 : i32
    %247 = arith.index_cast %246 : i32 to index
    %c0_66 = arith.constant 0 : index
    %248 = vector.load %arg10[%247, %c0_66] : memref<256x128xf32, #tpu.memory_space<vmem>>, vector<16x128xf32>
    %249 = arith.truncf %242 : vector<16x32xf32> to vector<16x32xbf16>
    %cst_67 = arith.constant dense<0.000000e+00> : vector<16x128xf32>
    %250 = tpu.matmul %249, %38, %cst_67 {dimension_numbers = #tpu.dot_dimension_numbers<[1], [0], [0], [1], [0, 0, 1, 1], [], []>} : vector<16x32xbf16>, vector<32x128xbf16>, vector<16x128xf32> -> vector<16x128xf32>
    %251 = arith.addf %248, %250 : vector<16x128xf32>
    %252 = vector.extract_strided_slice %251 {offsets = [0, 0], sizes = [16, 32], strides = [1, 1]} : vector<16x128xf32> to vector<16x32xf32>
    %253 = arith.negf %252 : vector<16x32xf32>
    %254 = math.exp %253 : vector<16x32xf32>
    %cst_68 = arith.constant 1.000000e+00 : f32
    %255 = vector.broadcast %cst_68 : f32 to vector<16x32xf32>
    %256 = arith.addf %255, %254 : vector<16x32xf32>
    %257 = arith.divf %255, %256 : vector<16x32xf32>
    %258 = vector.extract_strided_slice %251 {offsets = [0, 32], sizes = [16, 32], strides = [1, 1]} : vector<16x128xf32> to vector<16x32xf32>
    %259 = arith.negf %258 : vector<16x32xf32>
    %260 = math.exp %259 : vector<16x32xf32>
    %cst_69 = arith.constant 1.000000e+00 : f32
    %261 = vector.broadcast %cst_69 : f32 to vector<16x32xf32>
    %262 = arith.addf %261, %260 : vector<16x32xf32>
    %263 = arith.divf %261, %262 : vector<16x32xf32>
    %264 = vector.extract_strided_slice %251 {offsets = [0, 64], sizes = [16, 32], strides = [1, 1]} : vector<16x128xf32> to vector<16x32xf32>
    %265 = math.tanh %264 : vector<16x32xf32>
    %266 = vector.extract_strided_slice %251 {offsets = [0, 96], sizes = [16, 32], strides = [1, 1]} : vector<16x128xf32> to vector<16x32xf32>
    %267 = arith.negf %266 : vector<16x32xf32>
    %268 = math.exp %267 : vector<16x32xf32>
    %cst_70 = arith.constant 1.000000e+00 : f32
    %269 = vector.broadcast %cst_70 : f32 to vector<16x32xf32>
    %270 = arith.addf %269, %268 : vector<16x32xf32>
    %271 = arith.divf %269, %270 : vector<16x32xf32>
    %272 = arith.mulf %263, %240 : vector<16x32xf32>
    %273 = arith.mulf %257, %265 : vector<16x32xf32>
    %274 = arith.addf %272, %273 : vector<16x32xf32>
    %275 = math.tanh %274 : vector<16x32xf32>
    %276 = arith.mulf %271, %275 : vector<16x32xf32>
    %277 = arith.index_cast %246 : i32 to index
    %c0_71 = arith.constant 0 : index
    %278 = vector.load %arg11[%277, %c0_71] : memref<256x32xf32, #tpu.memory_space<vmem>>, vector<16x32xf32>
    tpu.vector_store %arg11[%277, %c0_71], %276 {strides = array<i32>} : memref<256x32xf32, #tpu.memory_space<vmem>>, vector<16x32xf32>,
    %c7_i32 = arith.constant 7 : i32
    %c16_i32_72 = arith.constant 16 : i32
    %279 = arith.muli %c7_i32, %c16_i32_72 : i32
    %280 = tpu.assume_multiple %279, 8 : i32
    %281 = arith.index_cast %280 : i32 to index
    %c0_73 = arith.constant 0 : index
    %282 = vector.load %arg10[%281, %c0_73] : memref<256x128xf32, #tpu.memory_space<vmem>>, vector<16x128xf32>
    %283 = arith.truncf %276 : vector<16x32xf32> to vector<16x32xbf16>
    %cst_74 = arith.constant dense<0.000000e+00> : vector<16x128xf32>
    %284 = tpu.matmul %283, %38, %cst_74 {dimension_numbers = #tpu.dot_dimension_numbers<[1], [0], [0], [1], [0, 0, 1, 1], [], []>} : vector<16x32xbf16>, vector<32x128xbf16>, vector<16x128xf32> -> vector<16x128xf32>
    %285 = arith.addf %282, %284 : vector<16x128xf32>
    %286 = vector.extract_strided_slice %285 {offsets = [0, 0], sizes = [16, 32], strides = [1, 1]} : vector<16x128xf32> to vector<16x32xf32>
    %287 = arith.negf %286 : vector<16x32xf32>
    %288 = math.exp %287 : vector<16x32xf32>
    %cst_75 = arith.constant 1.000000e+00 : f32
    %289 = vector.broadcast %cst_75 : f32 to vector<16x32xf32>
    %290 = arith.addf %289, %288 : vector<16x32xf32>
    %291 = arith.divf %289, %290 : vector<16x32xf32>
    %292 = vector.extract_strided_slice %285 {offsets = [0, 32], sizes = [16, 32], strides = [1, 1]} : vector<16x128xf32> to vector<16x32xf32>
    %293 = arith.negf %292 : vector<16x32xf32>
    %294 = math.exp %293 : vector<16x32xf32>
    %cst_76 = arith.constant 1.000000e+00 : f32
    %295 = vector.broadcast %cst_76 : f32 to vector<16x32xf32>
    %296 = arith.addf %295, %294 : vector<16x32xf32>
    %297 = arith.divf %295, %296 : vector<16x32xf32>
    %298 = vector.extract_strided_slice %285 {offsets = [0, 64], sizes = [16, 32], strides = [1, 1]} : vector<16x128xf32> to vector<16x32xf32>
    %299 = math.tanh %298 : vector<16x32xf32>
    %300 = vector.extract_strided_slice %285 {offsets = [0, 96], sizes = [16, 32], strides = [1, 1]} : vector<16x128xf32> to vector<16x32xf32>
    %301 = arith.negf %300 : vector<16x32xf32>
    %302 = math.exp %301 : vector<16x32xf32>
    %cst_77 = arith.constant 1.000000e+00 : f32
    %303 = vector.broadcast %cst_77 : f32 to vector<16x32xf32>
    %304 = arith.addf %303, %302 : vector<16x32xf32>
    %305 = arith.divf %303, %304 : vector<16x32xf32>
    %306 = arith.mulf %297, %274 : vector<16x32xf32>
    %307 = arith.mulf %291, %299 : vector<16x32xf32>
    %308 = arith.addf %306, %307 : vector<16x32xf32>
    %309 = math.tanh %308 : vector<16x32xf32>
    %310 = arith.mulf %305, %309 : vector<16x32xf32>
    %311 = arith.index_cast %280 : i32 to index
    %c0_78 = arith.constant 0 : index
    %312 = vector.load %arg11[%311, %c0_78] : memref<256x32xf32, #tpu.memory_space<vmem>>, vector<16x32xf32>
    tpu.vector_store %arg11[%311, %c0_78], %310 {strides = array<i32>} : memref<256x32xf32, #tpu.memory_space<vmem>>, vector<16x32xf32>,
    %c8_i32 = arith.constant 8 : i32
    %c16_i32_79 = arith.constant 16 : i32
    %313 = arith.muli %c8_i32, %c16_i32_79 : i32
    %314 = tpu.assume_multiple %313, 8 : i32
    %315 = arith.index_cast %314 : i32 to index
    %c0_80 = arith.constant 0 : index
    %316 = vector.load %arg10[%315, %c0_80] : memref<256x128xf32, #tpu.memory_space<vmem>>, vector<16x128xf32>
    %317 = arith.truncf %310 : vector<16x32xf32> to vector<16x32xbf16>
    %cst_81 = arith.constant dense<0.000000e+00> : vector<16x128xf32>
    %318 = tpu.matmul %317, %38, %cst_81 {dimension_numbers = #tpu.dot_dimension_numbers<[1], [0], [0], [1], [0, 0, 1, 1], [], []>} : vector<16x32xbf16>, vector<32x128xbf16>, vector<16x128xf32> -> vector<16x128xf32>
    %319 = arith.addf %316, %318 : vector<16x128xf32>
    %320 = vector.extract_strided_slice %319 {offsets = [0, 0], sizes = [16, 32], strides = [1, 1]} : vector<16x128xf32> to vector<16x32xf32>
    %321 = arith.negf %320 : vector<16x32xf32>
    %322 = math.exp %321 : vector<16x32xf32>
    %cst_82 = arith.constant 1.000000e+00 : f32
    %323 = vector.broadcast %cst_82 : f32 to vector<16x32xf32>
    %324 = arith.addf %323, %322 : vector<16x32xf32>
    %325 = arith.divf %323, %324 : vector<16x32xf32>
    %326 = vector.extract_strided_slice %319 {offsets = [0, 32], sizes = [16, 32], strides = [1, 1]} : vector<16x128xf32> to vector<16x32xf32>
    %327 = arith.negf %326 : vector<16x32xf32>
    %328 = math.exp %327 : vector<16x32xf32>
    %cst_83 = arith.constant 1.000000e+00 : f32
    %329 = vector.broadcast %cst_83 : f32 to vector<16x32xf32>
    %330 = arith.addf %329, %328 : vector<16x32xf32>
    %331 = arith.divf %329, %330 : vector<16x32xf32>
    %332 = vector.extract_strided_slice %319 {offsets = [0, 64], sizes = [16, 32], strides = [1, 1]} : vector<16x128xf32> to vector<16x32xf32>
    %333 = math.tanh %332 : vector<16x32xf32>
    %334 = vector.extract_strided_slice %319 {offsets = [0, 96], sizes = [16, 32], strides = [1, 1]} : vector<16x128xf32> to vector<16x32xf32>
    %335 = arith.negf %334 : vector<16x32xf32>
    %336 = math.exp %335 : vector<16x32xf32>
    %cst_84 = arith.constant 1.000000e+00 : f32
    %337 = vector.broadcast %cst_84 : f32 to vector<16x32xf32>
    %338 = arith.addf %337, %336 : vector<16x32xf32>
    %339 = arith.divf %337, %338 : vector<16x32xf32>
    %340 = arith.mulf %331, %308 : vector<16x32xf32>
    %341 = arith.mulf %325, %333 : vector<16x32xf32>
    %342 = arith.addf %340, %341 : vector<16x32xf32>
    %343 = math.tanh %342 : vector<16x32xf32>
    %344 = arith.mulf %339, %343 : vector<16x32xf32>
    %345 = arith.index_cast %314 : i32 to index
    %c0_85 = arith.constant 0 : index
    %346 = vector.load %arg11[%345, %c0_85] : memref<256x32xf32, #tpu.memory_space<vmem>>, vector<16x32xf32>
    tpu.vector_store %arg11[%345, %c0_85], %344 {strides = array<i32>} : memref<256x32xf32, #tpu.memory_space<vmem>>, vector<16x32xf32>,
    %c9_i32 = arith.constant 9 : i32
    %c16_i32_86 = arith.constant 16 : i32
    %347 = arith.muli %c9_i32, %c16_i32_86 : i32
    %348 = tpu.assume_multiple %347, 8 : i32
    %349 = arith.index_cast %348 : i32 to index
    %c0_87 = arith.constant 0 : index
    %350 = vector.load %arg10[%349, %c0_87] : memref<256x128xf32, #tpu.memory_space<vmem>>, vector<16x128xf32>
    %351 = arith.truncf %344 : vector<16x32xf32> to vector<16x32xbf16>
    %cst_88 = arith.constant dense<0.000000e+00> : vector<16x128xf32>
    %352 = tpu.matmul %351, %38, %cst_88 {dimension_numbers = #tpu.dot_dimension_numbers<[1], [0], [0], [1], [0, 0, 1, 1], [], []>} : vector<16x32xbf16>, vector<32x128xbf16>, vector<16x128xf32> -> vector<16x128xf32>
    %353 = arith.addf %350, %352 : vector<16x128xf32>
    %354 = vector.extract_strided_slice %353 {offsets = [0, 0], sizes = [16, 32], strides = [1, 1]} : vector<16x128xf32> to vector<16x32xf32>
    %355 = arith.negf %354 : vector<16x32xf32>
    %356 = math.exp %355 : vector<16x32xf32>
    %cst_89 = arith.constant 1.000000e+00 : f32
    %357 = vector.broadcast %cst_89 : f32 to vector<16x32xf32>
    %358 = arith.addf %357, %356 : vector<16x32xf32>
    %359 = arith.divf %357, %358 : vector<16x32xf32>
    %360 = vector.extract_strided_slice %353 {offsets = [0, 32], sizes = [16, 32], strides = [1, 1]} : vector<16x128xf32> to vector<16x32xf32>
    %361 = arith.negf %360 : vector<16x32xf32>
    %362 = math.exp %361 : vector<16x32xf32>
    %cst_90 = arith.constant 1.000000e+00 : f32
    %363 = vector.broadcast %cst_90 : f32 to vector<16x32xf32>
    %364 = arith.addf %363, %362 : vector<16x32xf32>
    %365 = arith.divf %363, %364 : vector<16x32xf32>
    %366 = vector.extract_strided_slice %353 {offsets = [0, 64], sizes = [16, 32], strides = [1, 1]} : vector<16x128xf32> to vector<16x32xf32>
    %367 = math.tanh %366 : vector<16x32xf32>
    %368 = vector.extract_strided_slice %353 {offsets = [0, 96], sizes = [16, 32], strides = [1, 1]} : vector<16x128xf32> to vector<16x32xf32>
    %369 = arith.negf %368 : vector<16x32xf32>
    %370 = math.exp %369 : vector<16x32xf32>
    %cst_91 = arith.constant 1.000000e+00 : f32
    %371 = vector.broadcast %cst_91 : f32 to vector<16x32xf32>
    %372 = arith.addf %371, %370 : vector<16x32xf32>
    %373 = arith.divf %371, %372 : vector<16x32xf32>
    %374 = arith.mulf %365, %342 : vector<16x32xf32>
    %375 = arith.mulf %359, %367 : vector<16x32xf32>
    %376 = arith.addf %374, %375 : vector<16x32xf32>
    %377 = math.tanh %376 : vector<16x32xf32>
    %378 = arith.mulf %373, %377 : vector<16x32xf32>
    %379 = arith.index_cast %348 : i32 to index
    %c0_92 = arith.constant 0 : index
    %380 = vector.load %arg11[%379, %c0_92] : memref<256x32xf32, #tpu.memory_space<vmem>>, vector<16x32xf32>
    tpu.vector_store %arg11[%379, %c0_92], %378 {strides = array<i32>} : memref<256x32xf32, #tpu.memory_space<vmem>>, vector<16x32xf32>,
    %c10_i32 = arith.constant 10 : i32
    %c16_i32_93 = arith.constant 16 : i32
    %381 = arith.muli %c10_i32, %c16_i32_93 : i32
    %382 = tpu.assume_multiple %381, 8 : i32
    %383 = arith.index_cast %382 : i32 to index
    %c0_94 = arith.constant 0 : index
    %384 = vector.load %arg10[%383, %c0_94] : memref<256x128xf32, #tpu.memory_space<vmem>>, vector<16x128xf32>
    %385 = arith.truncf %378 : vector<16x32xf32> to vector<16x32xbf16>
    %cst_95 = arith.constant dense<0.000000e+00> : vector<16x128xf32>
    %386 = tpu.matmul %385, %38, %cst_95 {dimension_numbers = #tpu.dot_dimension_numbers<[1], [0], [0], [1], [0, 0, 1, 1], [], []>} : vector<16x32xbf16>, vector<32x128xbf16>, vector<16x128xf32> -> vector<16x128xf32>
    %387 = arith.addf %384, %386 : vector<16x128xf32>
    %388 = vector.extract_strided_slice %387 {offsets = [0, 0], sizes = [16, 32], strides = [1, 1]} : vector<16x128xf32> to vector<16x32xf32>
    %389 = arith.negf %388 : vector<16x32xf32>
    %390 = math.exp %389 : vector<16x32xf32>
    %cst_96 = arith.constant 1.000000e+00 : f32
    %391 = vector.broadcast %cst_96 : f32 to vector<16x32xf32>
    %392 = arith.addf %391, %390 : vector<16x32xf32>
    %393 = arith.divf %391, %392 : vector<16x32xf32>
    %394 = vector.extract_strided_slice %387 {offsets = [0, 32], sizes = [16, 32], strides = [1, 1]} : vector<16x128xf32> to vector<16x32xf32>
    %395 = arith.negf %394 : vector<16x32xf32>
    %396 = math.exp %395 : vector<16x32xf32>
    %cst_97 = arith.constant 1.000000e+00 : f32
    %397 = vector.broadcast %cst_97 : f32 to vector<16x32xf32>
    %398 = arith.addf %397, %396 : vector<16x32xf32>
    %399 = arith.divf %397, %398 : vector<16x32xf32>
    %400 = vector.extract_strided_slice %387 {offsets = [0, 64], sizes = [16, 32], strides = [1, 1]} : vector<16x128xf32> to vector<16x32xf32>
    %401 = math.tanh %400 : vector<16x32xf32>
    %402 = vector.extract_strided_slice %387 {offsets = [0, 96], sizes = [16, 32], strides = [1, 1]} : vector<16x128xf32> to vector<16x32xf32>
    %403 = arith.negf %402 : vector<16x32xf32>
    %404 = math.exp %403 : vector<16x32xf32>
    %cst_98 = arith.constant 1.000000e+00 : f32
    %405 = vector.broadcast %cst_98 : f32 to vector<16x32xf32>
    %406 = arith.addf %405, %404 : vector<16x32xf32>
    %407 = arith.divf %405, %406 : vector<16x32xf32>
    %408 = arith.mulf %399, %376 : vector<16x32xf32>
    %409 = arith.mulf %393, %401 : vector<16x32xf32>
    %410 = arith.addf %408, %409 : vector<16x32xf32>
    %411 = math.tanh %410 : vector<16x32xf32>
    %412 = arith.mulf %407, %411 : vector<16x32xf32>
    %413 = arith.index_cast %382 : i32 to index
    %c0_99 = arith.constant 0 : index
    %414 = vector.load %arg11[%413, %c0_99] : memref<256x32xf32, #tpu.memory_space<vmem>>, vector<16x32xf32>
    tpu.vector_store %arg11[%413, %c0_99], %412 {strides = array<i32>} : memref<256x32xf32, #tpu.memory_space<vmem>>, vector<16x32xf32>,
    %c11_i32 = arith.constant 11 : i32
    %c16_i32_100 = arith.constant 16 : i32
    %415 = arith.muli %c11_i32, %c16_i32_100 : i32
    %416 = tpu.assume_multiple %415, 8 : i32
    %417 = arith.index_cast %416 : i32 to index
    %c0_101 = arith.constant 0 : index
    %418 = vector.load %arg10[%417, %c0_101] : memref<256x128xf32, #tpu.memory_space<vmem>>, vector<16x128xf32>
    %419 = arith.truncf %412 : vector<16x32xf32> to vector<16x32xbf16>
    %cst_102 = arith.constant dense<0.000000e+00> : vector<16x128xf32>
    %420 = tpu.matmul %419, %38, %cst_102 {dimension_numbers = #tpu.dot_dimension_numbers<[1], [0], [0], [1], [0, 0, 1, 1], [], []>} : vector<16x32xbf16>, vector<32x128xbf16>, vector<16x128xf32> -> vector<16x128xf32>
    %421 = arith.addf %418, %420 : vector<16x128xf32>
    %422 = vector.extract_strided_slice %421 {offsets = [0, 0], sizes = [16, 32], strides = [1, 1]} : vector<16x128xf32> to vector<16x32xf32>
    %423 = arith.negf %422 : vector<16x32xf32>
    %424 = math.exp %423 : vector<16x32xf32>
    %cst_103 = arith.constant 1.000000e+00 : f32
    %425 = vector.broadcast %cst_103 : f32 to vector<16x32xf32>
    %426 = arith.addf %425, %424 : vector<16x32xf32>
    %427 = arith.divf %425, %426 : vector<16x32xf32>
    %428 = vector.extract_strided_slice %421 {offsets = [0, 32], sizes = [16, 32], strides = [1, 1]} : vector<16x128xf32> to vector<16x32xf32>
    %429 = arith.negf %428 : vector<16x32xf32>
    %430 = math.exp %429 : vector<16x32xf32>
    %cst_104 = arith.constant 1.000000e+00 : f32
    %431 = vector.broadcast %cst_104 : f32 to vector<16x32xf32>
    %432 = arith.addf %431, %430 : vector<16x32xf32>
    %433 = arith.divf %431, %432 : vector<16x32xf32>
    %434 = vector.extract_strided_slice %421 {offsets = [0, 64], sizes = [16, 32], strides = [1, 1]} : vector<16x128xf32> to vector<16x32xf32>
    %435 = math.tanh %434 : vector<16x32xf32>
    %436 = vector.extract_strided_slice %421 {offsets = [0, 96], sizes = [16, 32], strides = [1, 1]} : vector<16x128xf32> to vector<16x32xf32>
    %437 = arith.negf %436 : vector<16x32xf32>
    %438 = math.exp %437 : vector<16x32xf32>
    %cst_105 = arith.constant 1.000000e+00 : f32
    %439 = vector.broadcast %cst_105 : f32 to vector<16x32xf32>
    %440 = arith.addf %439, %438 : vector<16x32xf32>
    %441 = arith.divf %439, %440 : vector<16x32xf32>
    %442 = arith.mulf %433, %410 : vector<16x32xf32>
    %443 = arith.mulf %427, %435 : vector<16x32xf32>
    %444 = arith.addf %442, %443 : vector<16x32xf32>
    %445 = math.tanh %444 : vector<16x32xf32>
    %446 = arith.mulf %441, %445 : vector<16x32xf32>
    %447 = arith.index_cast %416 : i32 to index
    %c0_106 = arith.constant 0 : index
    %448 = vector.load %arg11[%447, %c0_106] : memref<256x32xf32, #tpu.memory_space<vmem>>, vector<16x32xf32>
    tpu.vector_store %arg11[%447, %c0_106], %446 {strides = array<i32>} : memref<256x32xf32, #tpu.memory_space<vmem>>, vector<16x32xf32>,
    %c12_i32 = arith.constant 12 : i32
    %c16_i32_107 = arith.constant 16 : i32
    %449 = arith.muli %c12_i32, %c16_i32_107 : i32
    %450 = tpu.assume_multiple %449, 8 : i32
    %451 = arith.index_cast %450 : i32 to index
    %c0_108 = arith.constant 0 : index
    %452 = vector.load %arg10[%451, %c0_108] : memref<256x128xf32, #tpu.memory_space<vmem>>, vector<16x128xf32>
    %453 = arith.truncf %446 : vector<16x32xf32> to vector<16x32xbf16>
    %cst_109 = arith.constant dense<0.000000e+00> : vector<16x128xf32>
    %454 = tpu.matmul %453, %38, %cst_109 {dimension_numbers = #tpu.dot_dimension_numbers<[1], [0], [0], [1], [0, 0, 1, 1], [], []>} : vector<16x32xbf16>, vector<32x128xbf16>, vector<16x128xf32> -> vector<16x128xf32>
    %455 = arith.addf %452, %454 : vector<16x128xf32>
    %456 = vector.extract_strided_slice %455 {offsets = [0, 0], sizes = [16, 32], strides = [1, 1]} : vector<16x128xf32> to vector<16x32xf32>
    %457 = arith.negf %456 : vector<16x32xf32>
    %458 = math.exp %457 : vector<16x32xf32>
    %cst_110 = arith.constant 1.000000e+00 : f32
    %459 = vector.broadcast %cst_110 : f32 to vector<16x32xf32>
    %460 = arith.addf %459, %458 : vector<16x32xf32>
    %461 = arith.divf %459, %460 : vector<16x32xf32>
    %462 = vector.extract_strided_slice %455 {offsets = [0, 32], sizes = [16, 32], strides = [1, 1]} : vector<16x128xf32> to vector<16x32xf32>
    %463 = arith.negf %462 : vector<16x32xf32>
    %464 = math.exp %463 : vector<16x32xf32>
    %cst_111 = arith.constant 1.000000e+00 : f32
    %465 = vector.broadcast %cst_111 : f32 to vector<16x32xf32>
    %466 = arith.addf %465, %464 : vector<16x32xf32>
    %467 = arith.divf %465, %466 : vector<16x32xf32>
    %468 = vector.extract_strided_slice %455 {offsets = [0, 64], sizes = [16, 32], strides = [1, 1]} : vector<16x128xf32> to vector<16x32xf32>
    %469 = math.tanh %468 : vector<16x32xf32>
    %470 = vector.extract_strided_slice %455 {offsets = [0, 96], sizes = [16, 32], strides = [1, 1]} : vector<16x128xf32> to vector<16x32xf32>
    %471 = arith.negf %470 : vector<16x32xf32>
    %472 = math.exp %471 : vector<16x32xf32>
    %cst_112 = arith.constant 1.000000e+00 : f32
    %473 = vector.broadcast %cst_112 : f32 to vector<16x32xf32>
    %474 = arith.addf %473, %472 : vector<16x32xf32>
    %475 = arith.divf %473, %474 : vector<16x32xf32>
    %476 = arith.mulf %467, %444 : vector<16x32xf32>
    %477 = arith.mulf %461, %469 : vector<16x32xf32>
    %478 = arith.addf %476, %477 : vector<16x32xf32>
    %479 = math.tanh %478 : vector<16x32xf32>
    %480 = arith.mulf %475, %479 : vector<16x32xf32>
    %481 = arith.index_cast %450 : i32 to index
    %c0_113 = arith.constant 0 : index
    %482 = vector.load %arg11[%481, %c0_113] : memref<256x32xf32, #tpu.memory_space<vmem>>, vector<16x32xf32>
    tpu.vector_store %arg11[%481, %c0_113], %480 {strides = array<i32>} : memref<256x32xf32, #tpu.memory_space<vmem>>, vector<16x32xf32>,
    %c13_i32 = arith.constant 13 : i32
    %c16_i32_114 = arith.constant 16 : i32
    %483 = arith.muli %c13_i32, %c16_i32_114 : i32
    %484 = tpu.assume_multiple %483, 8 : i32
    %485 = arith.index_cast %484 : i32 to index
    %c0_115 = arith.constant 0 : index
    %486 = vector.load %arg10[%485, %c0_115] : memref<256x128xf32, #tpu.memory_space<vmem>>, vector<16x128xf32>
    %487 = arith.truncf %480 : vector<16x32xf32> to vector<16x32xbf16>
    %cst_116 = arith.constant dense<0.000000e+00> : vector<16x128xf32>
    %488 = tpu.matmul %487, %38, %cst_116 {dimension_numbers = #tpu.dot_dimension_numbers<[1], [0], [0], [1], [0, 0, 1, 1], [], []>} : vector<16x32xbf16>, vector<32x128xbf16>, vector<16x128xf32> -> vector<16x128xf32>
    %489 = arith.addf %486, %488 : vector<16x128xf32>
    %490 = vector.extract_strided_slice %489 {offsets = [0, 0], sizes = [16, 32], strides = [1, 1]} : vector<16x128xf32> to vector<16x32xf32>
    %491 = arith.negf %490 : vector<16x32xf32>
    %492 = math.exp %491 : vector<16x32xf32>
    %cst_117 = arith.constant 1.000000e+00 : f32
    %493 = vector.broadcast %cst_117 : f32 to vector<16x32xf32>
    %494 = arith.addf %493, %492 : vector<16x32xf32>
    %495 = arith.divf %493, %494 : vector<16x32xf32>
    %496 = vector.extract_strided_slice %489 {offsets = [0, 32], sizes = [16, 32], strides = [1, 1]} : vector<16x128xf32> to vector<16x32xf32>
    %497 = arith.negf %496 : vector<16x32xf32>
    %498 = math.exp %497 : vector<16x32xf32>
    %cst_118 = arith.constant 1.000000e+00 : f32
    %499 = vector.broadcast %cst_118 : f32 to vector<16x32xf32>
    %500 = arith.addf %499, %498 : vector<16x32xf32>
    %501 = arith.divf %499, %500 : vector<16x32xf32>
    %502 = vector.extract_strided_slice %489 {offsets = [0, 64], sizes = [16, 32], strides = [1, 1]} : vector<16x128xf32> to vector<16x32xf32>
    %503 = math.tanh %502 : vector<16x32xf32>
    %504 = vector.extract_strided_slice %489 {offsets = [0, 96], sizes = [16, 32], strides = [1, 1]} : vector<16x128xf32> to vector<16x32xf32>
    %505 = arith.negf %504 : vector<16x32xf32>
    %506 = math.exp %505 : vector<16x32xf32>
    %cst_119 = arith.constant 1.000000e+00 : f32
    %507 = vector.broadcast %cst_119 : f32 to vector<16x32xf32>
    %508 = arith.addf %507, %506 : vector<16x32xf32>
    %509 = arith.divf %507, %508 : vector<16x32xf32>
    %510 = arith.mulf %501, %478 : vector<16x32xf32>
    %511 = arith.mulf %495, %503 : vector<16x32xf32>
    %512 = arith.addf %510, %511 : vector<16x32xf32>
    %513 = math.tanh %512 : vector<16x32xf32>
    %514 = arith.mulf %509, %513 : vector<16x32xf32>
    %515 = arith.index_cast %484 : i32 to index
    %c0_120 = arith.constant 0 : index
    %516 = vector.load %arg11[%515, %c0_120] : memref<256x32xf32, #tpu.memory_space<vmem>>, vector<16x32xf32>
    tpu.vector_store %arg11[%515, %c0_120], %514 {strides = array<i32>} : memref<256x32xf32, #tpu.memory_space<vmem>>, vector<16x32xf32>,
    %c14_i32 = arith.constant 14 : i32
    %c16_i32_121 = arith.constant 16 : i32
    %517 = arith.muli %c14_i32, %c16_i32_121 : i32
    %518 = tpu.assume_multiple %517, 8 : i32
    %519 = arith.index_cast %518 : i32 to index
    %c0_122 = arith.constant 0 : index
    %520 = vector.load %arg10[%519, %c0_122] : memref<256x128xf32, #tpu.memory_space<vmem>>, vector<16x128xf32>
    %521 = arith.truncf %514 : vector<16x32xf32> to vector<16x32xbf16>
    %cst_123 = arith.constant dense<0.000000e+00> : vector<16x128xf32>
    %522 = tpu.matmul %521, %38, %cst_123 {dimension_numbers = #tpu.dot_dimension_numbers<[1], [0], [0], [1], [0, 0, 1, 1], [], []>} : vector<16x32xbf16>, vector<32x128xbf16>, vector<16x128xf32> -> vector<16x128xf32>
    %523 = arith.addf %520, %522 : vector<16x128xf32>
    %524 = vector.extract_strided_slice %523 {offsets = [0, 0], sizes = [16, 32], strides = [1, 1]} : vector<16x128xf32> to vector<16x32xf32>
    %525 = arith.negf %524 : vector<16x32xf32>
    %526 = math.exp %525 : vector<16x32xf32>
    %cst_124 = arith.constant 1.000000e+00 : f32
    %527 = vector.broadcast %cst_124 : f32 to vector<16x32xf32>
    %528 = arith.addf %527, %526 : vector<16x32xf32>
    %529 = arith.divf %527, %528 : vector<16x32xf32>
    %530 = vector.extract_strided_slice %523 {offsets = [0, 32], sizes = [16, 32], strides = [1, 1]} : vector<16x128xf32> to vector<16x32xf32>
    %531 = arith.negf %530 : vector<16x32xf32>
    %532 = math.exp %531 : vector<16x32xf32>
    %cst_125 = arith.constant 1.000000e+00 : f32
    %533 = vector.broadcast %cst_125 : f32 to vector<16x32xf32>
    %534 = arith.addf %533, %532 : vector<16x32xf32>
    %535 = arith.divf %533, %534 : vector<16x32xf32>
    %536 = vector.extract_strided_slice %523 {offsets = [0, 64], sizes = [16, 32], strides = [1, 1]} : vector<16x128xf32> to vector<16x32xf32>
    %537 = math.tanh %536 : vector<16x32xf32>
    %538 = vector.extract_strided_slice %523 {offsets = [0, 96], sizes = [16, 32], strides = [1, 1]} : vector<16x128xf32> to vector<16x32xf32>
    %539 = arith.negf %538 : vector<16x32xf32>
    %540 = math.exp %539 : vector<16x32xf32>
    %cst_126 = arith.constant 1.000000e+00 : f32
    %541 = vector.broadcast %cst_126 : f32 to vector<16x32xf32>
    %542 = arith.addf %541, %540 : vector<16x32xf32>
    %543 = arith.divf %541, %542 : vector<16x32xf32>
    %544 = arith.mulf %535, %512 : vector<16x32xf32>
    %545 = arith.mulf %529, %537 : vector<16x32xf32>
    %546 = arith.addf %544, %545 : vector<16x32xf32>
    %547 = math.tanh %546 : vector<16x32xf32>
    %548 = arith.mulf %543, %547 : vector<16x32xf32>
    %549 = arith.index_cast %518 : i32 to index
    %c0_127 = arith.constant 0 : index
    %550 = vector.load %arg11[%549, %c0_127] : memref<256x32xf32, #tpu.memory_space<vmem>>, vector<16x32xf32>
    tpu.vector_store %arg11[%549, %c0_127], %548 {strides = array<i32>} : memref<256x32xf32, #tpu.memory_space<vmem>>, vector<16x32xf32>,
    %c15_i32_128 = arith.constant 15 : i32
    %c16_i32_129 = arith.constant 16 : i32
    %551 = arith.muli %c15_i32_128, %c16_i32_129 : i32
    %552 = tpu.assume_multiple %551, 8 : i32
    %553 = arith.index_cast %552 : i32 to index
    %c0_130 = arith.constant 0 : index
    %554 = vector.load %arg10[%553, %c0_130] : memref<256x128xf32, #tpu.memory_space<vmem>>, vector<16x128xf32>
    %555 = arith.truncf %548 : vector<16x32xf32> to vector<16x32xbf16>
    %cst_131 = arith.constant dense<0.000000e+00> : vector<16x128xf32>
    %556 = tpu.matmul %555, %38, %cst_131 {dimension_numbers = #tpu.dot_dimension_numbers<[1], [0], [0], [1], [0, 0, 1, 1], [], []>} : vector<16x32xbf16>, vector<32x128xbf16>, vector<16x128xf32> -> vector<16x128xf32>
    %557 = arith.addf %554, %556 : vector<16x128xf32>
    %558 = vector.extract_strided_slice %557 {offsets = [0, 0], sizes = [16, 32], strides = [1, 1]} : vector<16x128xf32> to vector<16x32xf32>
    %559 = arith.negf %558 : vector<16x32xf32>
    %560 = math.exp %559 : vector<16x32xf32>
    %cst_132 = arith.constant 1.000000e+00 : f32
    %561 = vector.broadcast %cst_132 : f32 to vector<16x32xf32>
    %562 = arith.addf %561, %560 : vector<16x32xf32>
    %563 = arith.divf %561, %562 : vector<16x32xf32>
    %564 = vector.extract_strided_slice %557 {offsets = [0, 32], sizes = [16, 32], strides = [1, 1]} : vector<16x128xf32> to vector<16x32xf32>
    %565 = arith.negf %564 : vector<16x32xf32>
    %566 = math.exp %565 : vector<16x32xf32>
    %cst_133 = arith.constant 1.000000e+00 : f32
    %567 = vector.broadcast %cst_133 : f32 to vector<16x32xf32>
    %568 = arith.addf %567, %566 : vector<16x32xf32>
    %569 = arith.divf %567, %568 : vector<16x32xf32>
    %570 = vector.extract_strided_slice %557 {offsets = [0, 64], sizes = [16, 32], strides = [1, 1]} : vector<16x128xf32> to vector<16x32xf32>
    %571 = math.tanh %570 : vector<16x32xf32>
    %572 = vector.extract_strided_slice %557 {offsets = [0, 96], sizes = [16, 32], strides = [1, 1]} : vector<16x128xf32> to vector<16x32xf32>
    %573 = arith.negf %572 : vector<16x32xf32>
    %574 = math.exp %573 : vector<16x32xf32>
    %cst_134 = arith.constant 1.000000e+00 : f32
    %575 = vector.broadcast %cst_134 : f32 to vector<16x32xf32>
    %576 = arith.addf %575, %574 : vector<16x32xf32>
    %577 = arith.divf %575, %576 : vector<16x32xf32>
    %578 = arith.mulf %569, %546 : vector<16x32xf32>
    %579 = arith.mulf %563, %571 : vector<16x32xf32>
    %580 = arith.addf %578, %579 : vector<16x32xf32>
    %581 = math.tanh %580 : vector<16x32xf32>
    %582 = arith.mulf %577, %581 : vector<16x32xf32>
    %583 = arith.index_cast %552 : i32 to index
    %c0_135 = arith.constant 0 : index
    %584 = vector.load %arg11[%583, %c0_135] : memref<256x32xf32, #tpu.memory_space<vmem>>, vector<16x32xf32>
    tpu.vector_store %arg11[%583, %c0_135], %582 {strides = array<i32>} : memref<256x32xf32, #tpu.memory_space<vmem>>, vector<16x32xf32>,
    %c16_i32_136 = arith.constant 16 : i32
    %c0_137 = arith.constant 0 : index
    %c0_138 = arith.constant 0 : index
    %585 = vector.load %arg8[%c0_137, %c0_138] : memref<16x32xf32, #tpu.memory_space<vmem>>, vector<16x32xf32>
    tpu.vector_store %arg8[%c0_137, %c0_138], %582 {strides = array<i32>} : memref<16x32xf32, #tpu.memory_space<vmem>>, vector<16x32xf32>,
    %c0_139 = arith.constant 0 : index
    %c0_140 = arith.constant 0 : index
    %586 = vector.load %arg9[%c0_139, %c0_140] : memref<16x32xf32, #tpu.memory_space<vmem>>, vector<16x32xf32>
    tpu.vector_store %arg9[%c0_139, %c0_140], %580 {strides = array<i32>} : memref<16x32xf32, #tpu.memory_space<vmem>>, vector<16x32xf32>,
    %c0_141 = arith.constant 0 : index
    %c0_142 = arith.constant 0 : index
    %587 = vector.load %arg11[%c0_141, %c0_142] : memref<256x32xf32, #tpu.memory_space<vmem>>, vector<256x32xf32>
    %588 = arith.truncf %587 : vector<256x32xf32> to vector<256x32xbf16>
    %c0_143 = arith.constant 0 : index
    %c0_144 = arith.constant 0 : index
    %589 = vector.load %arg5[%c0_143, %c0_144] : memref<32x4xbf16, #tpu.memory_space<vmem>>, vector<32x4xbf16>
    %cst_145 = arith.constant dense<0.000000e+00> : vector<256x4xf32>
    %590 = tpu.matmul %588, %589, %cst_145 {dimension_numbers = #tpu.dot_dimension_numbers<[1], [0], [0], [1], [0, 0, 1, 1], [], []>} : vector<256x32xbf16>, vector<32x4xbf16>, vector<256x4xf32> -> vector<256x4xf32>
    %c0_146 = arith.constant 0 : index
    %c0_147 = arith.constant 0 : index
    %591 = vector.load %arg6[%c0_146, %c0_147] : memref<1x4xf32, #tpu.memory_space<vmem>>, vector<1x4xf32>
    %592 = vector.broadcast %591 : vector<1x4xf32> to vector<256x4xf32>
    %593 = arith.addf %590, %592 : vector<256x4xf32>
    %c0_148 = arith.constant 0 : index
    %c0_149 = arith.constant 0 : index
    %594 = vector.load %arg7[%c0_148, %c0_149] : memref<256x4xf32, #tpu.memory_space<vmem>>, vector<256x4xf32>
    tpu.vector_store %arg7[%c0_148, %c0_149], %593 {strides = array<i32>} : memref<256x4xf32, #tpu.memory_space<vmem>>, vector<256x4xf32>,
    return
  }
  func.func @transform_0(%arg0: i32) -> (i32, i32) {
    %c0_i32 = arith.constant 0 : i32
    %c0_i32_0 = arith.constant 0 : i32
    return %arg0, %c0_i32 : i32, i32
  }
  func.func @transform_1(%arg0: i32) -> (i32, i32) {
    %c0_i32 = arith.constant 0 : i32
    %c0_i32_0 = arith.constant 0 : i32
    %c0_i32_1 = arith.constant 0 : i32
    return %c0_i32, %c0_i32_0 : i32, i32
  }
  func.func @transform_2(%arg0: i32) -> (i32, i32) {
    %c0_i32 = arith.constant 0 : i32
    %c0_i32_0 = arith.constant 0 : i32
    %c0_i32_1 = arith.constant 0 : i32
    return %c0_i32, %c0_i32_0 : i32, i32
  }
  func.func @transform_3(%arg0: i32) -> (i32, i32) {
    %c0_i32 = arith.constant 0 : i32
    %c0_i32_0 = arith.constant 0 : i32
    %c0_i32_1 = arith.constant 0 : i32
    return %c0_i32, %c0_i32_0 : i32, i32
  }
  func.func @transform_4(%arg0: i32) -> (i32, i32) {
    %c0_i32 = arith.constant 0 : i32
    %c0_i32_0 = arith.constant 0 : i32
    %c0_i32_1 = arith.constant 0 : i32
    return %c0_i32, %c0_i32_0 : i32, i32
  }
  func.func @transform_5(%arg0: i32) -> (i32, i32) {
    %c0_i32 = arith.constant 0 : i32
    %c0_i32_0 = arith.constant 0 : i32
    %c0_i32_1 = arith.constant 0 : i32
    return %c0_i32, %c0_i32_0 : i32, i32
  }
  func.func @transform_6(%arg0: i32) -> (i32, i32) {
    %c0_i32 = arith.constant 0 : i32
    %c0_i32_0 = arith.constant 0 : i32
    return %arg0, %c0_i32 : i32, i32
  }
}

</mosaic_0001>

<llo_original>
// kernel: tpu_custom_call.1
$region0: #{tpu_custom_call.1}
  #allocation0 [shape = 'u32[]', space=smem, size = 0x4, offset = 0x4, fixed_abs, tag = 'smem constant byte address 0x4 - core index']
  #allocation1 [shape = 'u32[144,128]{1,0:T(1,128)}', space=vmem, size = 0x12000, scoped, tag = 'internal scratch']
  #allocation2 [shape = 'f32[16,32]{1,0:T(8,128)}', space=vmem, size = 0x2000, scoped, tag = 'scratch operand']
  #allocation3 [shape = 'f32[16,32]{1,0:T(8,128)}', space=vmem, size = 0x2000, scoped, tag = 'scratch operand']
  #allocation4 [shape = 'f32[256,128]{1,0:T(8,128)}', space=vmem, size = 0x20000, scoped, tag = 'scratch operand']
  #allocation5 [shape = 'f32[256,32]{1,0:T(8,128)}', space=vmem, size = 0x20000, scoped, tag = 'scratch operand']
  %s0 = inlined_call_operand.vmem [shape: f32[256,4], index: 0, kind: input, shape index: {}]
  %s1 = inlined_call_operand.vmem [shape: bf16[12,128], index: 1, kind: input, shape index: {}]
  %s2 = inlined_call_operand.vmem [shape: f32[1,128], index: 2, kind: input, shape index: {}]
  %s3 = inlined_call_operand.vmem [shape: bf16[32,128], index: 3, kind: input, shape index: {}]
  %s4 = inlined_call_operand.vmem [shape: bf16[32,4], index: 4, kind: input, shape index: {}]
  %s5 = inlined_call_operand.vmem [shape: f32[1,4], index: 5, kind: input, shape index: {}]
  %s6 = inlined_call_operand.vmem [shape: f32[256,4], index: 6, kind: output, shape index: {}]
  %s7 = sld [smem:[#allocation0]]
  $region38: #{tpu_custom_call.1} parent=0
    _
  %s9 = ssub.s32 1, %s7
  %s10 = scalar_select 0, %s9, %s7
  // Predicated region
  $region2: #{tpu_custom_call.1} parent=0 // pred_check
    _
  $region3: #{tpu_custom_call.1} parent=0 // pred_check_branch
    %12 = sbr.rel (0) target = $region5
  $region4: #{tpu_custom_call.1} parent=0 // pred_region
    _
  $region5: #{tpu_custom_call.1} parent=0 // pred_fallthru
    _
  // Predicated region
  $region6: #{tpu_custom_call.1} parent=0 // pred_check
    _
  $region7: #{tpu_custom_call.1} parent=0 // pred_check_branch
    %14 = sbr.rel (0) target = $region9
  $region8: #{tpu_custom_call.1} parent=0 // pred_region
    _
  $region9: #{tpu_custom_call.1} parent=0 // pred_fallthru
    _
  // Predicated region
  $region10: #{tpu_custom_call.1} parent=0 // pred_check
    _
  $region11: #{tpu_custom_call.1} parent=0 // pred_check_branch
    %16 = sbr.rel (0) target = $region13
  $region12: #{tpu_custom_call.1} parent=0 // pred_region
    _
  $region13: #{tpu_custom_call.1} parent=0 // pred_fallthru
    _
  // Predicated region
  $region14: #{tpu_custom_call.1} parent=0 // pred_check
    _
  $region15: #{tpu_custom_call.1} parent=0 // pred_check_branch
    %18 = sbr.rel (0) target = $region17
  $region16: #{tpu_custom_call.1} parent=0 // pred_region
    _
  $region17: #{tpu_custom_call.1} parent=0 // pred_fallthru
    _
  // Predicated region
  $region18: #{tpu_custom_call.1} parent=0 // pred_check
    _
  $region19: #{tpu_custom_call.1} parent=0 // pred_check_branch
    %20 = sbr.rel (0) target = $region21
  $region20: #{tpu_custom_call.1} parent=0 // pred_region
    _
  $region21: #{tpu_custom_call.1} parent=0 // pred_fallthru
    _
  // Predicated region
  $region22: #{tpu_custom_call.1} parent=0 // pred_check
    _
  $region23: #{tpu_custom_call.1} parent=0 // pred_check_branch
    %22 = sbr.rel (0) target = $region25
  $region24: #{tpu_custom_call.1} parent=0 // pred_region
    _
  $region25: #{tpu_custom_call.1} parent=0 // pred_fallthru
    _
  %p24 = scmp.eq.s32.totalorder 0, 0
  // Predicated region
  $region26: #{tpu_custom_call.1} parent=0 // pred_check
    %p25 = pneg %p24
  $region27: #{tpu_custom_call.1} parent=0 // pred_check_branch
    %27 = sbr.rel (%p25) target = $region29
  $region28: #{tpu_custom_call.1} parent=0 // pred_region
    %vm28 = vcmask 261120
    %29 = vst.msk [vmem:[#allocation2] sm:$0xff] %vm28, 0.0
    %30 = vst.msk [vmem:[#allocation2 + $0x8] sm:$0xff] %vm28, 0.0
    %31 = vst.msk [vmem:[#allocation3] sm:$0xff] %vm28, 0.0
    %32 = vst.msk [vmem:[#allocation3 + $0x8] sm:$0xff] %vm28, 0.0
  $region29: #{tpu_custom_call.1} parent=0 // pred_fallthru
    _
  %v33 = vld [vmem:[%s0] sm:$0xff]
  %v34 = vld [vmem:[%s0 + $0x8] sm:$0xff]
  %v35 = vld [vmem:[%s0 + $0x10] sm:$0xff]
  %v36 = vld [vmem:[%s0 + $0x18] sm:$0xff]
  %v37 = vld [vmem:[%s0 + $0x20] sm:$0xff]
  %v38 = vld [vmem:[%s0 + $0x28] sm:$0xff]
  %v39 = vld [vmem:[%s0 + $0x30] sm:$0xff]
  %v40 = vld [vmem:[%s0 + $0x38] sm:$0xff]
  %v41 = vld [vmem:[%s0 + $0x40] sm:$0xff]
  %v42 = vld [vmem:[%s0 + $0x48] sm:$0xff]
  %v43 = vld [vmem:[%s0 + $0x50] sm:$0xff]
  %v44 = vld [vmem:[%s0 + $0x58] sm:$0xff]
  %v45 = vld [vmem:[%s0 + $0x60] sm:$0xff]
  %v46 = vld [vmem:[%s0 + $0x68] sm:$0xff]
  %v47 = vld [vmem:[%s0 + $0x70] sm:$0xff]
  %v48 = vld [vmem:[%s0 + $0x78] sm:$0xff]
  %v49 = vld [vmem:[%s0 + $0x80] sm:$0xff]
  %v50 = vld [vmem:[%s0 + $0x88] sm:$0xff]
  %v51 = vld [vmem:[%s0 + $0x90] sm:$0xff]
  %v52 = vld [vmem:[%s0 + $0x98] sm:$0xff]
  %v53 = vld [vmem:[%s0 + $0xa0] sm:$0xff]
  %v54 = vld [vmem:[%s0 + $0xa8] sm:$0xff]
  %v55 = vld [vmem:[%s0 + $0xb0] sm:$0xff]
  %v56 = vld [vmem:[%s0 + $0xb8] sm:$0xff]
  %v57 = vld [vmem:[%s0 + $0xc0] sm:$0xff]
  %v58 = vld [vmem:[%s0 + $0xc8] sm:$0xff]
  %v59 = vld [vmem:[%s0 + $0xd0] sm:$0xff]
  %v60 = vld [vmem:[%s0 + $0xd8] sm:$0xff]
  %v61 = vld [vmem:[%s0 + $0xe0] sm:$0xff]
  %v62 = vld [vmem:[%s0 + $0xe8] sm:$0xff]
  %v63 = vld [vmem:[%s0 + $0xf0] sm:$0xff]
  %v64 = vld [vmem:[%s0 + $0xf8] sm:$0xff]
  %v65 = vlaneseq
  %v66 = vshrl.u32 %v65, 7
  %v67 = vadd.s32 %v66, 8
  %v68 = vadd.s32 %v66, 16
  %v69 = vadd.s32 %v66, 24
  %v70 = vadd.s32 %v66, 32
  %v71 = vadd.s32 %v66, 40
  %v72 = vadd.s32 %v66, 48
  %v73 = vadd.s32 %v66, 56
  %v74 = vadd.s32 %v66, 64
  %v75 = vadd.s32 %v66, 72
  %v76 = vadd.s32 %v66, 80
  %v77 = vadd.s32 %v66, 88
  %v78 = vadd.s32 %v66, 96
  %v79 = vadd.s32 %v66, 104
  %v80 = vadd.s32 %v66, 112
  %v81 = vadd.s32 %v66, 120
  %v82 = vadd.s32 %v66, 128
  %v83 = vadd.s32 %v66, 136
  %v84 = vadd.s32 %v66, 144
  %v85 = vadd.s32 %v66, 152
  %v86 = vadd.s32 %v66, 160
  %v87 = vadd.s32 %v66, 168
  %v88 = vadd.s32 %v66, 176
  %v89 = vadd.s32 %v66, 184
  %v90 = vadd.s32 %v66, 192
  %v91 = vadd.s32 %v66, 200
  %v92 = vadd.s32 %v66, 208
  %v93 = vadd.s32 %v66, 216
  %v94 = vadd.s32 %v66, 224
  %v95 = vadd.s32 %v66, 232
  %v96 = vadd.s32 %v66, 240
  %v97 = vadd.s32 %v66, 248
  %vm98 = vcmp.lt.s32.totalorder %v66, 0
  %v99 = vsub.s32 0, %v66
  %v100 = vsel %vm98, %v99, %v66
  %v101 = vshrl.u32 %v100, 4
  %v102 = vand.u32 %v100, 15
  %v103 = vsub.s32 0, %v102
  %v104 = vsel %vm98, %v103, %v102
  %vm105 = vcmp.lt.s32.totalorder %v67, 0
  %v106 = vsub.s32 0, %v67
  %v107 = vsel %vm105, %v106, %v67
  %v108 = vshrl.u32 %v107, 4
  %v109 = vand.u32 %v107, 15
  %v110 = vsub.s32 0, %v109
  %v111 = vsel %vm105, %v110, %v109
  %vm112 = vcmp.lt.s32.totalorder %v68, 0
  %v113 = vsub.s32 0, %v68
  %v114 = vsel %vm112, %v113, %v68
  %v115 = vshrl.u32 %v114, 4
  %v116 = vand.u32 %v114, 15
  %v117 = vsub.s32 0, %v116
  %v118 = vsel %vm112, %v117, %v116
  %vm119 = vcmp.lt.s32.totalorder %v69, 0
  %v120 = vsub.s32 0, %v69
  %v121 = vsel %vm119, %v120, %v69
  %v122 = vshrl.u32 %v121, 4
  %v123 = vand.u32 %v121, 15
  %v124 = vsub.s32 0, %v123
  %v125 = vsel %vm119, %v124, %v123
  %vm126 = vcmp.lt.s32.totalorder %v70, 0
  %v127 = vsub.s32 0, %v70
  %v128 = vsel %vm126, %v127, %v70
  %v129 = vshrl.u32 %v128, 4
  %v130 = vand.u32 %v128, 15
  %v131 = vsub.s32 0, %v130
  %v132 = vsel %vm126, %v131, %v130
  %vm133 = vcmp.lt.s32.totalorder %v71, 0
  %v134 = vsub.s32 0, %v71
  %v135 = vsel %vm133, %v134, %v71
  %v136 = vshrl.u32 %v135, 4
  %v137 = vand.u32 %v135, 15
  %v138 = vsub.s32 0, %v137
  %v139 = vsel %vm133, %v138, %v137
  %vm140 = vcmp.lt.s32.totalorder %v72, 0
  %v141 = vsub.s32 0, %v72
  %v142 = vsel %vm140, %v141, %v72
  %v143 = vshrl.u32 %v142, 4
  %v144 = vand.u32 %v142, 15
  %v145 = vsub.s32 0, %v144
  %v146 = vsel %vm140, %v145, %v144
  %vm147 = vcmp.lt.s32.totalorder %v73, 0
  %v148 = vsub.s32 0, %v73
  %v149 = vsel %vm147, %v148, %v73
  %v150 = vshrl.u32 %v149, 4
  %v151 = vand.u32 %v149, 15
  %v152 = vsub.s32 0, %v151
  %v153 = vsel %vm147, %v152, %v151
  %vm154 = vcmp.lt.s32.totalorder %v74, 0
  %v155 = vsub.s32 0, %v74
  %v156 = vsel %vm154, %v155, %v74
  %v157 = vshrl.u32 %v156, 4
  %v158 = vand.u32 %v156, 15
  %v159 = vsub.s32 0, %v158
  %v160 = vsel %vm154, %v159, %v158
  %vm161 = vcmp.lt.s32.totalorder %v75, 0
  %v162 = vsub.s32 0, %v75
  %v163 = vsel %vm161, %v162, %v75
  %v164 = vshrl.u32 %v163, 4
  %v165 = vand.u32 %v163, 15
  %v166 = vsub.s32 0, %v165
  %v167 = vsel %vm161, %v166, %v165
  %vm168 = vcmp.lt.s32.totalorder %v76, 0
  %v169 = vsub.s32 0, %v76
  %v170 = vsel %vm168, %v169, %v76
  %v171 = vshrl.u32 %v170, 4
  %v172 = vand.u32 %v170, 15
  %v173 = vsub.s32 0, %v172
  %v174 = vsel %vm168, %v173, %v172
  %vm175 = vcmp.lt.s32.totalorder %v77, 0
  %v176 = vsub.s32 0, %v77
  %v177 = vsel %vm175, %v176, %v77
  %v178 = vshrl.u32 %v177, 4
  %v179 = vand.u32 %v177, 15
  %v180 = vsub.s32 0, %v179
  %v181 = vsel %vm175, %v180, %v179
  %vm182 = vcmp.lt.s32.totalorder %v78, 0
  %v183 = vsub.s32 0, %v78
  %v184 = vsel %vm182, %v183, %v78
  %v185 = vshrl.u32 %v184, 4
  %v186 = vand.u32 %v184, 15
  %v187 = vsub.s32 0, %v186
  %v188 = vsel %vm182, %v187, %v186
  %vm189 = vcmp.lt.s32.totalorder %v79, 0
  %v190 = vsub.s32 0, %v79
  %v191 = vsel %vm189, %v190, %v79
  %v192 = vshrl.u32 %v191, 4
  %v193 = vand.u32 %v191, 15
  %v194 = vsub.s32 0, %v193
  %v195 = vsel %vm189, %v194, %v193
  %vm196 = vcmp.lt.s32.totalorder %v80, 0
  %v197 = vsub.s32 0, %v80
  %v198 = vsel %vm196, %v197, %v80
  %v199 = vshrl.u32 %v198, 4
  %v200 = vand.u32 %v198, 15
  %v201 = vsub.s32 0, %v200
  %v202 = vsel %vm196, %v201, %v200
  %vm203 = vcmp.lt.s32.totalorder %v81, 0
  %v204 = vsub.s32 0, %v81
  %v205 = vsel %vm203, %v204, %v81
  %v206 = vshrl.u32 %v205, 4
  %v207 = vand.u32 %v205, 15
  %v208 = vsub.s32 0, %v207
  %v209 = vsel %vm203, %v208, %v207
  %vm210 = vcmp.lt.s32.totalorder %v82, 0
  %v211 = vsub.s32 0, %v82
  %v212 = vsel %vm210, %v211, %v82
  %v213 = vshrl.u32 %v212, 4
  %v214 = vand.u32 %v212, 15
  %v215 = vsub.s32 0, %v214
  %v216 = vsel %vm210, %v215, %v214
  %vm217 = vcmp.lt.s32.totalorder %v83, 0
  %v218 = vsub.s32 0, %v83
  %v219 = vsel %vm217, %v218, %v83
  %v220 = vshrl.u32 %v219, 4
  %v221 = vand.u32 %v219, 15
  %v222 = vsub.s32 0, %v221
  %v223 = vsel %vm217, %v222, %v221
  %vm224 = vcmp.lt.s32.totalorder %v84, 0
  %v225 = vsub.s32 0, %v84
  %v226 = vsel %vm224, %v225, %v84
  %v227 = vshrl.u32 %v226, 4
  %v228 = vand.u32 %v226, 15
  %v229 = vsub.s32 0, %v228
  %v230 = vsel %vm224, %v229, %v228
  %vm231 = vcmp.lt.s32.totalorder %v85, 0
  %v232 = vsub.s32 0, %v85
  %v233 = vsel %vm231, %v232, %v85
  %v234 = vshrl.u32 %v233, 4
  %v235 = vand.u32 %v233, 15
  %v236 = vsub.s32 0, %v235
  %v237 = vsel %vm231, %v236, %v235
  %vm238 = vcmp.lt.s32.totalorder %v86, 0
  %v239 = vsub.s32 0, %v86
  %v240 = vsel %vm238, %v239, %v86
  %v241 = vshrl.u32 %v240, 4
  %v242 = vand.u32 %v240, 15
  %v243 = vsub.s32 0, %v242
  %v244 = vsel %vm238, %v243, %v242
  %vm245 = vcmp.lt.s32.totalorder %v87, 0
  %v246 = vsub.s32 0, %v87
  %v247 = vsel %vm245, %v246, %v87
  %v248 = vshrl.u32 %v247, 4
  %v249 = vand.u32 %v247, 15
  %v250 = vsub.s32 0, %v249
  %v251 = vsel %vm245, %v250, %v249
  %vm252 = vcmp.lt.s32.totalorder %v88, 0
  %v253 = vsub.s32 0, %v88
  %v254 = vsel %vm252, %v253, %v88
  %v255 = vshrl.u32 %v254, 4
  %v256 = vand.u32 %v254, 15
  %v257 = vsub.s32 0, %v256
  %v258 = vsel %vm252, %v257, %v256
  %vm259 = vcmp.lt.s32.totalorder %v89, 0
  %v260 = vsub.s32 0, %v89
  %v261 = vsel %vm259, %v260, %v89
  %v262 = vshrl.u32 %v261, 4
  %v263 = vand.u32 %v261, 15
  %v264 = vsub.s32 0, %v263
  %v265 = vsel %vm259, %v264, %v263
  %vm266 = vcmp.lt.s32.totalorder %v90, 0
  %v267 = vsub.s32 0, %v90
  %v268 = vsel %vm266, %v267, %v90
  %v269 = vshrl.u32 %v268, 4
  %v270 = vand.u32 %v268, 15
  %v271 = vsub.s32 0, %v270
  %v272 = vsel %vm266, %v271, %v270
  %vm273 = vcmp.lt.s32.totalorder %v91, 0
  %v274 = vsub.s32 0, %v91
  %v275 = vsel %vm273, %v274, %v91
  %v276 = vshrl.u32 %v275, 4
  %v277 = vand.u32 %v275, 15
  %v278 = vsub.s32 0, %v277
  %v279 = vsel %vm273, %v278, %v277
  %vm280 = vcmp.lt.s32.totalorder %v92, 0
  %v281 = vsub.s32 0, %v92
  %v282 = vsel %vm280, %v281, %v92
  %v283 = vshrl.u32 %v282, 4
  %v284 = vand.u32 %v282, 15
  %v285 = vsub.s32 0, %v284
  %v286 = vsel %vm280, %v285, %v284
  %vm287 = vcmp.lt.s32.totalorder %v93, 0
  %v288 = vsub.s32 0, %v93
  %v289 = vsel %vm287, %v288, %v93
  %v290 = vshrl.u32 %v289, 4
  %v291 = vand.u32 %v289, 15
  %v292 = vsub.s32 0, %v291
  %v293 = vsel %vm287, %v292, %v291
  %vm294 = vcmp.lt.s32.totalorder %v94, 0
  %v295 = vsub.s32 0, %v94
  %v296 = vsel %vm294, %v295, %v94
  %v297 = vshrl.u32 %v296, 4
  %v298 = vand.u32 %v296, 15
  %v299 = vsub.s32 0, %v298
  %v300 = vsel %vm294, %v299, %v298
  %vm301 = vcmp.lt.s32.totalorder %v95, 0
  %v302 = vsub.s32 0, %v95
  %v303 = vsel %vm301, %v302, %v95
  %v304 = vshrl.u32 %v303, 4
  %v305 = vand.u32 %v303, 15
  %v306 = vsub.s32 0, %v305
  %v307 = vsel %vm301, %v306, %v305
  %vm308 = vcmp.lt.s32.totalorder %v96, 0
  %v309 = vsub.s32 0, %v96
  %v310 = vsel %vm308, %v309, %v96
  %v311 = vshrl.u32 %v310, 4
  %v312 = vand.u32 %v310, 15
  %v313 = vsub.s32 0, %v312
  %v314 = vsel %vm308, %v313, %v312
  %vm315 = vcmp.lt.s32.totalorder %v97, 0
  %v316 = vsub.s32 0, %v97
  %v317 = vsel %vm315, %v316, %v97
  %v318 = vshrl.u32 %v317, 4
  %v319 = vand.u32 %v317, 15
  %v320 = vsub.s32 0, %v319
  %v321 = vsel %vm315, %v320, %v319
  %vm322 = vcmp.ne.s32.totalorder %v104, 0
  %vm323 = vcmp.ne.s32.totalorder %v111, 0
  %vm324 = vcmp.ne.s32.totalorder %v118, 0
  %vm325 = vcmp.ne.s32.totalorder %v125, 0
  %vm326 = vcmp.ne.s32.totalorder %v132, 0
  %vm327 = vcmp.ne.s32.totalorder %v139, 0
  %vm328 = vcmp.ne.s32.totalorder %v146, 0
  %vm329 = vcmp.ne.s32.totalorder %v153, 0
  %vm330 = vcmp.ne.s32.totalorder %v160, 0
  %vm331 = vcmp.ne.s32.totalorder %v167, 0
  %vm332 = vcmp.ne.s32.totalorder %v174, 0
  %vm333 = vcmp.ne.s32.totalorder %v181, 0
  %vm334 = vcmp.ne.s32.totalorder %v188, 0
  %vm335 = vcmp.ne.s32.totalorder %v195, 0
  %vm336 = vcmp.ne.s32.totalorder %v202, 0
  %vm337 = vcmp.ne.s32.totalorder %v209, 0
  %vm338 = vcmp.ne.s32.totalorder %v216, 0
  %vm339 = vcmp.ne.s32.totalorder %v223, 0
  %vm340 = vcmp.ne.s32.totalorder %v230, 0
  %vm341 = vcmp.ne.s32.totalorder %v237, 0
  %vm342 = vcmp.ne.s32.totalorder %v244, 0
  %vm343 = vcmp.ne.s32.totalorder %v251, 0
  %vm344 = vcmp.ne.s32.totalorder %v258, 0
  %vm345 = vcmp.ne.s32.totalorder %v265, 0
  %vm346 = vcmp.ne.s32.totalorder %v272, 0
  %vm347 = vcmp.ne.s32.totalorder %v279, 0
  %vm348 = vcmp.ne.s32.totalorder %v286, 0
  %vm349 = vcmp.ne.s32.totalorder %v293, 0
  %vm350 = vcmp.ne.s32.totalorder %v300, 0
  %vm351 = vcmp.ne.s32.totalorder %v307, 0
  %vm352 = vcmp.ne.s32.totalorder %v314, 0
  %vm353 = vcmp.ne.s32.totalorder %v321, 0
  %vm354 = vcmp.lt.s32.totalorder %v104, 0
  %vm355 = vcmp.lt.s32.totalorder %v111, 0
  %vm356 = vcmp.lt.s32.totalorder %v118, 0
  %vm357 = vcmp.lt.s32.totalorder %v125, 0
  %vm358 = vcmp.lt.s32.totalorder %v132, 0
  %vm359 = vcmp.lt.s32.totalorder %v139, 0
  %vm360 = vcmp.lt.s32.totalorder %v146, 0
  %vm361 = vcmp.lt.s32.totalorder %v153, 0
  %vm362 = vcmp.lt.s32.totalorder %v160, 0
  %vm363 = vcmp.lt.s32.totalorder %v167, 0
  %vm364 = vcmp.lt.s32.totalorder %v174, 0
  %vm365 = vcmp.lt.s32.totalorder %v181, 0
  %vm366 = vcmp.lt.s32.totalorder %v188, 0
  %vm367 = vcmp.lt.s32.totalorder %v195, 0
  %vm368 = vcmp.lt.s32.totalorder %v202, 0
  %vm369 = vcmp.lt.s32.totalorder %v209, 0
  %vm370 = vcmp.lt.s32.totalorder %v216, 0
  %vm371 = vcmp.lt.s32.totalorder %v223, 0
  %vm372 = vcmp.lt.s32.totalorder %v230, 0
  %vm373 = vcmp.lt.s32.totalorder %v237, 0
  %vm374 = vcmp.lt.s32.totalorder %v244, 0
  %vm375 = vcmp.lt.s32.totalorder %v251, 0
  %vm376 = vcmp.lt.s32.totalorder %v258, 0
  %vm377 = vcmp.lt.s32.totalorder %v265, 0
  %vm378 = vcmp.lt.s32.totalorder %v272, 0
  %vm379 = vcmp.lt.s32.totalorder %v279, 0
  %vm380 = vcmp.lt.s32.totalorder %v286, 0
  %vm381 = vcmp.lt.s32.totalorder %v293, 0
  %vm382 = vcmp.lt.s32.totalorder %v300, 0
  %vm383 = vcmp.lt.s32.totalorder %v307, 0
  %vm384 = vcmp.lt.s32.totalorder %v314, 0
  %vm385 = vcmp.lt.s32.totalorder %v321, 0
  %vm386 = vmand %vm354, %vm322
  %vm387 = vmand %vm355, %vm323
  %vm388 = vmand %vm356, %vm324
  %vm389 = vmand %vm357, %vm325
  %vm390 = vmand %vm358, %vm326
  %vm391 = vmand %vm359, %vm327
  %vm392 = vmand %vm360, %vm328
  %vm393 = vmand %vm361, %vm329
  %vm394 = vmand %vm362, %vm330
  %vm395 = vmand %vm363, %vm331
  %vm396 = vmand %vm364, %vm332
  %vm397 = vmand %vm365, %vm333
  %vm398 = vmand %vm366, %vm334
  %vm399 = vmand %vm367, %vm335
  %vm400 = vmand %vm368, %vm336
  %vm401 = vmand %vm369, %vm337
  %vm402 = vmand %vm370, %vm338
  %vm403 = vmand %vm371, %vm339
  %vm404 = vmand %vm372, %vm340
  %vm405 = vmand %vm373, %vm341
  %vm406 = vmand %vm374, %vm342
  %vm407 = vmand %vm375, %vm343
  %vm408 = vmand %vm376, %vm344
  %vm409 = vmand %vm377, %vm345
  %vm410 = vmand %vm378, %vm346
  %vm411 = vmand %vm379, %vm347
  %vm412 = vmand %vm380, %vm348
  %vm413 = vmand %vm381, %vm349
  %vm414 = vmand %vm382, %vm350
  %vm415 = vmand %vm383, %vm351
  %vm416 = vmand %vm384, %vm352
  %vm417 = vmand %vm385, %vm353
  %v418 = vadd.s32 %v104, 16
  %v419 = vadd.s32 %v111, 16
  %v420 = vadd.s32 %v118, 16
  %v421 = vadd.s32 %v125, 16
  %v422 = vadd.s32 %v132, 16
  %v423 = vadd.s32 %v139, 16
  %v424 = vadd.s32 %v146, 16
  %v425 = vadd.s32 %v153, 16
  %v426 = vadd.s32 %v160, 16
  %v427 = vadd.s32 %v167, 16
  %v428 = vadd.s32 %v174, 16
  %v429 = vadd.s32 %v181, 16
  %v430 = vadd.s32 %v188, 16
  %v431 = vadd.s32 %v195, 16
  %v432 = vadd.s32 %v202, 16
  %v433 = vadd.s32 %v209, 16
  %v434 = vadd.s32 %v216, 16
  %v435 = vadd.s32 %v223, 16
  %v436 = vadd.s32 %v230, 16
  %v437 = vadd.s32 %v237, 16
  %v438 = vadd.s32 %v244, 16
  %v439 = vadd.s32 %v251, 16
  %v440 = vadd.s32 %v258, 16
  %v441 = vadd.s32 %v265, 16
  %v442 = vadd.s32 %v272, 16
  %v443 = vadd.s32 %v279, 16
  %v444 = vadd.s32 %v286, 16
  %v445 = vadd.s32 %v293, 16
  %v446 = vadd.s32 %v300, 16
  %v447 = vadd.s32 %v307, 16
  %v448 = vadd.s32 %v314, 16
  %v449 = vadd.s32 %v321, 16
  %v450 = vsel %vm386, %v418, %v104
  %v451 = vsel %vm387, %v419, %v111
  %v452 = vsel %vm388, %v420, %v118
  %v453 = vsel %vm389, %v421, %v125
  %v454 = vsel %vm390, %v422, %v132
  %v455 = vsel %vm391, %v423, %v139
  %v456 = vsel %vm392, %v424, %v146
  %v457 = vsel %vm393, %v425, %v153
  %v458 = vsel %vm394, %v426, %v160
  %v459 = vsel %vm395, %v427, %v167
  %v460 = vsel %vm396, %v428, %v174
  %v461 = vsel %vm397, %v429, %v181
  %v462 = vsel %vm398, %v430, %v188
  %v463 = vsel %vm399, %v431, %v195
  %v464 = vsel %vm400, %v432, %v202
  %v465 = vsel %vm401, %v433, %v209
  %v466 = vsel %vm402, %v434, %v216
  %v467 = vsel %vm403, %v435, %v223
  %v468 = vsel %vm404, %v436, %v230
  %v469 = vsel %vm405, %v437, %v237
  %v470 = vsel %vm406, %v438, %v244
  %v471 = vsel %vm407, %v439, %v251
  %v472 = vsel %vm408, %v440, %v258
  %v473 = vsel %vm409, %v441, %v265
  %v474 = vsel %vm410, %v442, %v272
  %v475 = vsel %vm411, %v443, %v279
  %v476 = vsel %vm412, %v444, %v286
  %v477 = vsel %vm413, %v445, %v293
  %v478 = vsel %vm414, %v446, %v300
  %v479 = vsel %vm415, %v447, %v307
  %v480 = vsel %vm416, %v448, %v314
  %v481 = vsel %vm417, %v449, %v321
  %vm482 = vcmp.eq.s32.totalorder %v450, 0
  %vm483 = vcmp.eq.s32.totalorder %v451, 0
  %vm484 = vcmp.eq.s32.totalorder %v452, 0
  %vm485 = vcmp.eq.s32.totalorder %v453, 0
  %vm486 = vcmp.eq.s32.totalorder %v454, 0
  %vm487 = vcmp.eq.s32.totalorder %v455, 0
  %vm488 = vcmp.eq.s32.totalorder %v456, 0
  %vm489 = vcmp.eq.s32.totalorder %v457, 0
  %vm490 = vcmp.eq.s32.totalorder %v458, 0
  %vm491 = vcmp.eq.s32.totalorder %v459, 0
  %vm492 = vcmp.eq.s32.totalorder %v460, 0
  %vm493 = vcmp.eq.s32.totalorder %v461, 0
  %vm494 = vcmp.eq.s32.totalorder %v462, 0
  %vm495 = vcmp.eq.s32.totalorder %v463, 0
  %vm496 = vcmp.eq.s32.totalorder %v464, 0
  %vm497 = vcmp.eq.s32.totalorder %v465, 0
  %vm498 = vcmp.eq.s32.totalorder %v466, 0
  %vm499 = vcmp.eq.s32.totalorder %v467, 0
  %vm500 = vcmp.eq.s32.totalorder %v468, 0
  %vm501 = vcmp.eq.s32.totalorder %v469, 0
  %vm502 = vcmp.eq.s32.totalorder %v470, 0
  %vm503 = vcmp.eq.s32.totalorder %v471, 0
  %vm504 = vcmp.eq.s32.totalorder %v472, 0
  %vm505 = vcmp.eq.s32.totalorder %v473, 0
  %vm506 = vcmp.eq.s32.totalorder %v474, 0
  %vm507 = vcmp.eq.s32.totalorder %v475, 0
  %vm508 = vcmp.eq.s32.totalorder %v476, 0
  %vm509 = vcmp.eq.s32.totalorder %v477, 0
  %vm510 = vcmp.eq.s32.totalorder %v478, 0
  %vm511 = vcmp.eq.s32.totalorder %v479, 0
  %vm512 = vcmp.eq.s32.totalorder %v480, 0
  %vm513 = vcmp.eq.s32.totalorder %v481, 0
  %v514 = vrot.slane %v33, 7
  %v515 = vrot.slane %v34, 7
  %v516 = vrot.slane %v35, 7
  %v517 = vrot.slane %v36, 7
  %v518 = vrot.slane %v37, 7
  %v519 = vrot.slane %v38, 7
  %v520 = vrot.slane %v39, 7
  %v521 = vrot.slane %v40, 7
  %v522 = vrot.slane %v41, 7
  %v523 = vrot.slane %v42, 7
  %v524 = vrot.slane %v43, 7
  %v525 = vrot.slane %v44, 7
  %v526 = vrot.slane %v45, 7
  %v527 = vrot.slane %v46, 7
  %v528 = vrot.slane %v47, 7
  %v529 = vrot.slane %v48, 7
  %v530 = vrot.slane %v49, 7
  %v531 = vrot.slane %v50, 7
  %v532 = vrot.slane %v51, 7
  %v533 = vrot.slane %v52, 7
  %v534 = vrot.slane %v53, 7
  %v535 = vrot.slane %v54, 7
  %v536 = vrot.slane %v55, 7
  %v537 = vrot.slane %v56, 7
  %v538 = vrot.slane %v57, 7
  %v539 = vrot.slane %v58, 7
  %v540 = vrot.slane %v59, 7
  %v541 = vrot.slane %v60, 7
  %v542 = vrot.slane %v61, 7
  %v543 = vrot.slane %v62, 7
  %v544 = vrot.slane %v63, 7
  %v545 = vrot.slane %v64, 7
  %vm546 = vcmp.lt.s32.totalorder %v66, 1
  %v547 = vsel %vm546, %v544, %v545
  %v548 = vsel %vm546, %v543, %v544
  %v549 = vsel %vm546, %v542, %v543
  %v550 = vsel %vm546, %v541, %v542
  %v551 = vsel %vm546, %v540, %v541
  %v552 = vsel %vm546, %v539, %v540
  %v553 = vsel %vm546, %v538, %v539
  %v554 = vsel %vm546, %v537, %v538
  %v555 = vsel %vm546, %v536, %v537
  %v556 = vsel %vm546, %v535, %v536
  %v557 = vsel %vm546, %v534, %v535
  %v558 = vsel %vm546, %v533, %v534
  %v559 = vsel %vm546, %v532, %v533
  %v560 = vsel %vm546, %v531, %v532
  %v561 = vsel %vm546, %v530, %v531
  %v562 = vsel %vm546, %v529, %v530
  %v563 = vsel %vm546, %v528, %v529
  %v564 = vsel %vm546, %v527, %v528
  %v565 = vsel %vm546, %v526, %v527
  %v566 = vsel %vm546, %v525, %v526
  %v567 = vsel %vm546, %v524, %v525
  %v568 = vsel %vm546, %v523, %v524
  %v569 = vsel %vm546, %v522, %v523
  %v570 = vsel %vm546, %v521, %v522
  %v571 = vsel %vm546, %v520, %v521
  %v572 = vsel %vm546, %v519, %v520
  %v573 = vsel %vm546, %v518, %v519
  %v574 = vsel %vm546, %v517, %v518
  %v575 = vsel %vm546, %v516, %v517
  %v576 = vsel %vm546, %v515, %v516
  %v577 = vsel %vm546, %v514, %v515
  %v578 = vsel %vm546, %v545, %v514
  %v579 = vsel %vm482, 0.0, %v578
  %v580 = vsel %vm483, 0.0, %v577
  %v581 = vsel %vm484, 0.0, %v576
  %v582 = vsel %vm485, 0.0, %v575
  %v583 = vsel %vm486, 0.0, %v574
  %v584 = vsel %vm487, 0.0, %v573
  %v585 = vsel %vm488, 0.0, %v572
  %v586 = vsel %vm489, 0.0, %v571
  %v587 = vsel %vm490, 0.0, %v570
  %v588 = vsel %vm491, 0.0, %v569
  %v589 = vsel %vm492, 0.0, %v568
  %v590 = vsel %vm493, 0.0, %v567
  %v591 = vsel %vm494, 0.0, %v566
  %v592 = vsel %vm495, 0.0, %v565
  %v593 = vsel %vm496, 0.0, %v564
  %v594 = vsel %vm497, 0.0, %v563
  %v595 = vsel %vm498, 0.0, %v562
  %v596 = vsel %vm499, 0.0, %v561
  %v597 = vsel %vm500, 0.0, %v560
  %v598 = vsel %vm501, 0.0, %v559
  %v599 = vsel %vm502, 0.0, %v558
  %v600 = vsel %vm503, 0.0, %v557
  %v601 = vsel %vm504, 0.0, %v556
  %v602 = vsel %vm505, 0.0, %v555
  %v603 = vsel %vm506, 0.0, %v554
  %v604 = vsel %vm507, 0.0, %v553
  %v605 = vsel %vm508, 0.0, %v552
  %v606 = vsel %vm509, 0.0, %v551
  %v607 = vsel %vm510, 0.0, %v550
  %v608 = vsel %vm511, 0.0, %v549
  %v609 = vsel %vm512, 0.0, %v548
  %v610 = vsel %vm513, 0.0, %v547
  %vm611 = vcmp.eq.s32.totalorder %v450, 15
  %vm612 = vcmp.eq.s32.totalorder %v451, 15
  %vm613 = vcmp.eq.s32.totalorder %v452, 15
  %vm614 = vcmp.eq.s32.totalorder %v453, 15
  %vm615 = vcmp.eq.s32.totalorder %v454, 15
  %vm616 = vcmp.eq.s32.totalorder %v455, 15
  %vm617 = vcmp.eq.s32.totalorder %v456, 15
  %vm618 = vcmp.eq.s32.totalorder %v457, 15
  %vm619 = vcmp.eq.s32.totalorder %v458, 15
  %vm620 = vcmp.eq.s32.totalorder %v459, 15
  %vm621 = vcmp.eq.s32.totalorder %v460, 15
  %vm622 = vcmp.eq.s32.totalorder %v461, 15
  %vm623 = vcmp.eq.s32.totalorder %v462, 15
  %vm624 = vcmp.eq.s32.totalorder %v463, 15
  %vm625 = vcmp.eq.s32.totalorder %v464, 15
  %vm626 = vcmp.eq.s32.totalorder %v465, 15
  %vm627 = vcmp.eq.s32.totalorder %v466, 15
  %vm628 = vcmp.eq.s32.totalorder %v467, 15
  %vm629 = vcmp.eq.s32.totalorder %v468, 15
  %vm630 = vcmp.eq.s32.totalorder %v469, 15
  %vm631 = vcmp.eq.s32.totalorder %v470, 15
  %vm632 = vcmp.eq.s32.totalorder %v471, 15
  %vm633 = vcmp.eq.s32.totalorder %v472, 15
  %vm634 = vcmp.eq.s32.totalorder %v473, 15
  %vm635 = vcmp.eq.s32.totalorder %v474, 15
  %vm636 = vcmp.eq.s32.totalorder %v475, 15
  %vm637 = vcmp.eq.s32.totalorder %v476, 15
  %vm638 = vcmp.eq.s32.totalorder %v477, 15
  %vm639 = vcmp.eq.s32.totalorder %v478, 15
  %vm640 = vcmp.eq.s32.totalorder %v479, 15
  %vm641 = vcmp.eq.s32.totalorder %v480, 15
  %vm642 = vcmp.eq.s32.totalorder %v481, 15
  %v643 = vrot.slane %v33, 1
  %v644 = vrot.slane %v34, 1
  %v645 = vrot.slane %v35, 1
  %v646 = vrot.slane %v36, 1
  %v647 = vrot.slane %v37, 1
  %v648 = vrot.slane %v38, 1
  %v649 = vrot.slane %v39, 1
  %v650 = vrot.slane %v40, 1
  %v651 = vrot.slane %v41, 1
  %v652 = vrot.slane %v42, 1
  %v653 = vrot.slane %v43, 1
  %v654 = vrot.slane %v44, 1
  %v655 = vrot.slane %v45, 1
  %v656 = vrot.slane %v46, 1
  %v657 = vrot.slane %v47, 1
  %v658 = vrot.slane %v48, 1
  %v659 = vrot.slane %v49, 1
  %v660 = vrot.slane %v50, 1
  %v661 = vrot.slane %v51, 1
  %v662 = vrot.slane %v52, 1
  %v663 = vrot.slane %v53, 1
  %v664 = vrot.slane %v54, 1
  %v665 = vrot.slane %v55, 1
  %v666 = vrot.slane %v56, 1
  %v667 = vrot.slane %v57, 1
  %v668 = vrot.slane %v58, 1
  %v669 = vrot.slane %v59, 1
  %v670 = vrot.slane %v60, 1
  %v671 = vrot.slane %v61, 1
  %v672 = vrot.slane %v62, 1
  %v673 = vrot.slane %v63, 1
  %v674 = vrot.slane %v64, 1
  %vm675 = vcmp.lt.s32.totalorder %v66, 7
  %v676 = vsel %vm675, %v673, %v674
  %v677 = vsel %vm675, %v672, %v673
  %v678 = vsel %vm675, %v671, %v672
  %v679 = vsel %vm675, %v670, %v671
  %v680 = vsel %vm675, %v669, %v670
  %v681 = vsel %vm675, %v668, %v669
  %v682 = vsel %vm675, %v667, %v668
  %v683 = vsel %vm675, %v666, %v667
  %v684 = vsel %vm675, %v665, %v666
  %v685 = vsel %vm675, %v664, %v665
  %v686 = vsel %vm675, %v663, %v664
  %v687 = vsel %vm675, %v662, %v663
  %v688 = vsel %vm675, %v661, %v662
  %v689 = vsel %vm675, %v660, %v661
  %v690 = vsel %vm675, %v659, %v660
  %v691 = vsel %vm675, %v658, %v659
  %v692 = vsel %vm675, %v657, %v658
  %v693 = vsel %vm675, %v656, %v657
  %v694 = vsel %vm675, %v655, %v656
  %v695 = vsel %vm675, %v654, %v655
  %v696 = vsel %vm675, %v653, %v654
  %v697 = vsel %vm675, %v652, %v653
  %v698 = vsel %vm675, %v651, %v652
  %v699 = vsel %vm675, %v650, %v651
  %v700 = vsel %vm675, %v649, %v650
  %v701 = vsel %vm675, %v648, %v649
  %v702 = vsel %vm675, %v647, %v648
  %v703 = vsel %vm675, %v646, %v647
  %v704 = vsel %vm675, %v645, %v646
  %v705 = vsel %vm675, %v644, %v645
  %v706 = vsel %vm675, %v643, %v644
  %v707 = vsel %vm675, %v674, %v643
  %v708 = vsel %vm611, 0.0, %v706
  %v709 = vsel %vm612, 0.0, %v705
  %v710 = vsel %vm613, 0.0, %v704
  %v711 = vsel %vm614, 0.0, %v703
  %v712 = vsel %vm615, 0.0, %v702
  %v713 = vsel %vm616, 0.0, %v701
  %v714 = vsel %vm617, 0.0, %v700
  %v715 = vsel %vm618, 0.0, %v699
  %v716 = vsel %vm619, 0.0, %v698
  %v717 = vsel %vm620, 0.0, %v697
  %v718 = vsel %vm621, 0.0, %v696
  %v719 = vsel %vm622, 0.0, %v695
  %v720 = vsel %vm623, 0.0, %v694
  %v721 = vsel %vm624, 0.0, %v693
  %v722 = vsel %vm625, 0.0, %v692
  %v723 = vsel %vm626, 0.0, %v691
  %v724 = vsel %vm627, 0.0, %v690
  %v725 = vsel %vm628, 0.0, %v689
  %v726 = vsel %vm629, 0.0, %v688
  %v727 = vsel %vm630, 0.0, %v687
  %v728 = vsel %vm631, 0.0, %v686
  %v729 = vsel %vm632, 0.0, %v685
  %v730 = vsel %vm633, 0.0, %v684
  %v731 = vsel %vm634, 0.0, %v683
  %v732 = vsel %vm635, 0.0, %v682
  %v733 = vsel %vm636, 0.0, %v681
  %v734 = vsel %vm637, 0.0, %v680
  %v735 = vsel %vm638, 0.0, %v679
  %v736 = vsel %vm639, 0.0, %v678
  %v737 = vsel %vm640, 0.0, %v677
  %v738 = vsel %vm641, 0.0, %v676
  %v739 = vsel %vm642, 0.0, %v707
  %772 = vrot.lane.b32.xlu0 %v33, 4
  %v773 = vpop.permute.xlu0 %772
  %774 = vrot.lane.b32.xlu0 %v34, 4
  %v775 = vpop.permute.xlu0 %774
  %776 = vrot.lane.b32.xlu0 %v35, 4
  %v777 = vpop.permute.xlu0 %776
  %778 = vrot.lane.b32.xlu0 %v36, 4
  %v779 = vpop.permute.xlu0 %778
  %780 = vrot.lane.b32.xlu0 %v37, 4
  %v781 = vpop.permute.xlu0 %780
  %782 = vrot.lane.b32.xlu0 %v38, 4
  %v783 = vpop.permute.xlu0 %782
  %784 = vrot.lane.b32.xlu0 %v39, 4
  %v785 = vpop.permute.xlu0 %784
  %786 = vrot.lane.b32.xlu0 %v40, 4
  %v787 = vpop.permute.xlu0 %786
  %788 = vrot.lane.b32.xlu0 %v41, 4
  %v789 = vpop.permute.xlu0 %788
  %790 = vrot.lane.b32.xlu0 %v42, 4
  %v791 = vpop.permute.xlu0 %790
  %792 = vrot.lane.b32.xlu0 %v43, 4
  %v793 = vpop.permute.xlu0 %792
  %794 = vrot.lane.b32.xlu0 %v44, 4
  %v795 = vpop.permute.xlu0 %794
  %796 = vrot.lane.b32.xlu0 %v45, 4
  %v797 = vpop.permute.xlu0 %796
  %798 = vrot.lane.b32.xlu0 %v46, 4
  %v799 = vpop.permute.xlu0 %798
  %800 = vrot.lane.b32.xlu0 %v47, 4
  %v801 = vpop.permute.xlu0 %800
  %802 = vrot.lane.b32.xlu0 %v48, 4
  %v803 = vpop.permute.xlu0 %802
  %804 = vrot.lane.b32.xlu0 %v49, 4
  %v805 = vpop.permute.xlu0 %804
  %806 = vrot.lane.b32.xlu0 %v50, 4
  %v807 = vpop.permute.xlu0 %806
  %808 = vrot.lane.b32.xlu0 %v51, 4
  %v809 = vpop.permute.xlu0 %808
  %810 = vrot.lane.b32.xlu0 %v52, 4
  %v811 = vpop.permute.xlu0 %810
  %812 = vrot.lane.b32.xlu0 %v53, 4
  %v813 = vpop.permute.xlu0 %812
  %814 = vrot.lane.b32.xlu0 %v54, 4
  %v815 = vpop.permute.xlu0 %814
  %816 = vrot.lane.b32.xlu0 %v55, 4
  %v817 = vpop.permute.xlu0 %816
  %818 = vrot.lane.b32.xlu0 %v56, 4
  %v819 = vpop.permute.xlu0 %818
  %820 = vrot.lane.b32.xlu0 %v57, 4
  %v821 = vpop.permute.xlu0 %820
  %822 = vrot.lane.b32.xlu0 %v58, 4
  %v823 = vpop.permute.xlu0 %822
  %824 = vrot.lane.b32.xlu0 %v59, 4
  %v825 = vpop.permute.xlu0 %824
  %826 = vrot.lane.b32.xlu0 %v60, 4
  %v827 = vpop.permute.xlu0 %826
  %828 = vrot.lane.b32.xlu0 %v61, 4
  %v829 = vpop.permute.xlu0 %828
  %830 = vrot.lane.b32.xlu0 %v62, 4
  %v831 = vpop.permute.xlu0 %830
  %832 = vrot.lane.b32.xlu0 %v63, 4
  %v833 = vpop.permute.xlu0 %832
  %834 = vrot.lane.b32.xlu0 %v64, 4
  %v835 = vpop.permute.xlu0 %834
  %900 = vrot.lane.b32.xlu0 %v708, 8
  %v901 = vpop.permute.xlu0 %900
  %902 = vrot.lane.b32.xlu0 %v709, 8
  %v903 = vpop.permute.xlu0 %902
  %904 = vrot.lane.b32.xlu0 %v710, 8
  %v905 = vpop.permute.xlu0 %904
  %906 = vrot.lane.b32.xlu0 %v711, 8
  %v907 = vpop.permute.xlu0 %906
  %908 = vrot.lane.b32.xlu0 %v712, 8
  %v909 = vpop.permute.xlu0 %908
  %910 = vrot.lane.b32.xlu0 %v713, 8
  %v911 = vpop.permute.xlu0 %910
  %912 = vrot.lane.b32.xlu0 %v714, 8
  %v913 = vpop.permute.xlu0 %912
  %914 = vrot.lane.b32.xlu0 %v715, 8
  %v915 = vpop.permute.xlu0 %914
  %916 = vrot.lane.b32.xlu0 %v716, 8
  %v917 = vpop.permute.xlu0 %916
  %918 = vrot.lane.b32.xlu0 %v717, 8
  %v919 = vpop.permute.xlu0 %918
  %920 = vrot.lane.b32.xlu0 %v718, 8
  %v921 = vpop.permute.xlu0 %920
  %922 = vrot.lane.b32.xlu0 %v719, 8
  %v923 = vpop.permute.xlu0 %922
  %924 = vrot.lane.b32.xlu0 %v720, 8
  %v925 = vpop.permute.xlu0 %924
  %926 = vrot.lane.b32.xlu0 %v721, 8
  %v927 = vpop.permute.xlu0 %926
  %928 = vrot.lane.b32.xlu0 %v722, 8
  %v929 = vpop.permute.xlu0 %928
  %930 = vrot.lane.b32.xlu0 %v723, 8
  %v931 = vpop.permute.xlu0 %930
  %932 = vrot.lane.b32.xlu0 %v724, 8
  %v933 = vpop.permute.xlu0 %932
  %934 = vrot.lane.b32.xlu0 %v725, 8
  %v935 = vpop.permute.xlu0 %934
  %936 = vrot.lane.b32.xlu0 %v726, 8
  %v937 = vpop.permute.xlu0 %936
  %938 = vrot.lane.b32.xlu0 %v727, 8
  %v939 = vpop.permute.xlu0 %938
  %940 = vrot.lane.b32.xlu0 %v728, 8
  %v941 = vpop.permute.xlu0 %940
  %942 = vrot.lane.b32.xlu0 %v729, 8
  %v943 = vpop.permute.xlu0 %942
  %944 = vrot.lane.b32.xlu0 %v730, 8
  %v945 = vpop.permute.xlu0 %944
  %946 = vrot.lane.b32.xlu0 %v731, 8
  %v947 = vpop.permute.xlu0 %946
  %948 = vrot.lane.b32.xlu0 %v732, 8
  %v949 = vpop.permute.xlu0 %948
  %950 = vrot.lane.b32.xlu0 %v733, 8
  %v951 = vpop.permute.xlu0 %950
  %952 = vrot.lane.b32.xlu0 %v734, 8
  %v953 = vpop.permute.xlu0 %952
  %954 = vrot.lane.b32.xlu0 %v735, 8
  %v955 = vpop.permute.xlu0 %954
  %956 = vrot.lane.b32.xlu0 %v736, 8
  %v957 = vpop.permute.xlu0 %956
  %958 = vrot.lane.b32.xlu0 %v737, 8
  %v959 = vpop.permute.xlu0 %958
  %960 = vrot.lane.b32.xlu0 %v738, 8
  %v961 = vpop.permute.xlu0 %960
  %962 = vrot.lane.b32.xlu0 %v739, 8
  %v963 = vpop.permute.xlu0 %962
  %vm996 = vcmask 31744
  %v997 = vsel %vm996, %v579, %v773
  %v998 = vsel %vm996, %v580, %v775
  %v999 = vsel %vm996, %v581, %v777
  %v1000 = vsel %vm996, %v582, %v779
  %v1001 = vsel %vm996, %v583, %v781
  %v1002 = vsel %vm996, %v584, %v783
  %v1003 = vsel %vm996, %v585, %v785
  %v1004 = vsel %vm996, %v586, %v787
  %v1005 = vsel %vm996, %v587, %v789
  %v1006 = vsel %vm996, %v588, %v791
  %v1007 = vsel %vm996, %v589, %v793
  %v1008 = vsel %vm996, %v590, %v795
  %v1009 = vsel %vm996, %v591, %v797
  %v1010 = vsel %vm996, %v592, %v799
  %v1011 = vsel %vm996, %v593, %v801
  %v1012 = vsel %vm996, %v594, %v803
  %v1013 = vsel %vm996, %v595, %v805
  %v1014 = vsel %vm996, %v596, %v807
  %v1015 = vsel %vm996, %v597, %v809
  %v1016 = vsel %vm996, %v598, %v811
  %v1017 = vsel %vm996, %v599, %v813
  %v1018 = vsel %vm996, %v600, %v815
  %v1019 = vsel %vm996, %v601, %v817
  %v1020 = vsel %vm996, %v602, %v819
  %v1021 = vsel %vm996, %v603, %v821
  %v1022 = vsel %vm996, %v604, %v823
  %v1023 = vsel %vm996, %v605, %v825
  %v1024 = vsel %vm996, %v606, %v827
  %v1025 = vsel %vm996, %v607, %v829
  %v1026 = vsel %vm996, %v608, %v831
  %v1027 = vsel %vm996, %v609, %v833
  %v1028 = vsel %vm996, %v610, %v835
  %vm1029 = vcmask 64512
  %v1030 = vsel %vm1029, %v997, %v901
  %v1031 = vsel %vm1029, %v998, %v903
  %v1032 = vsel %vm1029, %v999, %v905
  %v1033 = vsel %vm1029, %v1000, %v907
  %v1034 = vsel %vm1029, %v1001, %v909
  %v1035 = vsel %vm1029, %v1002, %v911
  %v1036 = vsel %vm1029, %v1003, %v913
  %v1037 = vsel %vm1029, %v1004, %v915
  %v1038 = vsel %vm1029, %v1005, %v917
  %v1039 = vsel %vm1029, %v1006, %v919
  %v1040 = vsel %vm1029, %v1007, %v921
  %v1041 = vsel %vm1029, %v1008, %v923
  %v1042 = vsel %vm1029, %v1009, %v925
  %v1043 = vsel %vm1029, %v1010, %v927
  %v1044 = vsel %vm1029, %v1011, %v929
  %v1045 = vsel %vm1029, %v1012, %v931
  %v1046 = vsel %vm1029, %v1013, %v933
  %v1047 = vsel %vm1029, %v1014, %v935
  %v1048 = vsel %vm1029, %v1015, %v937
  %v1049 = vsel %vm1029, %v1016, %v939
  %v1050 = vsel %vm1029, %v1017, %v941
  %v1051 = vsel %vm1029, %v1018, %v943
  %v1052 = vsel %vm1029, %v1019, %v945
  %v1053 = vsel %vm1029, %v1020, %v947
  %v1054 = vsel %vm1029, %v1021, %v949
  %v1055 = vsel %vm1029, %v1022, %v951
  %v1056 = vsel %vm1029, %v1023, %v953
  %v1057 = vsel %vm1029, %v1024, %v955
  %v1058 = vsel %vm1029, %v1025, %v957
  %v1059 = vsel %vm1029, %v1026, %v959
  %v1060 = vsel %vm1029, %v1027, %v961
  %v1061 = vsel %vm1029, %v1028, %v963
  %v1062 = vpack.c.bf16 %v1031, %v1030
  %v1063 = vpack.c.bf16 %v1033, %v1032
  %v1064 = vpack.c.bf16 %v1035, %v1034
  %v1065 = vpack.c.bf16 %v1037, %v1036
  %v1066 = vpack.c.bf16 %v1039, %v1038
  %v1067 = vpack.c.bf16 %v1041, %v1040
  %v1068 = vpack.c.bf16 %v1043, %v1042
  %v1069 = vpack.c.bf16 %v1045, %v1044
  %v1070 = vpack.c.bf16 %v1047, %v1046
  %v1071 = vpack.c.bf16 %v1049, %v1048
  %v1072 = vpack.c.bf16 %v1051, %v1050
  %v1073 = vpack.c.bf16 %v1053, %v1052
  %v1074 = vpack.c.bf16 %v1055, %v1054
  %v1075 = vpack.c.bf16 %v1057, %v1056
  %v1076 = vpack.c.bf16 %v1059, %v1058
  %v1077 = vpack.c.bf16 %v1061, %v1060
  %v1078 = vld [vmem:[%s1] sm:$0xf]
  %v1079 = vld [vmem:[%s1 + $0x4] sm:$0x3]
  %v1080 = vld [vmem:[%s2] sm:$0x1]
  %v1082 = vlaneseq
  %v1083 = vshrl.u32 %v1082, 7
  %v1084 = vsub.s32 0, %v1083
  %v1085 = vrot.slane %v1080, %v1084
  %v1089 = vunpack.c.l.b16 %v1078
  %v1090 = vunpack.c.l.b16 %v1079
  %v1091 = vpack.c.b16 %v1090, %v1089
  %vm1092 = vcmask 97280
  %v1094 = vsel %vm1092, %v1062, 0
  %v1097 = vsel %vm1092, %v1063, 0
  %v1100 = vsel %vm1092, %v1064, 0
  %v1103 = vsel %vm1092, %v1065, 0
  %v1106 = vsel %vm1092, %v1066, 0
  %v1109 = vsel %vm1092, %v1067, 0
  %v1112 = vsel %vm1092, %v1068, 0
  %v1115 = vsel %vm1092, %v1069, 0
  %v1118 = vsel %vm1092, %v1070, 0
  %v1121 = vsel %vm1092, %v1071, 0
  %v1124 = vsel %vm1092, %v1072, 0
  %v1127 = vsel %vm1092, %v1073, 0
  %v1130 = vsel %vm1092, %v1074, 0
  %v1133 = vsel %vm1092, %v1075, 0
  %v1136 = vsel %vm1092, %v1076, 0
  %v1139 = vsel %vm1092, %v1077, 0
  %vm1141 = vcmask 1045504
  %v1143 = vsel %vm1141, %v1091, 0
  %1145 = vmatprep.subr.bf16.mxu0 0
  %1146 = vmatpush1.bf16.msra.mxu0 0
  %1147 = vmatprep.subr.bf16.mxu0 0
  %1148 = vmatpush1.bf16.msra.mxu0 0
  %1149 = vmatprep.subr.bf16.mxu0 0
  %1150 = vmatpush1.bf16.msra.mxu0 0
  %1151 = vmatprep.subr.bf16.mxu0 0
  %1152 = vmatpush1.bf16.msra.mxu0 0
  %1153 = vmatprep.subr.bf16.mxu0 0
  %1154 = vmatpush1.bf16.msra.mxu0 0
  %1155 = vmatprep.subr.bf16.mxu0 0
  %1156 = vmatpush1.bf16.msra.mxu0 0
  %1157 = vmatprep.subr.bf16.mxu0 0
  %1158 = vmatpush1.bf16.msra.mxu0 0
  %1159 = vmatprep.subr.bf16.mxu0 0
  %1160 = vmatpush1.bf16.msra.mxu0 %v1143
  %1161 = vmatprep.subr.bf16.mxu0 0
  %1162 = vmatpush2.bf16.msra.mxu0 0
  %1163 = vmatprep.subr.bf16.mxu0 0
  %1164 = vmatpush2.bf16.msra.mxu0 0
  %1165 = vmatprep.subr.bf16.mxu0 0
  %1166 = vmatpush2.bf16.msra.mxu0 0
  %1167 = vmatprep.subr.bf16.mxu0 0
  %1168 = vmatpush2.bf16.msra.mxu0 0
  %1169 = vmatprep.subr.bf16.mxu0 0
  %1170 = vmatpush2.bf16.msra.mxu0 0
  %1171 = vmatprep.subr.bf16.mxu0 0
  %1172 = vmatpush2.bf16.msra.mxu0 0
  %1173 = vmatprep.subr.bf16.mxu0 0
  %1174 = vmatpush2.bf16.msra.mxu0 0
  %1175 = vmatprep.subr.bf16.mxu0 0
  %1176 = vmatpush2.bf16.msra.mxu0 0
  %1177 = vmatprep.mubr.bf16.mxu0 0
  %1178 = vmatmul.mubr.bf16.gmra.mxu0 %v1094
  %v1179 = vpop.f32.mrf.mxu0
  %v1180 = vadd.f32 %v1085, %v1179
  %v1181 = vpop.f32.mrf.mxu0
  %v1182 = vpop.f32.mrf.mxu0
  %v1183 = vadd.f32 %v1085, %v1182
  %v1184 = vpop.f32.mrf.mxu0
  %1185 = vmatprep.mubr.bf16.mxu0 0
  %1186 = vmatmul.mubr.bf16.gmra.mxu0 %v1097
  %v1187 = vpop.f32.mrf.mxu0
  %v1188 = vadd.f32 %v1085, %v1187
  %v1189 = vpop.f32.mrf.mxu0
  %v1190 = vpop.f32.mrf.mxu0
  %v1191 = vadd.f32 %v1085, %v1190
  %v1192 = vpop.f32.mrf.mxu0
  %1193 = vmatprep.mubr.bf16.mxu0 0
  %1194 = vmatmul.mubr.bf16.gmra.mxu0 %v1100
  %v1195 = vpop.f32.mrf.mxu0
  %v1196 = vadd.f32 %v1085, %v1195
  %v1197 = vpop.f32.mrf.mxu0
  %v1198 = vpop.f32.mrf.mxu0
  %v1199 = vadd.f32 %v1085, %v1198
  %v1200 = vpop.f32.mrf.mxu0
  %1201 = vmatprep.mubr.bf16.mxu0 0
  %1202 = vmatmul.mubr.bf16.gmra.mxu0 %v1103
  %v1203 = vpop.f32.mrf.mxu0
  %v1204 = vadd.f32 %v1085, %v1203
  %v1205 = vpop.f32.mrf.mxu0
  %v1206 = vpop.f32.mrf.mxu0
  %v1207 = vadd.f32 %v1085, %v1206
  %v1208 = vpop.f32.mrf.mxu0
  %1209 = vmatprep.mubr.bf16.mxu0 0
  %1210 = vmatmul.mubr.bf16.gmra.mxu0 %v1106
  %v1211 = vpop.f32.mrf.mxu0
  %v1212 = vadd.f32 %v1085, %v1211
  %v1213 = vpop.f32.mrf.mxu0
  %v1214 = vpop.f32.mrf.mxu0
  %v1215 = vadd.f32 %v1085, %v1214
  %v1216 = vpop.f32.mrf.mxu0
  %1217 = vmatprep.mubr.bf16.mxu0 0
  %1218 = vmatmul.mubr.bf16.gmra.mxu0 %v1109
  %v1219 = vpop.f32.mrf.mxu0
  %v1220 = vadd.f32 %v1085, %v1219
  %v1221 = vpop.f32.mrf.mxu0
  %v1222 = vpop.f32.mrf.mxu0
  %v1223 = vadd.f32 %v1085, %v1222
  %v1224 = vpop.f32.mrf.mxu0
  %1225 = vmatprep.mubr.bf16.mxu0 0
  %1226 = vmatmul.mubr.bf16.gmra.mxu0 %v1112
  %v1227 = vpop.f32.mrf.mxu0
  %v1228 = vadd.f32 %v1085, %v1227
  %v1229 = vpop.f32.mrf.mxu0
  %v1230 = vpop.f32.mrf.mxu0
  %v1231 = vadd.f32 %v1085, %v1230
  %v1232 = vpop.f32.mrf.mxu0
  %1233 = vmatprep.mubr.bf16.mxu0 0
  %1234 = vmatmul.mubr.bf16.gmra.mxu0 %v1115
  %v1235 = vpop.f32.mrf.mxu0
  %v1236 = vadd.f32 %v1085, %v1235
  %v1237 = vpop.f32.mrf.mxu0
  %v1238 = vpop.f32.mrf.mxu0
  %v1239 = vadd.f32 %v1085, %v1238
  %v1240 = vpop.f32.mrf.mxu0
  %1241 = vmatprep.mubr.bf16.mxu0 0
  %1242 = vmatmul.mubr.bf16.gmra.mxu0 %v1118
  %v1243 = vpop.f32.mrf.mxu0
  %v1244 = vadd.f32 %v1085, %v1243
  %v1245 = vpop.f32.mrf.mxu0
  %v1246 = vpop.f32.mrf.mxu0
  %v1247 = vadd.f32 %v1085, %v1246
  %v1248 = vpop.f32.mrf.mxu0
  %1249 = vmatprep.mubr.bf16.mxu0 0
  %1250 = vmatmul.mubr.bf16.gmra.mxu0 %v1121
  %v1251 = vpop.f32.mrf.mxu0
  %v1252 = vadd.f32 %v1085, %v1251
  %v1253 = vpop.f32.mrf.mxu0
  %v1254 = vpop.f32.mrf.mxu0
  %v1255 = vadd.f32 %v1085, %v1254
  %v1256 = vpop.f32.mrf.mxu0
  %1257 = vmatprep.mubr.bf16.mxu0 0
  %1258 = vmatmul.mubr.bf16.gmra.mxu0 %v1124
  %v1259 = vpop.f32.mrf.mxu0
  %v1260 = vadd.f32 %v1085, %v1259
  %v1261 = vpop.f32.mrf.mxu0
  %v1262 = vpop.f32.mrf.mxu0
  %v1263 = vadd.f32 %v1085, %v1262
  %v1264 = vpop.f32.mrf.mxu0
  %1265 = vmatprep.mubr.bf16.mxu0 0
  %1266 = vmatmul.mubr.bf16.gmra.mxu0 %v1127
  %v1267 = vpop.f32.mrf.mxu0
  %v1268 = vadd.f32 %v1085, %v1267
  %v1269 = vpop.f32.mrf.mxu0
  %v1270 = vpop.f32.mrf.mxu0
  %v1271 = vadd.f32 %v1085, %v1270
  %v1272 = vpop.f32.mrf.mxu0
  %1273 = vmatprep.mubr.bf16.mxu0 0
  %1274 = vmatmul.mubr.bf16.gmra.mxu0 %v1130
  %v1275 = vpop.f32.mrf.mxu0
  %v1276 = vadd.f32 %v1085, %v1275
  %v1277 = vpop.f32.mrf.mxu0
  %v1278 = vpop.f32.mrf.mxu0
  %v1279 = vadd.f32 %v1085, %v1278
  %v1280 = vpop.f32.mrf.mxu0
  %1281 = vmatprep.mubr.bf16.mxu0 0
  %1282 = vmatmul.mubr.bf16.gmra.mxu0 %v1133
  %v1283 = vpop.f32.mrf.mxu0
  %v1284 = vadd.f32 %v1085, %v1283
  %v1285 = vpop.f32.mrf.mxu0
  %v1286 = vpop.f32.mrf.mxu0
  %v1287 = vadd.f32 %v1085, %v1286
  %v1288 = vpop.f32.mrf.mxu0
  %1289 = vmatprep.mubr.bf16.mxu0 0
  %1290 = vmatmul.mubr.bf16.gmra.mxu0 %v1136
  %v1291 = vpop.f32.mrf.mxu0
  %v1292 = vadd.f32 %v1085, %v1291
  %v1293 = vpop.f32.mrf.mxu0
  %v1294 = vpop.f32.mrf.mxu0
  %v1295 = vadd.f32 %v1085, %v1294
  %v1296 = vpop.f32.mrf.mxu0
  %1297 = vmatprep.mubr.bf16.mxu0 0
  %1298 = vmatmul.mubr.bf16.gmra.mxu0 %v1139
  %v1299 = vpop.f32.mrf.mxu0
  %v1300 = vadd.f32 %v1085, %v1299
  %v1301 = vpop.f32.mrf.mxu0
  %v1302 = vpop.f32.mrf.mxu0
  %v1303 = vadd.f32 %v1085, %v1302
  %v1304 = vpop.f32.mrf.mxu0
  %1305 = vdwg.mxu0
  %1306 = vst [vmem:[#allocation4] sm:$0xff] %v1180
  %1307 = vst [vmem:[#allocation4 + $0x8] sm:$0xff] %v1183
  %1308 = vst [vmem:[#allocation4 + $0x10] sm:$0xff] %v1188
  %1309 = vst [vmem:[#allocation4 + $0x18] sm:$0xff] %v1191
  %1310 = vst [vmem:[#allocation4 + $0x20] sm:$0xff] %v1196
  %1311 = vst [vmem:[#allocation4 + $0x28] sm:$0xff] %v1199
  %1312 = vst [vmem:[#allocation4 + $0x30] sm:$0xff] %v1204
  %1313 = vst [vmem:[#allocation4 + $0x38] sm:$0xff] %v1207
  %1314 = vst [vmem:[#allocation4 + $0x40] sm:$0xff] %v1212
  %1315 = vst [vmem:[#allocation4 + $0x48] sm:$0xff] %v1215
  %1316 = vst [vmem:[#allocation4 + $0x50] sm:$0xff] %v1220
  %1317 = vst [vmem:[#allocation4 + $0x58] sm:$0xff] %v1223
  %1318 = vst [vmem:[#allocation4 + $0x60] sm:$0xff] %v1228
  %1319 = vst [vmem:[#allocation4 + $0x68] sm:$0xff] %v1231
  %1320 = vst [vmem:[#allocation4 + $0x70] sm:$0xff] %v1236
  %1321 = vst [vmem:[#allocation4 + $0x78] sm:$0xff] %v1239
  %1322 = vst [vmem:[#allocation4 + $0x80] sm:$0xff] %v1244
  %1323 = vst [vmem:[#allocation4 + $0x88] sm:$0xff] %v1247
  %1324 = vst [vmem:[#allocation4 + $0x90] sm:$0xff] %v1252
  %1325 = vst [vmem:[#allocation4 + $0x98] sm:$0xff] %v1255
  %1326 = vst [vmem:[#allocation4 + $0xa0] sm:$0xff] %v1260
  %1327 = vst [vmem:[#allocation4 + $0xa8] sm:$0xff] %v1263
  %1328 = vst [vmem:[#allocation4 + $0xb0] sm:$0xff] %v1268
  %1329 = vst [vmem:[#allocation4 + $0xb8] sm:$0xff] %v1271
  %1330 = vst [vmem:[#allocation4 + $0xc0] sm:$0xff] %v1276
  %1331 = vst [vmem:[#allocation4 + $0xc8] sm:$0xff] %v1279
  %1332 = vst [vmem:[#allocation4 + $0xd0] sm:$0xff] %v1284
  %1333 = vst [vmem:[#allocation4 + $0xd8] sm:$0xff] %v1287
  %1334 = vst [vmem:[#allocation4 + $0xe0] sm:$0xff] %v1292
  %1335 = vst [vmem:[#allocation4 + $0xe8] sm:$0xff] %v1295
  %1336 = vst [vmem:[#allocation4 + $0xf0] sm:$0xff] %v1300
  %1337 = vst [vmem:[#allocation4 + $0xf8] sm:$0xff] %v1303
  %v1338 = vld [vmem:[%s3] sm:$0xf]
  %v1339 = vld [vmem:[%s3 + $0x4] sm:$0xf]
  %v1340 = vld [vmem:[%s3 + $0x8] sm:$0xf]
  %v1341 = vld [vmem:[%s3 + $0xc] sm:$0xf]
  %v1342 = vld [vmem:[#allocation2] sm:$0xff]
  %v1343 = vld [vmem:[#allocation2 + $0x8] sm:$0xff]
  %v1344 = vld [vmem:[#allocation3] sm:$0xff]
  %v1345 = vld [vmem:[#allocation3 + $0x8] sm:$0xff]
  %v1346 = vld [vmem:[#allocation4] sm:$0xff]
  %v1347 = vld [vmem:[#allocation4 + $0x8] sm:$0xff]
  %v1348 = vpack.c.bf16 %v1343, %v1342
  %v1353 = vunpack.c.l.b16 %v1338
  %v1354 = vunpack.c.l.b16 %v1339
  %v1355 = vunpack.c.l.b16 %v1340
  %v1356 = vunpack.c.l.b16 %v1341
  %v1357 = vpack.c.b16 %v1354, %v1353
  %v1358 = vpack.c.b16 %v1356, %v1355
  %vm1361 = vcmask 261120
  %v1363 = vsel %vm1361, %v1348, 0
  %1365 = vmatprep.subr.bf16.mxu0 0
  %1366 = vmatpush1.bf16.msra.mxu0 0
  %1367 = vmatprep.subr.bf16.mxu0 0
  %1368 = vmatpush1.bf16.msra.mxu0 0
  %1369 = vmatprep.subr.bf16.mxu0 0
  %1370 = vmatpush1.bf16.msra.mxu0 0
  %1371 = vmatprep.subr.bf16.mxu0 0
  %1372 = vmatpush1.bf16.msra.mxu0 0
  %1373 = vmatprep.subr.bf16.mxu0 0
  %1374 = vmatpush1.bf16.msra.mxu0 0
  %1375 = vmatprep.subr.bf16.mxu0 0
  %1376 = vmatpush1.bf16.msra.mxu0 0
  %1377 = vmatprep.subr.bf16.mxu0 0
  %1378 = vmatpush1.bf16.msra.mxu0 %v1358
  %1379 = vmatprep.subr.bf16.mxu0 0
  %1380 = vmatpush1.bf16.msra.mxu0 %v1357
  %1381 = vmatprep.subr.bf16.mxu0 0
  %1382 = vmatpush2.bf16.msra.mxu0 0
  %1383 = vmatprep.subr.bf16.mxu0 0
  %1384 = vmatpush2.bf16.msra.mxu0 0
  %1385 = vmatprep.subr.bf16.mxu0 0
  %1386 = vmatpush2.bf16.msra.mxu0 0
  %1387 = vmatprep.subr.bf16.mxu0 0
  %1388 = vmatpush2.bf16.msra.mxu0 0
  %1389 = vmatprep.subr.bf16.mxu0 0
  %1390 = vmatpush2.bf16.msra.mxu0 0
  %1391 = vmatprep.subr.bf16.mxu0 0
  %1392 = vmatpush2.bf16.msra.mxu0 0
  %1393 = vmatprep.subr.bf16.mxu0 0
  %1394 = vmatpush2.bf16.msra.mxu0 0
  %1395 = vmatprep.subr.bf16.mxu0 0
  %1396 = vmatpush2.bf16.msra.mxu0 0
  %1397 = vmatprep.mubr.bf16.mxu0 0
  %1398 = vmatmul.mubr.bf16.gmra.mxu0 %v1363
  %v1399 = vpop.f32.mrf.mxu0
  %v1400 = vadd.f32 0.0, %v1399
  %v1401 = vpop.f32.mrf.mxu0
  %v1402 = vpop.f32.mrf.mxu0
  %v1403 = vadd.f32 0.0, %v1402
  %v1404 = vpop.f32.mrf.mxu0
  %1405 = vdwg.mxu0
  %v1406 = vadd.f32 %v1346, %v1400
  %v1407 = vadd.f32 %v1347, %v1403
  %v1408 = vxor.u32 %v1406, 2147483648
  %v1409 = vxor.u32 %v1407, 2147483648
  %v1410 = vmul.f32 %v1408, 1.442695
  %v1411 = vpow.pop %v1410
  %v1412 = vmul.f32 %v1409, 1.442695
  %v1413 = vpow.pop %v1412
  %v1414 = vadd.f32 %v1411, 1.0
  %v1415 = vadd.f32 %v1413, 1.0
  %v1416 = vrcp.pop %v1414
  %v1417 = vmul.f32 1.0, %v1416
  %v1418 = vrcp.pop %v1415
  %v1419 = vmul.f32 1.0, %v1418
  %v1420 = vtanh.pop %v1406
  %v1421 = vtanh.pop %v1407
  %1424 = vrot.lane.b32.xlu0 %v1344, 32
  %v1425 = vpop.permute.xlu0 %1424
  %1426 = vrot.lane.b32.xlu0 %v1345, 32
  %v1427 = vpop.permute.xlu0 %1426
  %v1430 = vmul.f32 %v1417, %v1425
  %v1431 = vmul.f32 %v1419, %v1427
  %1434 = vrot.lane.b32.xlu0 %v1420, 64
  %v1435 = vpop.permute.xlu0 %1434
  %1436 = vrot.lane.b32.xlu0 %v1421, 64
  %v1437 = vpop.permute.xlu0 %1436
  %v1440 = vmul.f32 %v1417, %v1435
  %v1441 = vmul.f32 %v1419, %v1437
  %1444 = vrot.lane.b32.xlu0 %v1440, 32
  %v1445 = vpop.permute.xlu0 %1444
  %1446 = vrot.lane.b32.xlu0 %v1441, 32
  %v1447 = vpop.permute.xlu0 %1446
  %v1450 = vadd.f32 %v1430, %v1445
  %v1451 = vadd.f32 %v1431, %v1447
  %v1452 = vtanh.pop %v1450
  %v1453 = vtanh.pop %v1451
  %1456 = vrot.lane.b32.xlu0 %v1452, 64
  %v1457 = vpop.permute.xlu0 %1456
  %1458 = vrot.lane.b32.xlu0 %v1453, 64
  %v1459 = vpop.permute.xlu0 %1458
  %v1462 = vmul.f32 %v1417, %v1457
  %v1463 = vmul.f32 %v1419, %v1459
  %1466 = vrot.lane.b32.xlu0 %v1462, 32
  %v1467 = vpop.permute.xlu0 %1466
  %1468 = vrot.lane.b32.xlu0 %v1463, 32
  %v1469 = vpop.permute.xlu0 %1468
  %1472 = vst.msk [vmem:[#allocation5] sm:$0xff] %vm1361, %v1467
  %1473 = vst.msk [vmem:[#allocation5 + $0x8] sm:$0xff] %vm1361, %v1469
  %s1474 = scalar_lea.vmem [#allocation4], 16
  %v1475 = vld [vmem:[%s1474] sm:$0xff]
  %v1476 = vld [vmem:[%s1474 + $0x8] sm:$0xff]
  %v1477 = vpack.c.bf16 %v1463, %v1462
  %1479 = vrot.lane.b32.xlu0 %v1477, 32
  %v1480 = vpop.permute.xlu0 %1479
  %v1482 = vsel %vm1361, %v1480, 0
  %1484 = vmatprep.subr.bf16.mxu0 0
  %1485 = vmatpush1.bf16.msra.mxu0 0
  %1486 = vmatprep.subr.bf16.mxu0 0
  %1487 = vmatpush1.bf16.msra.mxu0 0
  %1488 = vmatprep.subr.bf16.mxu0 0
  %1489 = vmatpush1.bf16.msra.mxu0 0
  %1490 = vmatprep.subr.bf16.mxu0 0
  %1491 = vmatpush1.bf16.msra.mxu0 0
  %1492 = vmatprep.subr.bf16.mxu0 0
  %1493 = vmatpush1.bf16.msra.mxu0 0
  %1494 = vmatprep.subr.bf16.mxu0 0
  %1495 = vmatpush1.bf16.msra.mxu0 0
  %1496 = vmatprep.subr.bf16.mxu0 0
  %1497 = vmatpush1.bf16.msra.mxu0 %v1358
  %1498 = vmatprep.subr.bf16.mxu0 0
  %1499 = vmatpush1.bf16.msra.mxu0 %v1357
  %1500 = vmatprep.subr.bf16.mxu0 0
  %1501 = vmatpush2.bf16.msra.mxu0 0
  %1502 = vmatprep.subr.bf16.mxu0 0
  %1503 = vmatpush2.bf16.msra.mxu0 0
  %1504 = vmatprep.subr.bf16.mxu0 0
  %1505 = vmatpush2.bf16.msra.mxu0 0
  %1506 = vmatprep.subr.bf16.mxu0 0
  %1507 = vmatpush2.bf16.msra.mxu0 0
  %1508 = vmatprep.subr.bf16.mxu0 0
  %1509 = vmatpush2.bf16.msra.mxu0 0
  %1510 = vmatprep.subr.bf16.mxu0 0
  %1511 = vmatpush2.bf16.msra.mxu0 0
  %1512 = vmatprep.subr.bf16.mxu0 0
  %1513 = vmatpush2.bf16.msra.mxu0 0
  %1514 = vmatprep.subr.bf16.mxu0 0
  %1515 = vmatpush2.bf16.msra.mxu0 0
  %1516 = vmatprep.mubr.bf16.mxu0 0
  %1517 = vmatmul.mubr.bf16.gmra.mxu0 %v1482
  %v1518 = vpop.f32.mrf.mxu0
  %v1519 = vadd.f32 0.0, %v1518
  %v1520 = vpop.f32.mrf.mxu0
  %v1521 = vpop.f32.mrf.mxu0
  %v1522 = vadd.f32 0.0, %v1521
  %v1523 = vpop.f32.mrf.mxu0
  %1524 = vdwg.mxu0
  %v1525 = vadd.f32 %v1475, %v1519
  %v1526 = vadd.f32 %v1476, %v1522
  %v1527 = vxor.u32 %v1525, 2147483648
  %v1528 = vxor.u32 %v1526, 2147483648
  %v1529 = vmul.f32 %v1527, 1.442695
  %v1530 = vpow.pop %v1529
  %v1531 = vmul.f32 %v1528, 1.442695
  %v1532 = vpow.pop %v1531
  %v1533 = vadd.f32 %v1530, 1.0
  %v1534 = vadd.f32 %v1532, 1.0
  %v1535 = vrcp.pop %v1533
  %v1536 = vmul.f32 1.0, %v1535
  %v1537 = vrcp.pop %v1534
  %v1538 = vmul.f32 1.0, %v1537
  %v1539 = vtanh.pop %v1525
  %v1540 = vtanh.pop %v1526
  %v1541 = vmul.f32 %v1536, %v1450
  %v1542 = vmul.f32 %v1538, %v1451
  %1545 = vrot.lane.b32.xlu0 %v1539, 64
  %v1546 = vpop.permute.xlu0 %1545
  %1547 = vrot.lane.b32.xlu0 %v1540, 64
  %v1548 = vpop.permute.xlu0 %1547
  %v1551 = vmul.f32 %v1536, %v1546
  %v1552 = vmul.f32 %v1538, %v1548
  %1555 = vrot.lane.b32.xlu0 %v1551, 32
  %v1556 = vpop.permute.xlu0 %1555
  %1557 = vrot.lane.b32.xlu0 %v1552, 32
  %v1558 = vpop.permute.xlu0 %1557
  %v1561 = vadd.f32 %v1541, %v1556
  %v1562 = vadd.f32 %v1542, %v1558
  %v1563 = vtanh.pop %v1561
  %v1564 = vtanh.pop %v1562
  %1567 = vrot.lane.b32.xlu0 %v1563, 64
  %v1568 = vpop.permute.xlu0 %1567
  %1569 = vrot.lane.b32.xlu0 %v1564, 64
  %v1570 = vpop.permute.xlu0 %1569
  %v1573 = vmul.f32 %v1536, %v1568
  %v1574 = vmul.f32 %v1538, %v1570
  %1577 = vrot.lane.b32.xlu0 %v1573, 32
  %v1578 = vpop.permute.xlu0 %1577
  %1579 = vrot.lane.b32.xlu0 %v1574, 32
  %v1580 = vpop.permute.xlu0 %1579
  %s1583 = scalar_lea.vmem [#allocation5], 16
  %1584 = vst.msk [vmem:[%s1583] sm:$0xff] %vm1361, %v1578
  %1585 = vst.msk [vmem:[%s1583 + $0x8] sm:$0xff] %vm1361, %v1580
  %s1586 = scalar_lea.vmem [#allocation4], 32
  %v1587 = vld [vmem:[%s1586] sm:$0xff]
  %v1588 = vld [vmem:[%s1586 + $0x8] sm:$0xff]
  %v1589 = vpack.c.bf16 %v1574, %v1573
  %1591 = vrot.lane.b32.xlu0 %v1589, 32
  %v1592 = vpop.permute.xlu0 %1591
  %v1594 = vsel %vm1361, %v1592, 0
  %1596 = vmatprep.subr.bf16.mxu0 0
  %1597 = vmatpush1.bf16.msra.mxu0 0
  %1598 = vmatprep.subr.bf16.mxu0 0
  %1599 = vmatpush1.bf16.msra.mxu0 0
  %1600 = vmatprep.subr.bf16.mxu0 0
  %1601 = vmatpush1.bf16.msra.mxu0 0
  %1602 = vmatprep.subr.bf16.mxu0 0
  %1603 = vmatpush1.bf16.msra.mxu0 0
  %1604 = vmatprep.subr.bf16.mxu0 0
  %1605 = vmatpush1.bf16.msra.mxu0 0
  %1606 = vmatprep.subr.bf16.mxu0 0
  %1607 = vmatpush1.bf16.msra.mxu0 0
  %1608 = vmatprep.subr.bf16.mxu0 0
  %1609 = vmatpush1.bf16.msra.mxu0 %v1358
  %1610 = vmatprep.subr.bf16.mxu0 0
  %1611 = vmatpush1.bf16.msra.mxu0 %v1357
  %1612 = vmatprep.subr.bf16.mxu0 0
  %1613 = vmatpush2.bf16.msra.mxu0 0
  %1614 = vmatprep.subr.bf16.mxu0 0
  %1615 = vmatpush2.bf16.msra.mxu0 0
  %1616 = vmatprep.subr.bf16.mxu0 0
  %1617 = vmatpush2.bf16.msra.mxu0 0
  %1618 = vmatprep.subr.bf16.mxu0 0
  %1619 = vmatpush2.bf16.msra.mxu0 0
  %1620 = vmatprep.subr.bf16.mxu0 0
  %1621 = vmatpush2.bf16.msra.mxu0 0
  %1622 = vmatprep.subr.bf16.mxu0 0
  %1623 = vmatpush2.bf16.msra.mxu0 0
  %1624 = vmatprep.subr.bf16.mxu0 0
  %1625 = vmatpush2.bf16.msra.mxu0 0
  %1626 = vmatprep.subr.bf16.mxu0 0
  %1627 = vmatpush2.bf16.msra.mxu0 0
  %1628 = vmatprep.mubr.bf16.mxu0 0
  %1629 = vmatmul.mubr.bf16.gmra.mxu0 %v1594
  %v1630 = vpop.f32.mrf.mxu0
  %v1631 = vadd.f32 0.0, %v1630
  %v1632 = vpop.f32.mrf.mxu0
  %v1633 = vpop.f32.mrf.mxu0
  %v1634 = vadd.f32 0.0, %v1633
  %v1635 = vpop.f32.mrf.mxu0
  %1636 = vdwg.mxu0
  %v1637 = vadd.f32 %v1587, %v1631
  %v1638 = vadd.f32 %v1588, %v1634
  %v1639 = vxor.u32 %v1637, 2147483648
  %v1640 = vxor.u32 %v1638, 2147483648
  %v1641 = vmul.f32 %v1639, 1.442695
  %v1642 = vpow.pop %v1641
  %v1643 = vmul.f32 %v1640, 1.442695
  %v1644 = vpow.pop %v1643
  %v1645 = vadd.f32 %v1642, 1.0
  %v1646 = vadd.f32 %v1644, 1.0
  %v1647 = vrcp.pop %v1645
  %v1648 = vmul.f32 1.0, %v1647
  %v1649 = vrcp.pop %v1646
  %v1650 = vmul.f32 1.0, %v1649
  %v1651 = vtanh.pop %v1637
  %v1652 = vtanh.pop %v1638
  %v1653 = vmul.f32 %v1648, %v1561
  %v1654 = vmul.f32 %v1650, %v1562
  %1657 = vrot.lane.b32.xlu0 %v1651, 64
  %v1658 = vpop.permute.xlu0 %1657
  %1659 = vrot.lane.b32.xlu0 %v1652, 64
  %v1660 = vpop.permute.xlu0 %1659
  %v1663 = vmul.f32 %v1648, %v1658
  %v1664 = vmul.f32 %v1650, %v1660
  %1667 = vrot.lane.b32.xlu0 %v1663, 32
  %v1668 = vpop.permute.xlu0 %1667
  %1669 = vrot.lane.b32.xlu0 %v1664, 32
  %v1670 = vpop.permute.xlu0 %1669
  %v1673 = vadd.f32 %v1653, %v1668
  %v1674 = vadd.f32 %v1654, %v1670
  %v1675 = vtanh.pop %v1673
  %v1676 = vtanh.pop %v1674
  %1679 = vrot.lane.b32.xlu0 %v1675, 64
  %v1680 = vpop.permute.xlu0 %1679
  %1681 = vrot.lane.b32.xlu0 %v1676, 64
  %v1682 = vpop.permute.xlu0 %1681
  %v1685 = vmul.f32 %v1648, %v1680
  %v1686 = vmul.f32 %v1650, %v1682
  %1689 = vrot.lane.b32.xlu0 %v1685, 32
  %v1690 = vpop.permute.xlu0 %1689
  %1691 = vrot.lane.b32.xlu0 %v1686, 32
  %v1692 = vpop.permute.xlu0 %1691
  %s1695 = scalar_lea.vmem [#allocation5], 32
  %1696 = vst.msk [vmem:[%s1695] sm:$0xff] %vm1361, %v1690
  %1697 = vst.msk [vmem:[%s1695 + $0x8] sm:$0xff] %vm1361, %v1692
  %s1698 = scalar_lea.vmem [#allocation4], 48
  %v1699 = vld [vmem:[%s1698] sm:$0xff]
  %v1700 = vld [vmem:[%s1698 + $0x8] sm:$0xff]
  %v1701 = vpack.c.bf16 %v1686, %v1685
  %1703 = vrot.lane.b32.xlu0 %v1701, 32
  %v1704 = vpop.permute.xlu0 %1703
  %v1706 = vsel %vm1361, %v1704, 0
  %1708 = vmatprep.subr.bf16.mxu0 0
  %1709 = vmatpush1.bf16.msra.mxu0 0
  %1710 = vmatprep.subr.bf16.mxu0 0
  %1711 = vmatpush1.bf16.msra.mxu0 0
  %1712 = vmatprep.subr.bf16.mxu0 0
  %1713 = vmatpush1.bf16.msra.mxu0 0
  %1714 = vmatprep.subr.bf16.mxu0 0
  %1715 = vmatpush1.bf16.msra.mxu0 0
  %1716 = vmatprep.subr.bf16.mxu0 0
  %1717 = vmatpush1.bf16.msra.mxu0 0
  %1718 = vmatprep.subr.bf16.mxu0 0
  %1719 = vmatpush1.bf16.msra.mxu0 0
  %1720 = vmatprep.subr.bf16.mxu0 0
  %1721 = vmatpush1.bf16.msra.mxu0 %v1358
  %1722 = vmatprep.subr.bf16.mxu0 0
  %1723 = vmatpush1.bf16.msra.mxu0 %v1357
  %1724 = vmatprep.subr.bf16.mxu0 0
  %1725 = vmatpush2.bf16.msra.mxu0 0
  %1726 = vmatprep.subr.bf16.mxu0 0
  %1727 = vmatpush2.bf16.msra.mxu0 0
  %1728 = vmatprep.subr.bf16.mxu0 0
  %1729 = vmatpush2.bf16.msra.mxu0 0
  %1730 = vmatprep.subr.bf16.mxu0 0
  %1731 = vmatpush2.bf16.msra.mxu0 0
  %1732 = vmatprep.subr.bf16.mxu0 0
  %1733 = vmatpush2.bf16.msra.mxu0 0
  %1734 = vmatprep.subr.bf16.mxu0 0
  %1735 = vmatpush2.bf16.msra.mxu0 0
  %1736 = vmatprep.subr.bf16.mxu0 0
  %1737 = vmatpush2.bf16.msra.mxu0 0
  %1738 = vmatprep.subr.bf16.mxu0 0
  %1739 = vmatpush2.bf16.msra.mxu0 0
  %1740 = vmatprep.mubr.bf16.mxu0 0
  %1741 = vmatmul.mubr.bf16.gmra.mxu0 %v1706
  %v1742 = vpop.f32.mrf.mxu0
  %v1743 = vadd.f32 0.0, %v1742
  %v1744 = vpop.f32.mrf.mxu0
  %v1745 = vpop.f32.mrf.mxu0
  %v1746 = vadd.f32 0.0, %v1745
  %v1747 = vpop.f32.mrf.mxu0
  %1748 = vdwg.mxu0
  %v1749 = vadd.f32 %v1699, %v1743
  %v1750 = vadd.f32 %v1700, %v1746
  %v1751 = vxor.u32 %v1749, 2147483648
  %v1752 = vxor.u32 %v1750, 2147483648
  %v1753 = vmul.f32 %v1751, 1.442695
  %v1754 = vpow.pop %v1753
  %v1755 = vmul.f32 %v1752, 1.442695
  %v1756 = vpow.pop %v1755
  %v1757 = vadd.f32 %v1754, 1.0
  %v1758 = vadd.f32 %v1756, 1.0
  %v1759 = vrcp.pop %v1757
  %v1760 = vmul.f32 1.0, %v1759
  %v1761 = vrcp.pop %v1758
  %v1762 = vmul.f32 1.0, %v1761
  %v1763 = vtanh.pop %v1749
  %v1764 = vtanh.pop %v1750
  %v1765 = vmul.f32 %v1760, %v1673
  %v1766 = vmul.f32 %v1762, %v1674
  %1769 = vrot.lane.b32.xlu0 %v1763, 64
  %v1770 = vpop.permute.xlu0 %1769
  %1771 = vrot.lane.b32.xlu0 %v1764, 64
  %v1772 = vpop.permute.xlu0 %1771
  %v1775 = vmul.f32 %v1760, %v1770
  %v1776 = vmul.f32 %v1762, %v1772
  %1779 = vrot.lane.b32.xlu0 %v1775, 32
  %v1780 = vpop.permute.xlu0 %1779
  %1781 = vrot.lane.b32.xlu0 %v1776, 32
  %v1782 = vpop.permute.xlu0 %1781
  %v1785 = vadd.f32 %v1765, %v1780
  %v1786 = vadd.f32 %v1766, %v1782
  %v1787 = vtanh.pop %v1785
  %v1788 = vtanh.pop %v1786
  %1791 = vrot.lane.b32.xlu0 %v1787, 64
  %v1792 = vpop.permute.xlu0 %1791
  %1793 = vrot.lane.b32.xlu0 %v1788, 64
  %v1794 = vpop.permute.xlu0 %1793
  %v1797 = vmul.f32 %v1760, %v1792
  %v1798 = vmul.f32 %v1762, %v1794
  %1801 = vrot.lane.b32.xlu0 %v1797, 32
  %v1802 = vpop.permute.xlu0 %1801
  %1803 = vrot.lane.b32.xlu0 %v1798, 32
  %v1804 = vpop.permute.xlu0 %1803
  %s1807 = scalar_lea.vmem [#allocation5], 48
  %1808 = vst.msk [vmem:[%s1807] sm:$0xff] %vm1361, %v1802
  %1809 = vst.msk [vmem:[%s1807 + $0x8] sm:$0xff] %vm1361, %v1804
  %s1810 = scalar_lea.vmem [#allocation4], 64
  %v1811 = vld [vmem:[%s1810] sm:$0xff]
  %v1812 = vld [vmem:[%s1810 + $0x8] sm:$0xff]
  %v1813 = vpack.c.bf16 %v1798, %v1797
  %1815 = vrot.lane.b32.xlu0 %v1813, 32
  %v1816 = vpop.permute.xlu0 %1815
  %v1818 = vsel %vm1361, %v1816, 0
  %1820 = vmatprep.subr.bf16.mxu0 0
  %1821 = vmatpush1.bf16.msra.mxu0 0
  %1822 = vmatprep.subr.bf16.mxu0 0
  %1823 = vmatpush1.bf16.msra.mxu0 0
  %1824 = vmatprep.subr.bf16.mxu0 0
  %1825 = vmatpush1.bf16.msra.mxu0 0
  %1826 = vmatprep.subr.bf16.mxu0 0
  %1827 = vmatpush1.bf16.msra.mxu0 0
  %1828 = vmatprep.subr.bf16.mxu0 0
  %1829 = vmatpush1.bf16.msra.mxu0 0
  %1830 = vmatprep.subr.bf16.mxu0 0
  %1831 = vmatpush1.bf16.msra.mxu0 0
  %1832 = vmatprep.subr.bf16.mxu0 0
  %1833 = vmatpush1.bf16.msra.mxu0 %v1358
  %1834 = vmatprep.subr.bf16.mxu0 0
  %1835 = vmatpush1.bf16.msra.mxu0 %v1357
  %1836 = vmatprep.subr.bf16.mxu0 0
  %1837 = vmatpush2.bf16.msra.mxu0 0
  %1838 = vmatprep.subr.bf16.mxu0 0
  %1839 = vmatpush2.bf16.msra.mxu0 0
  %1840 = vmatprep.subr.bf16.mxu0 0
  %1841 = vmatpush2.bf16.msra.mxu0 0
  %1842 = vmatprep.subr.bf16.mxu0 0
  %1843 = vmatpush2.bf16.msra.mxu0 0
  %1844 = vmatprep.subr.bf16.mxu0 0
  %1845 = vmatpush2.bf16.msra.mxu0 0
  %1846 = vmatprep.subr.bf16.mxu0 0
  %1847 = vmatpush2.bf16.msra.mxu0 0
  %1848 = vmatprep.subr.bf16.mxu0 0
  %1849 = vmatpush2.bf16.msra.mxu0 0
  %1850 = vmatprep.subr.bf16.mxu0 0
  %1851 = vmatpush2.bf16.msra.mxu0 0
  %1852 = vmatprep.mubr.bf16.mxu0 0
  %1853 = vmatmul.mubr.bf16.gmra.mxu0 %v1818
  %v1854 = vpop.f32.mrf.mxu0
  %v1855 = vadd.f32 0.0, %v1854
  %v1856 = vpop.f32.mrf.mxu0
  %v1857 = vpop.f32.mrf.mxu0
  %v1858 = vadd.f32 0.0, %v1857
  %v1859 = vpop.f32.mrf.mxu0
  %1860 = vdwg.mxu0
  %v1861 = vadd.f32 %v1811, %v1855
  %v1862 = vadd.f32 %v1812, %v1858
  %v1863 = vxor.u32 %v1861, 2147483648
  %v1864 = vxor.u32 %v1862, 2147483648
  %v1865 = vmul.f32 %v1863, 1.442695
  %v1866 = vpow.pop %v1865
  %v1867 = vmul.f32 %v1864, 1.442695
  %v1868 = vpow.pop %v1867
  %v1869 = vadd.f32 %v1866, 1.0
  %v1870 = vadd.f32 %v1868, 1.0
  %v1871 = vrcp.pop %v1869
  %v1872 = vmul.f32 1.0, %v1871
  %v1873 = vrcp.pop %v1870
  %v1874 = vmul.f32 1.0, %v1873
  %v1875 = vtanh.pop %v1861
  %v1876 = vtanh.pop %v1862
  %v1877 = vmul.f32 %v1872, %v1785
  %v1878 = vmul.f32 %v1874, %v1786
  %1881 = vrot.lane.b32.xlu0 %v1875, 64
  %v1882 = vpop.permute.xlu0 %1881
  %1883 = vrot.lane.b32.xlu0 %v1876, 64
  %v1884 = vpop.permute.xlu0 %1883
  %v1887 = vmul.f32 %v1872, %v1882
  %v1888 = vmul.f32 %v1874, %v1884
  %1891 = vrot.lane.b32.xlu0 %v1887, 32
  %v1892 = vpop.permute.xlu0 %1891
  %1893 = vrot.lane.b32.xlu0 %v1888, 32
  %v1894 = vpop.permute.xlu0 %1893
  %v1897 = vadd.f32 %v1877, %v1892
  %v1898 = vadd.f32 %v1878, %v1894
  %v1899 = vtanh.pop %v1897
  %v1900 = vtanh.pop %v1898
  %1903 = vrot.lane.b32.xlu0 %v1899, 64
  %v1904 = vpop.permute.xlu0 %1903
  %1905 = vrot.lane.b32.xlu0 %v1900, 64
  %v1906 = vpop.permute.xlu0 %1905
  %v1909 = vmul.f32 %v1872, %v1904
  %v1910 = vmul.f32 %v1874, %v1906
  %1913 = vrot.lane.b32.xlu0 %v1909, 32
  %v1914 = vpop.permute.xlu0 %1913
  %1915 = vrot.lane.b32.xlu0 %v1910, 32
  %v1916 = vpop.permute.xlu0 %1915
  %s1919 = scalar_lea.vmem [#allocation5], 64
  %1920 = vst.msk [vmem:[%s1919] sm:$0xff] %vm1361, %v1914
  %1921 = vst.msk [vmem:[%s1919 + $0x8] sm:$0xff] %vm1361, %v1916
  %s1922 = scalar_lea.vmem [#allocation4], 80
  %v1923 = vld [vmem:[%s1922] sm:$0xff]
  %v1924 = vld [vmem:[%s1922 + $0x8] sm:$0xff]
  %v1925 = vpack.c.bf16 %v1910, %v1909
  %1927 = vrot.lane.b32.xlu0 %v1925, 32
  %v1928 = vpop.permute.xlu0 %1927
  %v1930 = vsel %vm1361, %v1928, 0
  %1932 = vmatprep.subr.bf16.mxu0 0
  %1933 = vmatpush1.bf16.msra.mxu0 0
  %1934 = vmatprep.subr.bf16.mxu0 0
  %1935 = vmatpush1.bf16.msra.mxu0 0
  %1936 = vmatprep.subr.bf16.mxu0 0
  %1937 = vmatpush1.bf16.msra.mxu0 0
  %1938 = vmatprep.subr.bf16.mxu0 0
  %1939 = vmatpush1.bf16.msra.mxu0 0
  %1940 = vmatprep.subr.bf16.mxu0 0
  %1941 = vmatpush1.bf16.msra.mxu0 0
  %1942 = vmatprep.subr.bf16.mxu0 0
  %1943 = vmatpush1.bf16.msra.mxu0 0
  %1944 = vmatprep.subr.bf16.mxu0 0
  %1945 = vmatpush1.bf16.msra.mxu0 %v1358
  %1946 = vmatprep.subr.bf16.mxu0 0
  %1947 = vmatpush1.bf16.msra.mxu0 %v1357
  %1948 = vmatprep.subr.bf16.mxu0 0
  %1949 = vmatpush2.bf16.msra.mxu0 0
  %1950 = vmatprep.subr.bf16.mxu0 0
  %1951 = vmatpush2.bf16.msra.mxu0 0
  %1952 = vmatprep.subr.bf16.mxu0 0
  %1953 = vmatpush2.bf16.msra.mxu0 0
  %1954 = vmatprep.subr.bf16.mxu0 0
  %1955 = vmatpush2.bf16.msra.mxu0 0
  %1956 = vmatprep.subr.bf16.mxu0 0
  %1957 = vmatpush2.bf16.msra.mxu0 0
  %1958 = vmatprep.subr.bf16.mxu0 0
  %1959 = vmatpush2.bf16.msra.mxu0 0
  %1960 = vmatprep.subr.bf16.mxu0 0
  %1961 = vmatpush2.bf16.msra.mxu0 0
  %1962 = vmatprep.subr.bf16.mxu0 0
  %1963 = vmatpush2.bf16.msra.mxu0 0
  %1964 = vmatprep.mubr.bf16.mxu0 0
  %1965 = vmatmul.mubr.bf16.gmra.mxu0 %v1930
  %v1966 = vpop.f32.mrf.mxu0
  %v1967 = vadd.f32 0.0, %v1966
  %v1968 = vpop.f32.mrf.mxu0
  %v1969 = vpop.f32.mrf.mxu0
  %v1970 = vadd.f32 0.0, %v1969
  %v1971 = vpop.f32.mrf.mxu0
  %1972 = vdwg.mxu0
  %v1973 = vadd.f32 %v1923, %v1967
  %v1974 = vadd.f32 %v1924, %v1970
  %v1975 = vxor.u32 %v1973, 2147483648
  %v1976 = vxor.u32 %v1974, 2147483648
  %v1977 = vmul.f32 %v1975, 1.442695
  %v1978 = vpow.pop %v1977
  %v1979 = vmul.f32 %v1976, 1.442695
  %v1980 = vpow.pop %v1979
  %v1981 = vadd.f32 %v1978, 1.0
  %v1982 = vadd.f32 %v1980, 1.0
  %v1983 = vrcp.pop %v1981
  %v1984 = vmul.f32 1.0, %v1983
  %v1985 = vrcp.pop %v1982
  %v1986 = vmul.f32 1.0, %v1985
  %v1987 = vtanh.pop %v1973
  %v1988 = vtanh.pop %v1974
  %v1989 = vmul.f32 %v1984, %v1897
  %v1990 = vmul.f32 %v1986, %v1898
  %1993 = vrot.lane.b32.xlu0 %v1987, 64
  %v1994 = vpop.permute.xlu0 %1993
  %1995 = vrot.lane.b32.xlu0 %v1988, 64
  %v1996 = vpop.permute.xlu0 %1995
  %v1999 = vmul.f32 %v1984, %v1994
  %v2000 = vmul.f32 %v1986, %v1996
  %2003 = vrot.lane.b32.xlu0 %v1999, 32
  %v2004 = vpop.permute.xlu0 %2003
  %2005 = vrot.lane.b32.xlu0 %v2000, 32
  %v2006 = vpop.permute.xlu0 %2005
  %v2009 = vadd.f32 %v1989, %v2004
  %v2010 = vadd.f32 %v1990, %v2006
  %v2011 = vtanh.pop %v2009
  %v2012 = vtanh.pop %v2010
  %2015 = vrot.lane.b32.xlu0 %v2011, 64
  %v2016 = vpop.permute.xlu0 %2015
  %2017 = vrot.lane.b32.xlu0 %v2012, 64
  %v2018 = vpop.permute.xlu0 %2017
  %v2021 = vmul.f32 %v1984, %v2016
  %v2022 = vmul.f32 %v1986, %v2018
  %2025 = vrot.lane.b32.xlu0 %v2021, 32
  %v2026 = vpop.permute.xlu0 %2025
  %2027 = vrot.lane.b32.xlu0 %v2022, 32
  %v2028 = vpop.permute.xlu0 %2027
  %s2031 = scalar_lea.vmem [#allocation5], 80
  %2032 = vst.msk [vmem:[%s2031] sm:$0xff] %vm1361, %v2026
  %2033 = vst.msk [vmem:[%s2031 + $0x8] sm:$0xff] %vm1361, %v2028
  %s2034 = scalar_lea.vmem [#allocation4], 96
  %v2035 = vld [vmem:[%s2034] sm:$0xff]
  %v2036 = vld [vmem:[%s2034 + $0x8] sm:$0xff]
  %v2037 = vpack.c.bf16 %v2022, %v2021
  %2039 = vrot.lane.b32.xlu0 %v2037, 32
  %v2040 = vpop.permute.xlu0 %2039
  %v2042 = vsel %vm1361, %v2040, 0
  %2044 = vmatprep.subr.bf16.mxu0 0
  %2045 = vmatpush1.bf16.msra.mxu0 0
  %2046 = vmatprep.subr.bf16.mxu0 0
  %2047 = vmatpush1.bf16.msra.mxu0 0
  %2048 = vmatprep.subr.bf16.mxu0 0
  %2049 = vmatpush1.bf16.msra.mxu0 0
  %2050 = vmatprep.subr.bf16.mxu0 0
  %2051 = vmatpush1.bf16.msra.mxu0 0
  %2052 = vmatprep.subr.bf16.mxu0 0
  %2053 = vmatpush1.bf16.msra.mxu0 0
  %2054 = vmatprep.subr.bf16.mxu0 0
  %2055 = vmatpush1.bf16.msra.mxu0 0
  %2056 = vmatprep.subr.bf16.mxu0 0
  %2057 = vmatpush1.bf16.msra.mxu0 %v1358
  %2058 = vmatprep.subr.bf16.mxu0 0
  %2059 = vmatpush1.bf16.msra.mxu0 %v1357
  %2060 = vmatprep.subr.bf16.mxu0 0
  %2061 = vmatpush2.bf16.msra.mxu0 0
  %2062 = vmatprep.subr.bf16.mxu0 0
  %2063 = vmatpush2.bf16.msra.mxu0 0
  %2064 = vmatprep.subr.bf16.mxu0 0
  %2065 = vmatpush2.bf16.msra.mxu0 0
  %2066 = vmatprep.subr.bf16.mxu0 0
  %2067 = vmatpush2.bf16.msra.mxu0 0
  %2068 = vmatprep.subr.bf16.mxu0 0
  %2069 = vmatpush2.bf16.msra.mxu0 0
  %2070 = vmatprep.subr.bf16.mxu0 0
  %2071 = vmatpush2.bf16.msra.mxu0 0
  %2072 = vmatprep.subr.bf16.mxu0 0
  %2073 = vmatpush2.bf16.msra.mxu0 0
  %2074 = vmatprep.subr.bf16.mxu0 0
  %2075 = vmatpush2.bf16.msra.mxu0 0
  %2076 = vmatprep.mubr.bf16.mxu0 0
  %2077 = vmatmul.mubr.bf16.gmra.mxu0 %v2042
  %v2078 = vpop.f32.mrf.mxu0
  %v2079 = vadd.f32 0.0, %v2078
  %v2080 = vpop.f32.mrf.mxu0
  %v2081 = vpop.f32.mrf.mxu0
  %v2082 = vadd.f32 0.0, %v2081
  %v2083 = vpop.f32.mrf.mxu0
  %2084 = vdwg.mxu0
  %v2085 = vadd.f32 %v2035, %v2079
  %v2086 = vadd.f32 %v2036, %v2082
  %v2087 = vxor.u32 %v2085, 2147483648
  %v2088 = vxor.u32 %v2086, 2147483648
  %v2089 = vmul.f32 %v2087, 1.442695
  %v2090 = vpow.pop %v2089
  %v2091 = vmul.f32 %v2088, 1.442695
  %v2092 = vpow.pop %v2091
  %v2093 = vadd.f32 %v2090, 1.0
  %v2094 = vadd.f32 %v2092, 1.0
  %v2095 = vrcp.pop %v2093
  %v2096 = vmul.f32 1.0, %v2095
  %v2097 = vrcp.pop %v2094
  %v2098 = vmul.f32 1.0, %v2097
  %v2099 = vtanh.pop %v2085
  %v2100 = vtanh.pop %v2086
  %v2101 = vmul.f32 %v2096, %v2009
  %v2102 = vmul.f32 %v2098, %v2010
  %2105 = vrot.lane.b32.xlu0 %v2099, 64
  %v2106 = vpop.permute.xlu0 %2105
  %2107 = vrot.lane.b32.xlu0 %v2100, 64
  %v2108 = vpop.permute.xlu0 %2107
  %v2111 = vmul.f32 %v2096, %v2106
  %v2112 = vmul.f32 %v2098, %v2108
  %2115 = vrot.lane.b32.xlu0 %v2111, 32
  %v2116 = vpop.permute.xlu0 %2115
  %2117 = vrot.lane.b32.xlu0 %v2112, 32
  %v2118 = vpop.permute.xlu0 %2117
  %v2121 = vadd.f32 %v2101, %v2116
  %v2122 = vadd.f32 %v2102, %v2118
  %v2123 = vtanh.pop %v2121
  %v2124 = vtanh.pop %v2122
  %2127 = vrot.lane.b32.xlu0 %v2123, 64
  %v2128 = vpop.permute.xlu0 %2127
  %2129 = vrot.lane.b32.xlu0 %v2124, 64
  %v2130 = vpop.permute.xlu0 %2129
  %v2133 = vmul.f32 %v2096, %v2128
  %v2134 = vmul.f32 %v2098, %v2130
  %2137 = vrot.lane.b32.xlu0 %v2133, 32
  %v2138 = vpop.permute.xlu0 %2137
  %2139 = vrot.lane.b32.xlu0 %v2134, 32
  %v2140 = vpop.permute.xlu0 %2139
  %s2143 = scalar_lea.vmem [#allocation5], 96
  %2144 = vst.msk [vmem:[%s2143] sm:$0xff] %vm1361, %v2138
  %2145 = vst.msk [vmem:[%s2143 + $0x8] sm:$0xff] %vm1361, %v2140
  %s2146 = scalar_lea.vmem [#allocation4], 112
  %v2147 = vld [vmem:[%s2146] sm:$0xff]
  %v2148 = vld [vmem:[%s2146 + $0x8] sm:$0xff]
  %v2149 = vpack.c.bf16 %v2134, %v2133
  %2151 = vrot.lane.b32.xlu0 %v2149, 32
  %v2152 = vpop.permute.xlu0 %2151
  %v2154 = vsel %vm1361, %v2152, 0
  %2156 = vmatprep.subr.bf16.mxu0 0
  %2157 = vmatpush1.bf16.msra.mxu0 0
  %2158 = vmatprep.subr.bf16.mxu0 0
  %2159 = vmatpush1.bf16.msra.mxu0 0
  %2160 = vmatprep.subr.bf16.mxu0 0
  %2161 = vmatpush1.bf16.msra.mxu0 0
  %2162 = vmatprep.subr.bf16.mxu0 0
  %2163 = vmatpush1.bf16.msra.mxu0 0
  %2164 = vmatprep.subr.bf16.mxu0 0
  %2165 = vmatpush1.bf16.msra.mxu0 0
  %2166 = vmatprep.subr.bf16.mxu0 0
  %2167 = vmatpush1.bf16.msra.mxu0 0
  %2168 = vmatprep.subr.bf16.mxu0 0
  %2169 = vmatpush1.bf16.msra.mxu0 %v1358
  %2170 = vmatprep.subr.bf16.mxu0 0
  %2171 = vmatpush1.bf16.msra.mxu0 %v1357
  %2172 = vmatprep.subr.bf16.mxu0 0
  %2173 = vmatpush2.bf16.msra.mxu0 0
  %2174 = vmatprep.subr.bf16.mxu0 0
  %2175 = vmatpush2.bf16.msra.mxu0 0
  %2176 = vmatprep.subr.bf16.mxu0 0
  %2177 = vmatpush2.bf16.msra.mxu0 0
  %2178 = vmatprep.subr.bf16.mxu0 0
  %2179 = vmatpush2.bf16.msra.mxu0 0
  %2180 = vmatprep.subr.bf16.mxu0 0
  %2181 = vmatpush2.bf16.msra.mxu0 0
  %2182 = vmatprep.subr.bf16.mxu0 0
  %2183 = vmatpush2.bf16.msra.mxu0 0
  %2184 = vmatprep.subr.bf16.mxu0 0
  %2185 = vmatpush2.bf16.msra.mxu0 0
  %2186 = vmatprep.subr.bf16.mxu0 0
  %2187 = vmatpush2.bf16.msra.mxu0 0
  %2188 = vmatprep.mubr.bf16.mxu0 0
  %2189 = vmatmul.mubr.bf16.gmra.mxu0 %v2154
  %v2190 = vpop.f32.mrf.mxu0
  %v2191 = vadd.f32 0.0, %v2190
  %v2192 = vpop.f32.mrf.mxu0
  %v2193 = vpop.f32.mrf.mxu0
  %v2194 = vadd.f32 0.0, %v2193
  %v2195 = vpop.f32.mrf.mxu0
  %2196 = vdwg.mxu0
  %v2197 = vadd.f32 %v2147, %v2191
  %v2198 = vadd.f32 %v2148, %v2194
  %v2199 = vxor.u32 %v2197, 2147483648
  %v2200 = vxor.u32 %v2198, 2147483648
  %v2201 = vmul.f32 %v2199, 1.442695
  %v2202 = vpow.pop %v2201
  %v2203 = vmul.f32 %v2200, 1.442695
  %v2204 = vpow.pop %v2203
  %v2205 = vadd.f32 %v2202, 1.0
  %v2206 = vadd.f32 %v2204, 1.0
  %v2207 = vrcp.pop %v2205
  %v2208 = vmul.f32 1.0, %v2207
  %v2209 = vrcp.pop %v2206
  %v2210 = vmul.f32 1.0, %v2209
  %v2211 = vtanh.pop %v2197
  %v2212 = vtanh.pop %v2198
  %v2213 = vmul.f32 %v2208, %v2121
  %v2214 = vmul.f32 %v2210, %v2122
  %2217 = vrot.lane.b32.xlu0 %v2211, 64
  %v2218 = vpop.permute.xlu0 %2217
  %2219 = vrot.lane.b32.xlu0 %v2212, 64
  %v2220 = vpop.permute.xlu0 %2219
  %v2223 = vmul.f32 %v2208, %v2218
  %v2224 = vmul.f32 %v2210, %v2220
  %2227 = vrot.lane.b32.xlu0 %v2223, 32
  %v2228 = vpop.permute.xlu0 %2227
  %2229 = vrot.lane.b32.xlu0 %v2224, 32
  %v2230 = vpop.permute.xlu0 %2229
  %v2233 = vadd.f32 %v2213, %v2228
  %v2234 = vadd.f32 %v2214, %v2230
  %v2235 = vtanh.pop %v2233
  %v2236 = vtanh.pop %v2234
  %2239 = vrot.lane.b32.xlu0 %v2235, 64
  %v2240 = vpop.permute.xlu0 %2239
  %2241 = vrot.lane.b32.xlu0 %v2236, 64
  %v2242 = vpop.permute.xlu0 %2241
  %v2245 = vmul.f32 %v2208, %v2240
  %v2246 = vmul.f32 %v2210, %v2242
  %2249 = vrot.lane.b32.xlu0 %v2245, 32
  %v2250 = vpop.permute.xlu0 %2249
  %2251 = vrot.lane.b32.xlu0 %v2246, 32
  %v2252 = vpop.permute.xlu0 %2251
  %s2255 = scalar_lea.vmem [#allocation5], 112
  %2256 = vst.msk [vmem:[%s2255] sm:$0xff] %vm1361, %v2250
  %2257 = vst.msk [vmem:[%s2255 + $0x8] sm:$0xff] %vm1361, %v2252
  %s2258 = scalar_lea.vmem [#allocation4], 128
  %v2259 = vld [vmem:[%s2258] sm:$0xff]
  %v2260 = vld [vmem:[%s2258 + $0x8] sm:$0xff]
  %v2261 = vpack.c.bf16 %v2246, %v2245
  %2263 = vrot.lane.b32.xlu0 %v2261, 32
  %v2264 = vpop.permute.xlu0 %2263
  %v2266 = vsel %vm1361, %v2264, 0
  %2268 = vmatprep.subr.bf16.mxu0 0
  %2269 = vmatpush1.bf16.msra.mxu0 0
  %2270 = vmatprep.subr.bf16.mxu0 0
  %2271 = vmatpush1.bf16.msra.mxu0 0
  %2272 = vmatprep.subr.bf16.mxu0 0
  %2273 = vmatpush1.bf16.msra.mxu0 0
  %2274 = vmatprep.subr.bf16.mxu0 0
  %2275 = vmatpush1.bf16.msra.mxu0 0
  %2276 = vmatprep.subr.bf16.mxu0 0
  %2277 = vmatpush1.bf16.msra.mxu0 0
  %2278 = vmatprep.subr.bf16.mxu0 0
  %2279 = vmatpush1.bf16.msra.mxu0 0
  %2280 = vmatprep.subr.bf16.mxu0 0
  %2281 = vmatpush1.bf16.msra.mxu0 %v1358
  %2282 = vmatprep.subr.bf16.mxu0 0
  %2283 = vmatpush1.bf16.msra.mxu0 %v1357
  %2284 = vmatprep.subr.bf16.mxu0 0
  %2285 = vmatpush2.bf16.msra.mxu0 0
  %2286 = vmatprep.subr.bf16.mxu0 0
  %2287 = vmatpush2.bf16.msra.mxu0 0
  %2288 = vmatprep.subr.bf16.mxu0 0
  %2289 = vmatpush2.bf16.msra.mxu0 0
  %2290 = vmatprep.subr.bf16.mxu0 0
  %2291 = vmatpush2.bf16.msra.mxu0 0
  %2292 = vmatprep.subr.bf16.mxu0 0
  %2293 = vmatpush2.bf16.msra.mxu0 0
  %2294 = vmatprep.subr.bf16.mxu0 0
  %2295 = vmatpush2.bf16.msra.mxu0 0
  %2296 = vmatprep.subr.bf16.mxu0 0
  %2297 = vmatpush2.bf16.msra.mxu0 0
  %2298 = vmatprep.subr.bf16.mxu0 0
  %2299 = vmatpush2.bf16.msra.mxu0 0
  %2300 = vmatprep.mubr.bf16.mxu0 0
  %2301 = vmatmul.mubr.bf16.gmra.mxu0 %v2266
  %v2302 = vpop.f32.mrf.mxu0
  %v2303 = vadd.f32 0.0, %v2302
  %v2304 = vpop.f32.mrf.mxu0
  %v2305 = vpop.f32.mrf.mxu0
  %v2306 = vadd.f32 0.0, %v2305
  %v2307 = vpop.f32.mrf.mxu0
  %2308 = vdwg.mxu0
  %v2309 = vadd.f32 %v2259, %v2303
  %v2310 = vadd.f32 %v2260, %v2306
  %v2311 = vxor.u32 %v2309, 2147483648
  %v2312 = vxor.u32 %v2310, 2147483648
  %v2313 = vmul.f32 %v2311, 1.442695
  %v2314 = vpow.pop %v2313
  %v2315 = vmul.f32 %v2312, 1.442695
  %v2316 = vpow.pop %v2315
  %v2317 = vadd.f32 %v2314, 1.0
  %v2318 = vadd.f32 %v2316, 1.0
  %v2319 = vrcp.pop %v2317
  %v2320 = vmul.f32 1.0, %v2319
  %v2321 = vrcp.pop %v2318
  %v2322 = vmul.f32 1.0, %v2321
  %v2323 = vtanh.pop %v2309
  %v2324 = vtanh.pop %v2310
  %v2325 = vmul.f32 %v2320, %v2233
  %v2326 = vmul.f32 %v2322, %v2234
  %2329 = vrot.lane.b32.xlu0 %v2323, 64
  %v2330 = vpop.permute.xlu0 %2329
  %2331 = vrot.lane.b32.xlu0 %v2324, 64
  %v2332 = vpop.permute.xlu0 %2331
  %v2335 = vmul.f32 %v2320, %v2330
  %v2336 = vmul.f32 %v2322, %v2332
  %2339 = vrot.lane.b32.xlu0 %v2335, 32
  %v2340 = vpop.permute.xlu0 %2339
  %2341 = vrot.lane.b32.xlu0 %v2336, 32
  %v2342 = vpop.permute.xlu0 %2341
  %v2345 = vadd.f32 %v2325, %v2340
  %v2346 = vadd.f32 %v2326, %v2342
  %v2347 = vtanh.pop %v2345
  %v2348 = vtanh.pop %v2346
  %2351 = vrot.lane.b32.xlu0 %v2347, 64
  %v2352 = vpop.permute.xlu0 %2351
  %2353 = vrot.lane.b32.xlu0 %v2348, 64
  %v2354 = vpop.permute.xlu0 %2353
  %v2357 = vmul.f32 %v2320, %v2352
  %v2358 = vmul.f32 %v2322, %v2354
  %2361 = vrot.lane.b32.xlu0 %v2357, 32
  %v2362 = vpop.permute.xlu0 %2361
  %2363 = vrot.lane.b32.xlu0 %v2358, 32
  %v2364 = vpop.permute.xlu0 %2363
  %s2367 = scalar_lea.vmem [#allocation5], 128
  %2368 = vst.msk [vmem:[%s2367] sm:$0xff] %vm1361, %v2362
  %2369 = vst.msk [vmem:[%s2367 + $0x8] sm:$0xff] %vm1361, %v2364
  %s2370 = scalar_lea.vmem [#allocation4], 144
  %v2371 = vld [vmem:[%s2370] sm:$0xff]
  %v2372 = vld [vmem:[%s2370 + $0x8] sm:$0xff]
  %v2373 = vpack.c.bf16 %v2358, %v2357
  %2375 = vrot.lane.b32.xlu0 %v2373, 32
  %v2376 = vpop.permute.xlu0 %2375
  %v2378 = vsel %vm1361, %v2376, 0
  %2380 = vmatprep.subr.bf16.mxu0 0
  %2381 = vmatpush1.bf16.msra.mxu0 0
  %2382 = vmatprep.subr.bf16.mxu0 0
  %2383 = vmatpush1.bf16.msra.mxu0 0
  %2384 = vmatprep.subr.bf16.mxu0 0
  %2385 = vmatpush1.bf16.msra.mxu0 0
  %2386 = vmatprep.subr.bf16.mxu0 0
  %2387 = vmatpush1.bf16.msra.mxu0 0
  %2388 = vmatprep.subr.bf16.mxu0 0
  %2389 = vmatpush1.bf16.msra.mxu0 0
  %2390 = vmatprep.subr.bf16.mxu0 0
  %2391 = vmatpush1.bf16.msra.mxu0 0
  %2392 = vmatprep.subr.bf16.mxu0 0
  %2393 = vmatpush1.bf16.msra.mxu0 %v1358
  %2394 = vmatprep.subr.bf16.mxu0 0
  %2395 = vmatpush1.bf16.msra.mxu0 %v1357
  %2396 = vmatprep.subr.bf16.mxu0 0
  %2397 = vmatpush2.bf16.msra.mxu0 0
  %2398 = vmatprep.subr.bf16.mxu0 0
  %2399 = vmatpush2.bf16.msra.mxu0 0
  %2400 = vmatprep.subr.bf16.mxu0 0
  %2401 = vmatpush2.bf16.msra.mxu0 0
  %2402 = vmatprep.subr.bf16.mxu0 0
  %2403 = vmatpush2.bf16.msra.mxu0 0
  %2404 = vmatprep.subr.bf16.mxu0 0
  %2405 = vmatpush2.bf16.msra.mxu0 0
  %2406 = vmatprep.subr.bf16.mxu0 0
  %2407 = vmatpush2.bf16.msra.mxu0 0
  %2408 = vmatprep.subr.bf16.mxu0 0
  %2409 = vmatpush2.bf16.msra.mxu0 0
  %2410 = vmatprep.subr.bf16.mxu0 0
  %2411 = vmatpush2.bf16.msra.mxu0 0
  %2412 = vmatprep.mubr.bf16.mxu0 0
  %2413 = vmatmul.mubr.bf16.gmra.mxu0 %v2378
  %v2414 = vpop.f32.mrf.mxu0
  %v2415 = vadd.f32 0.0, %v2414
  %v2416 = vpop.f32.mrf.mxu0
  %v2417 = vpop.f32.mrf.mxu0
  %v2418 = vadd.f32 0.0, %v2417
  %v2419 = vpop.f32.mrf.mxu0
  %2420 = vdwg.mxu0
  %v2421 = vadd.f32 %v2371, %v2415
  %v2422 = vadd.f32 %v2372, %v2418
  %v2423 = vxor.u32 %v2421, 2147483648
  %v2424 = vxor.u32 %v2422, 2147483648
  %v2425 = vmul.f32 %v2423, 1.442695
  %v2426 = vpow.pop %v2425
  %v2427 = vmul.f32 %v2424, 1.442695
  %v2428 = vpow.pop %v2427
  %v2429 = vadd.f32 %v2426, 1.0
  %v2430 = vadd.f32 %v2428, 1.0
  %v2431 = vrcp.pop %v2429
  %v2432 = vmul.f32 1.0, %v2431
  %v2433 = vrcp.pop %v2430
  %v2434 = vmul.f32 1.0, %v2433
  %v2435 = vtanh.pop %v2421
  %v2436 = vtanh.pop %v2422
  %v2437 = vmul.f32 %v2432, %v2345
  %v2438 = vmul.f32 %v2434, %v2346
  %2441 = vrot.lane.b32.xlu0 %v2435, 64
  %v2442 = vpop.permute.xlu0 %2441
  %2443 = vrot.lane.b32.xlu0 %v2436, 64
  %v2444 = vpop.permute.xlu0 %2443
  %v2447 = vmul.f32 %v2432, %v2442
  %v2448 = vmul.f32 %v2434, %v2444
  %2451 = vrot.lane.b32.xlu0 %v2447, 32
  %v2452 = vpop.permute.xlu0 %2451
  %2453 = vrot.lane.b32.xlu0 %v2448, 32
  %v2454 = vpop.permute.xlu0 %2453
  %v2457 = vadd.f32 %v2437, %v2452
  %v2458 = vadd.f32 %v2438, %v2454
  %v2459 = vtanh.pop %v2457
  %v2460 = vtanh.pop %v2458
  %2463 = vrot.lane.b32.xlu0 %v2459, 64
  %v2464 = vpop.permute.xlu0 %2463
  %2465 = vrot.lane.b32.xlu0 %v2460, 64
  %v2466 = vpop.permute.xlu0 %2465
  %v2469 = vmul.f32 %v2432, %v2464
  %v2470 = vmul.f32 %v2434, %v2466
  %2473 = vrot.lane.b32.xlu0 %v2469, 32
  %v2474 = vpop.permute.xlu0 %2473
  %2475 = vrot.lane.b32.xlu0 %v2470, 32
  %v2476 = vpop.permute.xlu0 %2475
  %s2479 = scalar_lea.vmem [#allocation5], 144
  %2480 = vst.msk [vmem:[%s2479] sm:$0xff] %vm1361, %v2474
  %2481 = vst.msk [vmem:[%s2479 + $0x8] sm:$0xff] %vm1361, %v2476
  %s2482 = scalar_lea.vmem [#allocation4], 160
  %v2483 = vld [vmem:[%s2482] sm:$0xff]
  %v2484 = vld [vmem:[%s2482 + $0x8] sm:$0xff]
  %v2485 = vpack.c.bf16 %v2470, %v2469
  %2487 = vrot.lane.b32.xlu0 %v2485, 32
  %v2488 = vpop.permute.xlu0 %2487
  %v2490 = vsel %vm1361, %v2488, 0
  %2492 = vmatprep.subr.bf16.mxu0 0
  %2493 = vmatpush1.bf16.msra.mxu0 0
  %2494 = vmatprep.subr.bf16.mxu0 0
  %2495 = vmatpush1.bf16.msra.mxu0 0
  %2496 = vmatprep.subr.bf16.mxu0 0
  %2497 = vmatpush1.bf16.msra.mxu0 0
  %2498 = vmatprep.subr.bf16.mxu0 0
  %2499 = vmatpush1.bf16.msra.mxu0 0
  %2500 = vmatprep.subr.bf16.mxu0 0
  %2501 = vmatpush1.bf16.msra.mxu0 0
  %2502 = vmatprep.subr.bf16.mxu0 0
  %2503 = vmatpush1.bf16.msra.mxu0 0
  %2504 = vmatprep.subr.bf16.mxu0 0
  %2505 = vmatpush1.bf16.msra.mxu0 %v1358
  %2506 = vmatprep.subr.bf16.mxu0 0
  %2507 = vmatpush1.bf16.msra.mxu0 %v1357
  %2508 = vmatprep.subr.bf16.mxu0 0
  %2509 = vmatpush2.bf16.msra.mxu0 0
  %2510 = vmatprep.subr.bf16.mxu0 0
  %2511 = vmatpush2.bf16.msra.mxu0 0
  %2512 = vmatprep.subr.bf16.mxu0 0
  %2513 = vmatpush2.bf16.msra.mxu0 0
  %2514 = vmatprep.subr.bf16.mxu0 0
  %2515 = vmatpush2.bf16.msra.mxu0 0
  %2516 = vmatprep.subr.bf16.mxu0 0
  %2517 = vmatpush2.bf16.msra.mxu0 0
  %2518 = vmatprep.subr.bf16.mxu0 0
  %2519 = vmatpush2.bf16.msra.mxu0 0
  %2520 = vmatprep.subr.bf16.mxu0 0
  %2521 = vmatpush2.bf16.msra.mxu0 0
  %2522 = vmatprep.subr.bf16.mxu0 0
  %2523 = vmatpush2.bf16.msra.mxu0 0
  %2524 = vmatprep.mubr.bf16.mxu0 0
  %2525 = vmatmul.mubr.bf16.gmra.mxu0 %v2490
  %v2526 = vpop.f32.mrf.mxu0
  %v2527 = vadd.f32 0.0, %v2526
  %v2528 = vpop.f32.mrf.mxu0
  %v2529 = vpop.f32.mrf.mxu0
  %v2530 = vadd.f32 0.0, %v2529
  %v2531 = vpop.f32.mrf.mxu0
  %2532 = vdwg.mxu0
  %v2533 = vadd.f32 %v2483, %v2527
  %v2534 = vadd.f32 %v2484, %v2530
  %v2535 = vxor.u32 %v2533, 2147483648
  %v2536 = vxor.u32 %v2534, 2147483648
  %v2537 = vmul.f32 %v2535, 1.442695
  %v2538 = vpow.pop %v2537
  %v2539 = vmul.f32 %v2536, 1.442695
  %v2540 = vpow.pop %v2539
  %v2541 = vadd.f32 %v2538, 1.0
  %v2542 = vadd.f32 %v2540, 1.0
  %v2543 = vrcp.pop %v2541
  %v2544 = vmul.f32 1.0, %v2543
  %v2545 = vrcp.pop %v2542
  %v2546 = vmul.f32 1.0, %v2545
  %v2547 = vtanh.pop %v2533
  %v2548 = vtanh.pop %v2534
  %v2549 = vmul.f32 %v2544, %v2457
  %v2550 = vmul.f32 %v2546, %v2458
  %2553 = vrot.lane.b32.xlu0 %v2547, 64
  %v2554 = vpop.permute.xlu0 %2553
  %2555 = vrot.lane.b32.xlu0 %v2548, 64
  %v2556 = vpop.permute.xlu0 %2555
  %v2559 = vmul.f32 %v2544, %v2554
  %v2560 = vmul.f32 %v2546, %v2556
  %2563 = vrot.lane.b32.xlu0 %v2559, 32
  %v2564 = vpop.permute.xlu0 %2563
  %2565 = vrot.lane.b32.xlu0 %v2560, 32
  %v2566 = vpop.permute.xlu0 %2565
  %v2569 = vadd.f32 %v2549, %v2564
  %v2570 = vadd.f32 %v2550, %v2566
  %v2571 = vtanh.pop %v2569
  %v2572 = vtanh.pop %v2570
  %2575 = vrot.lane.b32.xlu0 %v2571, 64
  %v2576 = vpop.permute.xlu0 %2575
  %2577 = vrot.lane.b32.xlu0 %v2572, 64
  %v2578 = vpop.permute.xlu0 %2577
  %v2581 = vmul.f32 %v2544, %v2576
  %v2582 = vmul.f32 %v2546, %v2578
  %2585 = vrot.lane.b32.xlu0 %v2581, 32
  %v2586 = vpop.permute.xlu0 %2585
  %2587 = vrot.lane.b32.xlu0 %v2582, 32
  %v2588 = vpop.permute.xlu0 %2587
  %s2591 = scalar_lea.vmem [#allocation5], 160
  %2592 = vst.msk [vmem:[%s2591] sm:$0xff] %vm1361, %v2586
  %2593 = vst.msk [vmem:[%s2591 + $0x8] sm:$0xff] %vm1361, %v2588
  %s2594 = scalar_lea.vmem [#allocation4], 176
  %v2595 = vld [vmem:[%s2594] sm:$0xff]
  %v2596 = vld [vmem:[%s2594 + $0x8] sm:$0xff]
  %v2597 = vpack.c.bf16 %v2582, %v2581
  %2599 = vrot.lane.b32.xlu0 %v2597, 32
  %v2600 = vpop.permute.xlu0 %2599
  %v2602 = vsel %vm1361, %v2600, 0
  %2604 = vmatprep.subr.bf16.mxu0 0
  %2605 = vmatpush1.bf16.msra.mxu0 0
  %2606 = vmatprep.subr.bf16.mxu0 0
  %2607 = vmatpush1.bf16.msra.mxu0 0
  %2608 = vmatprep.subr.bf16.mxu0 0
  %2609 = vmatpush1.bf16.msra.mxu0 0
  %2610 = vmatprep.subr.bf16.mxu0 0
  %2611 = vmatpush1.bf16.msra.mxu0 0
  %2612 = vmatprep.subr.bf16.mxu0 0
  %2613 = vmatpush1.bf16.msra.mxu0 0
  %2614 = vmatprep.subr.bf16.mxu0 0
  %2615 = vmatpush1.bf16.msra.mxu0 0
  %2616 = vmatprep.subr.bf16.mxu0 0
  %2617 = vmatpush1.bf16.msra.mxu0 %v1358
  %2618 = vmatprep.subr.bf16.mxu0 0
  %2619 = vmatpush1.bf16.msra.mxu0 %v1357
  %2620 = vmatprep.subr.bf16.mxu0 0
  %2621 = vmatpush2.bf16.msra.mxu0 0
  %2622 = vmatprep.subr.bf16.mxu0 0
  %2623 = vmatpush2.bf16.msra.mxu0 0
  %2624 = vmatprep.subr.bf16.mxu0 0
  %2625 = vmatpush2.bf16.msra.mxu0 0
  %2626 = vmatprep.subr.bf16.mxu0 0
  %2627 = vmatpush2.bf16.msra.mxu0 0
  %2628 = vmatprep.subr.bf16.mxu0 0
  %2629 = vmatpush2.bf16.msra.mxu0 0
  %2630 = vmatprep.subr.bf16.mxu0 0
  %2631 = vmatpush2.bf16.msra.mxu0 0
  %2632 = vmatprep.subr.bf16.mxu0 0
  %2633 = vmatpush2.bf16.msra.mxu0 0
  %2634 = vmatprep.subr.bf16.mxu0 0
  %2635 = vmatpush2.bf16.msra.mxu0 0
  %2636 = vmatprep.mubr.bf16.mxu0 0
  %2637 = vmatmul.mubr.bf16.gmra.mxu0 %v2602
  %v2638 = vpop.f32.mrf.mxu0
  %v2639 = vadd.f32 0.0, %v2638
  %v2640 = vpop.f32.mrf.mxu0
  %v2641 = vpop.f32.mrf.mxu0
  %v2642 = vadd.f32 0.0, %v2641
  %v2643 = vpop.f32.mrf.mxu0
  %2644 = vdwg.mxu0
  %v2645 = vadd.f32 %v2595, %v2639
  %v2646 = vadd.f32 %v2596, %v2642
  %v2647 = vxor.u32 %v2645, 2147483648
  %v2648 = vxor.u32 %v2646, 2147483648
  %v2649 = vmul.f32 %v2647, 1.442695
  %v2650 = vpow.pop %v2649
  %v2651 = vmul.f32 %v2648, 1.442695
  %v2652 = vpow.pop %v2651
  %v2653 = vadd.f32 %v2650, 1.0
  %v2654 = vadd.f32 %v2652, 1.0
  %v2655 = vrcp.pop %v2653
  %v2656 = vmul.f32 1.0, %v2655
  %v2657 = vrcp.pop %v2654
  %v2658 = vmul.f32 1.0, %v2657
  %v2659 = vtanh.pop %v2645
  %v2660 = vtanh.pop %v2646
  %v2661 = vmul.f32 %v2656, %v2569
  %v2662 = vmul.f32 %v2658, %v2570
  %2665 = vrot.lane.b32.xlu0 %v2659, 64
  %v2666 = vpop.permute.xlu0 %2665
  %2667 = vrot.lane.b32.xlu0 %v2660, 64
  %v2668 = vpop.permute.xlu0 %2667
  %v2671 = vmul.f32 %v2656, %v2666
  %v2672 = vmul.f32 %v2658, %v2668
  %2675 = vrot.lane.b32.xlu0 %v2671, 32
  %v2676 = vpop.permute.xlu0 %2675
  %2677 = vrot.lane.b32.xlu0 %v2672, 32
  %v2678 = vpop.permute.xlu0 %2677
  %v2681 = vadd.f32 %v2661, %v2676
  %v2682 = vadd.f32 %v2662, %v2678
  %v2683 = vtanh.pop %v2681
  %v2684 = vtanh.pop %v2682
  %2687 = vrot.lane.b32.xlu0 %v2683, 64
  %v2688 = vpop.permute.xlu0 %2687
  %2689 = vrot.lane.b32.xlu0 %v2684, 64
  %v2690 = vpop.permute.xlu0 %2689
  %v2693 = vmul.f32 %v2656, %v2688
  %v2694 = vmul.f32 %v2658, %v2690
  %2697 = vrot.lane.b32.xlu0 %v2693, 32
  %v2698 = vpop.permute.xlu0 %2697
  %2699 = vrot.lane.b32.xlu0 %v2694, 32
  %v2700 = vpop.permute.xlu0 %2699
  %s2703 = scalar_lea.vmem [#allocation5], 176
  %2704 = vst.msk [vmem:[%s2703] sm:$0xff] %vm1361, %v2698
  %2705 = vst.msk [vmem:[%s2703 + $0x8] sm:$0xff] %vm1361, %v2700
  %s2706 = scalar_lea.vmem [#allocation4], 192
  %v2707 = vld [vmem:[%s2706] sm:$0xff]
  %v2708 = vld [vmem:[%s2706 + $0x8] sm:$0xff]
  %v2709 = vpack.c.bf16 %v2694, %v2693
  %2711 = vrot.lane.b32.xlu0 %v2709, 32
  %v2712 = vpop.permute.xlu0 %2711
  %v2714 = vsel %vm1361, %v2712, 0
  %2716 = vmatprep.subr.bf16.mxu0 0
  %2717 = vmatpush1.bf16.msra.mxu0 0
  %2718 = vmatprep.subr.bf16.mxu0 0
  %2719 = vmatpush1.bf16.msra.mxu0 0
  %2720 = vmatprep.subr.bf16.mxu0 0
  %2721 = vmatpush1.bf16.msra.mxu0 0
  %2722 = vmatprep.subr.bf16.mxu0 0
  %2723 = vmatpush1.bf16.msra.mxu0 0
  %2724 = vmatprep.subr.bf16.mxu0 0
  %2725 = vmatpush1.bf16.msra.mxu0 0
  %2726 = vmatprep.subr.bf16.mxu0 0
  %2727 = vmatpush1.bf16.msra.mxu0 0
  %2728 = vmatprep.subr.bf16.mxu0 0
  %2729 = vmatpush1.bf16.msra.mxu0 %v1358
  %2730 = vmatprep.subr.bf16.mxu0 0
  %2731 = vmatpush1.bf16.msra.mxu0 %v1357
  %2732 = vmatprep.subr.bf16.mxu0 0
  %2733 = vmatpush2.bf16.msra.mxu0 0
  %2734 = vmatprep.subr.bf16.mxu0 0
  %2735 = vmatpush2.bf16.msra.mxu0 0
  %2736 = vmatprep.subr.bf16.mxu0 0
  %2737 = vmatpush2.bf16.msra.mxu0 0
  %2738 = vmatprep.subr.bf16.mxu0 0
  %2739 = vmatpush2.bf16.msra.mxu0 0
  %2740 = vmatprep.subr.bf16.mxu0 0
  %2741 = vmatpush2.bf16.msra.mxu0 0
  %2742 = vmatprep.subr.bf16.mxu0 0
  %2743 = vmatpush2.bf16.msra.mxu0 0
  %2744 = vmatprep.subr.bf16.mxu0 0
  %2745 = vmatpush2.bf16.msra.mxu0 0
  %2746 = vmatprep.subr.bf16.mxu0 0
  %2747 = vmatpush2.bf16.msra.mxu0 0
  %2748 = vmatprep.mubr.bf16.mxu0 0
  %2749 = vmatmul.mubr.bf16.gmra.mxu0 %v2714
  %v2750 = vpop.f32.mrf.mxu0
  %v2751 = vadd.f32 0.0, %v2750
  %v2752 = vpop.f32.mrf.mxu0
  %v2753 = vpop.f32.mrf.mxu0
  %v2754 = vadd.f32 0.0, %v2753
  %v2755 = vpop.f32.mrf.mxu0
  %2756 = vdwg.mxu0
  %v2757 = vadd.f32 %v2707, %v2751
  %v2758 = vadd.f32 %v2708, %v2754
  %v2759 = vxor.u32 %v2757, 2147483648
  %v2760 = vxor.u32 %v2758, 2147483648
  %v2761 = vmul.f32 %v2759, 1.442695
  %v2762 = vpow.pop %v2761
  %v2763 = vmul.f32 %v2760, 1.442695
  %v2764 = vpow.pop %v2763
  %v2765 = vadd.f32 %v2762, 1.0
  %v2766 = vadd.f32 %v2764, 1.0
  %v2767 = vrcp.pop %v2765
  %v2768 = vmul.f32 1.0, %v2767
  %v2769 = vrcp.pop %v2766
  %v2770 = vmul.f32 1.0, %v2769
  %v2771 = vtanh.pop %v2757
  %v2772 = vtanh.pop %v2758
  %v2773 = vmul.f32 %v2768, %v2681
  %v2774 = vmul.f32 %v2770, %v2682
  %2777 = vrot.lane.b32.xlu0 %v2771, 64
  %v2778 = vpop.permute.xlu0 %2777
  %2779 = vrot.lane.b32.xlu0 %v2772, 64
  %v2780 = vpop.permute.xlu0 %2779
  %v2783 = vmul.f32 %v2768, %v2778
  %v2784 = vmul.f32 %v2770, %v2780
  %2787 = vrot.lane.b32.xlu0 %v2783, 32
  %v2788 = vpop.permute.xlu0 %2787
  %2789 = vrot.lane.b32.xlu0 %v2784, 32
  %v2790 = vpop.permute.xlu0 %2789
  %v2793 = vadd.f32 %v2773, %v2788
  %v2794 = vadd.f32 %v2774, %v2790
  %v2795 = vtanh.pop %v2793
  %v2796 = vtanh.pop %v2794
  %2799 = vrot.lane.b32.xlu0 %v2795, 64
  %v2800 = vpop.permute.xlu0 %2799
  %2801 = vrot.lane.b32.xlu0 %v2796, 64
  %v2802 = vpop.permute.xlu0 %2801
  %v2805 = vmul.f32 %v2768, %v2800
  %v2806 = vmul.f32 %v2770, %v2802
  %2809 = vrot.lane.b32.xlu0 %v2805, 32
  %v2810 = vpop.permute.xlu0 %2809
  %2811 = vrot.lane.b32.xlu0 %v2806, 32
  %v2812 = vpop.permute.xlu0 %2811
  %s2815 = scalar_lea.vmem [#allocation5], 192
  %2816 = vst.msk [vmem:[%s2815] sm:$0xff] %vm1361, %v2810
  %2817 = vst.msk [vmem:[%s2815 + $0x8] sm:$0xff] %vm1361, %v2812
  %s2818 = scalar_lea.vmem [#allocation4], 208
  %v2819 = vld [vmem:[%s2818] sm:$0xff]
  %v2820 = vld [vmem:[%s2818 + $0x8] sm:$0xff]
  %v2821 = vpack.c.bf16 %v2806, %v2805
  %2823 = vrot.lane.b32.xlu0 %v2821, 32
  %v2824 = vpop.permute.xlu0 %2823
  %v2826 = vsel %vm1361, %v2824, 0
  %2828 = vmatprep.subr.bf16.mxu0 0
  %2829 = vmatpush1.bf16.msra.mxu0 0
  %2830 = vmatprep.subr.bf16.mxu0 0
  %2831 = vmatpush1.bf16.msra.mxu0 0
  %2832 = vmatprep.subr.bf16.mxu0 0
  %2833 = vmatpush1.bf16.msra.mxu0 0
  %2834 = vmatprep.subr.bf16.mxu0 0
  %2835 = vmatpush1.bf16.msra.mxu0 0
  %2836 = vmatprep.subr.bf16.mxu0 0
  %2837 = vmatpush1.bf16.msra.mxu0 0
  %2838 = vmatprep.subr.bf16.mxu0 0
  %2839 = vmatpush1.bf16.msra.mxu0 0
  %2840 = vmatprep.subr.bf16.mxu0 0
  %2841 = vmatpush1.bf16.msra.mxu0 %v1358
  %2842 = vmatprep.subr.bf16.mxu0 0
  %2843 = vmatpush1.bf16.msra.mxu0 %v1357
  %2844 = vmatprep.subr.bf16.mxu0 0
  %2845 = vmatpush2.bf16.msra.mxu0 0
  %2846 = vmatprep.subr.bf16.mxu0 0
  %2847 = vmatpush2.bf16.msra.mxu0 0
  %2848 = vmatprep.subr.bf16.mxu0 0
  %2849 = vmatpush2.bf16.msra.mxu0 0
  %2850 = vmatprep.subr.bf16.mxu0 0
  %2851 = vmatpush2.bf16.msra.mxu0 0
  %2852 = vmatprep.subr.bf16.mxu0 0
  %2853 = vmatpush2.bf16.msra.mxu0 0
  %2854 = vmatprep.subr.bf16.mxu0 0
  %2855 = vmatpush2.bf16.msra.mxu0 0
  %2856 = vmatprep.subr.bf16.mxu0 0
  %2857 = vmatpush2.bf16.msra.mxu0 0
  %2858 = vmatprep.subr.bf16.mxu0 0
  %2859 = vmatpush2.bf16.msra.mxu0 0
  %2860 = vmatprep.mubr.bf16.mxu0 0
  %2861 = vmatmul.mubr.bf16.gmra.mxu0 %v2826
  %v2862 = vpop.f32.mrf.mxu0
  %v2863 = vadd.f32 0.0, %v2862
  %v2864 = vpop.f32.mrf.mxu0
  %v2865 = vpop.f32.mrf.mxu0
  %v2866 = vadd.f32 0.0, %v2865
  %v2867 = vpop.f32.mrf.mxu0
  %2868 = vdwg.mxu0
  %v2869 = vadd.f32 %v2819, %v2863
  %v2870 = vadd.f32 %v2820, %v2866
  %v2871 = vxor.u32 %v2869, 2147483648
  %v2872 = vxor.u32 %v2870, 2147483648
  %v2873 = vmul.f32 %v2871, 1.442695
  %v2874 = vpow.pop %v2873
  %v2875 = vmul.f32 %v2872, 1.442695
  %v2876 = vpow.pop %v2875
  %v2877 = vadd.f32 %v2874, 1.0
  %v2878 = vadd.f32 %v2876, 1.0
  %v2879 = vrcp.pop %v2877
  %v2880 = vmul.f32 1.0, %v2879
  %v2881 = vrcp.pop %v2878
  %v2882 = vmul.f32 1.0, %v2881
  %v2883 = vtanh.pop %v2869
  %v2884 = vtanh.pop %v2870
  %v2885 = vmul.f32 %v2880, %v2793
  %v2886 = vmul.f32 %v2882, %v2794
  %2889 = vrot.lane.b32.xlu0 %v2883, 64
  %v2890 = vpop.permute.xlu0 %2889
  %2891 = vrot.lane.b32.xlu0 %v2884, 64
  %v2892 = vpop.permute.xlu0 %2891
  %v2895 = vmul.f32 %v2880, %v2890
  %v2896 = vmul.f32 %v2882, %v2892
  %2899 = vrot.lane.b32.xlu0 %v2895, 32
  %v2900 = vpop.permute.xlu0 %2899
  %2901 = vrot.lane.b32.xlu0 %v2896, 32
  %v2902 = vpop.permute.xlu0 %2901
  %v2905 = vadd.f32 %v2885, %v2900
  %v2906 = vadd.f32 %v2886, %v2902
  %v2907 = vtanh.pop %v2905
  %v2908 = vtanh.pop %v2906
  %2911 = vrot.lane.b32.xlu0 %v2907, 64
  %v2912 = vpop.permute.xlu0 %2911
  %2913 = vrot.lane.b32.xlu0 %v2908, 64
  %v2914 = vpop.permute.xlu0 %2913
  %v2917 = vmul.f32 %v2880, %v2912
  %v2918 = vmul.f32 %v2882, %v2914
  %2921 = vrot.lane.b32.xlu0 %v2917, 32
  %v2922 = vpop.permute.xlu0 %2921
  %2923 = vrot.lane.b32.xlu0 %v2918, 32
  %v2924 = vpop.permute.xlu0 %2923
  %s2927 = scalar_lea.vmem [#allocation5], 208
  %2928 = vst.msk [vmem:[%s2927] sm:$0xff] %vm1361, %v2922
  %2929 = vst.msk [vmem:[%s2927 + $0x8] sm:$0xff] %vm1361, %v2924
  %s2930 = scalar_lea.vmem [#allocation4], 224
  %v2931 = vld [vmem:[%s2930] sm:$0xff]
  %v2932 = vld [vmem:[%s2930 + $0x8] sm:$0xff]
  %v2933 = vpack.c.bf16 %v2918, %v2917
  %2935 = vrot.lane.b32.xlu0 %v2933, 32
  %v2936 = vpop.permute.xlu0 %2935
  %v2938 = vsel %vm1361, %v2936, 0
  %2940 = vmatprep.subr.bf16.mxu0 0
  %2941 = vmatpush1.bf16.msra.mxu0 0
  %2942 = vmatprep.subr.bf16.mxu0 0
  %2943 = vmatpush1.bf16.msra.mxu0 0
  %2944 = vmatprep.subr.bf16.mxu0 0
  %2945 = vmatpush1.bf16.msra.mxu0 0
  %2946 = vmatprep.subr.bf16.mxu0 0
  %2947 = vmatpush1.bf16.msra.mxu0 0
  %2948 = vmatprep.subr.bf16.mxu0 0
  %2949 = vmatpush1.bf16.msra.mxu0 0
  %2950 = vmatprep.subr.bf16.mxu0 0
  %2951 = vmatpush1.bf16.msra.mxu0 0
  %2952 = vmatprep.subr.bf16.mxu0 0
  %2953 = vmatpush1.bf16.msra.mxu0 %v1358
  %2954 = vmatprep.subr.bf16.mxu0 0
  %2955 = vmatpush1.bf16.msra.mxu0 %v1357
  %2956 = vmatprep.subr.bf16.mxu0 0
  %2957 = vmatpush2.bf16.msra.mxu0 0
  %2958 = vmatprep.subr.bf16.mxu0 0
  %2959 = vmatpush2.bf16.msra.mxu0 0
  %2960 = vmatprep.subr.bf16.mxu0 0
  %2961 = vmatpush2.bf16.msra.mxu0 0
  %2962 = vmatprep.subr.bf16.mxu0 0
  %2963 = vmatpush2.bf16.msra.mxu0 0
  %2964 = vmatprep.subr.bf16.mxu0 0
  %2965 = vmatpush2.bf16.msra.mxu0 0
  %2966 = vmatprep.subr.bf16.mxu0 0
  %2967 = vmatpush2.bf16.msra.mxu0 0
  %2968 = vmatprep.subr.bf16.mxu0 0
  %2969 = vmatpush2.bf16.msra.mxu0 0
  %2970 = vmatprep.subr.bf16.mxu0 0
  %2971 = vmatpush2.bf16.msra.mxu0 0
  %2972 = vmatprep.mubr.bf16.mxu0 0
  %2973 = vmatmul.mubr.bf16.gmra.mxu0 %v2938
  %v2974 = vpop.f32.mrf.mxu0
  %v2975 = vadd.f32 0.0, %v2974
  %v2976 = vpop.f32.mrf.mxu0
  %v2977 = vpop.f32.mrf.mxu0
  %v2978 = vadd.f32 0.0, %v2977
  %v2979 = vpop.f32.mrf.mxu0
  %2980 = vdwg.mxu0
  %v2981 = vadd.f32 %v2931, %v2975
  %v2982 = vadd.f32 %v2932, %v2978
  %v2983 = vxor.u32 %v2981, 2147483648
  %v2984 = vxor.u32 %v2982, 2147483648
  %v2985 = vmul.f32 %v2983, 1.442695
  %v2986 = vpow.pop %v2985
  %v2987 = vmul.f32 %v2984, 1.442695
  %v2988 = vpow.pop %v2987
  %v2989 = vadd.f32 %v2986, 1.0
  %v2990 = vadd.f32 %v2988, 1.0
  %v2991 = vrcp.pop %v2989
  %v2992 = vmul.f32 1.0, %v2991
  %v2993 = vrcp.pop %v2990
  %v2994 = vmul.f32 1.0, %v2993
  %v2995 = vtanh.pop %v2981
  %v2996 = vtanh.pop %v2982
  %v2997 = vmul.f32 %v2992, %v2905
  %v2998 = vmul.f32 %v2994, %v2906
  %3001 = vrot.lane.b32.xlu0 %v2995, 64
  %v3002 = vpop.permute.xlu0 %3001
  %3003 = vrot.lane.b32.xlu0 %v2996, 64
  %v3004 = vpop.permute.xlu0 %3003
  %v3007 = vmul.f32 %v2992, %v3002
  %v3008 = vmul.f32 %v2994, %v3004
  %3011 = vrot.lane.b32.xlu0 %v3007, 32
  %v3012 = vpop.permute.xlu0 %3011
  %3013 = vrot.lane.b32.xlu0 %v3008, 32
  %v3014 = vpop.permute.xlu0 %3013
  %v3017 = vadd.f32 %v2997, %v3012
  %v3018 = vadd.f32 %v2998, %v3014
  %v3019 = vtanh.pop %v3017
  %v3020 = vtanh.pop %v3018
  %3023 = vrot.lane.b32.xlu0 %v3019, 64
  %v3024 = vpop.permute.xlu0 %3023
  %3025 = vrot.lane.b32.xlu0 %v3020, 64
  %v3026 = vpop.permute.xlu0 %3025
  %v3029 = vmul.f32 %v2992, %v3024
  %v3030 = vmul.f32 %v2994, %v3026
  %3033 = vrot.lane.b32.xlu0 %v3029, 32
  %v3034 = vpop.permute.xlu0 %3033
  %3035 = vrot.lane.b32.xlu0 %v3030, 32
  %v3036 = vpop.permute.xlu0 %3035
  %s3039 = scalar_lea.vmem [#allocation5], 224
  %3040 = vst.msk [vmem:[%s3039] sm:$0xff] %vm1361, %v3034
  %3041 = vst.msk [vmem:[%s3039 + $0x8] sm:$0xff] %vm1361, %v3036
  %s3042 = scalar_lea.vmem [#allocation4], 240
  %v3043 = vld [vmem:[%s3042] sm:$0xff]
  %v3044 = vld [vmem:[%s3042 + $0x8] sm:$0xff]
  %v3045 = vpack.c.bf16 %v3030, %v3029
  %3047 = vrot.lane.b32.xlu0 %v3045, 32
  %v3048 = vpop.permute.xlu0 %3047
  %v3050 = vsel %vm1361, %v3048, 0
  %3052 = vmatprep.subr.bf16.mxu0 0
  %3053 = vmatpush1.bf16.msra.mxu0 0
  %3054 = vmatprep.subr.bf16.mxu0 0
  %3055 = vmatpush1.bf16.msra.mxu0 0
  %3056 = vmatprep.subr.bf16.mxu0 0
  %3057 = vmatpush1.bf16.msra.mxu0 0
  %3058 = vmatprep.subr.bf16.mxu0 0
  %3059 = vmatpush1.bf16.msra.mxu0 0
  %3060 = vmatprep.subr.bf16.mxu0 0
  %3061 = vmatpush1.bf16.msra.mxu0 0
  %3062 = vmatprep.subr.bf16.mxu0 0
  %3063 = vmatpush1.bf16.msra.mxu0 0
  %3064 = vmatprep.subr.bf16.mxu0 0
  %3065 = vmatpush1.bf16.msra.mxu0 %v1358
  %3066 = vmatprep.subr.bf16.mxu0 0
  %3067 = vmatpush1.bf16.msra.mxu0 %v1357
  %3068 = vmatprep.subr.bf16.mxu0 0
  %3069 = vmatpush2.bf16.msra.mxu0 0
  %3070 = vmatprep.subr.bf16.mxu0 0
  %3071 = vmatpush2.bf16.msra.mxu0 0
  %3072 = vmatprep.subr.bf16.mxu0 0
  %3073 = vmatpush2.bf16.msra.mxu0 0
  %3074 = vmatprep.subr.bf16.mxu0 0
  %3075 = vmatpush2.bf16.msra.mxu0 0
  %3076 = vmatprep.subr.bf16.mxu0 0
  %3077 = vmatpush2.bf16.msra.mxu0 0
  %3078 = vmatprep.subr.bf16.mxu0 0
  %3079 = vmatpush2.bf16.msra.mxu0 0
  %3080 = vmatprep.subr.bf16.mxu0 0
  %3081 = vmatpush2.bf16.msra.mxu0 0
  %3082 = vmatprep.subr.bf16.mxu0 0
  %3083 = vmatpush2.bf16.msra.mxu0 0
  %3084 = vmatprep.mubr.bf16.mxu0 0
  %3085 = vmatmul.mubr.bf16.gmra.mxu0 %v3050
  %v3086 = vpop.f32.mrf.mxu0
  %v3087 = vadd.f32 0.0, %v3086
  %v3088 = vpop.f32.mrf.mxu0
  %v3089 = vpop.f32.mrf.mxu0
  %v3090 = vadd.f32 0.0, %v3089
  %v3091 = vpop.f32.mrf.mxu0
  %3092 = vdwg.mxu0
  %v3093 = vadd.f32 %v3043, %v3087
  %v3094 = vadd.f32 %v3044, %v3090
  %v3095 = vxor.u32 %v3093, 2147483648
  %v3096 = vxor.u32 %v3094, 2147483648
  %v3097 = vmul.f32 %v3095, 1.442695
  %v3098 = vpow.pop %v3097
  %v3099 = vmul.f32 %v3096, 1.442695
  %v3100 = vpow.pop %v3099
  %v3101 = vadd.f32 %v3098, 1.0
  %v3102 = vadd.f32 %v3100, 1.0
  %v3103 = vrcp.pop %v3101
  %v3104 = vmul.f32 1.0, %v3103
  %v3105 = vrcp.pop %v3102
  %v3106 = vmul.f32 1.0, %v3105
  %v3107 = vtanh.pop %v3093
  %v3108 = vtanh.pop %v3094
  %v3109 = vmul.f32 %v3104, %v3017
  %v3110 = vmul.f32 %v3106, %v3018
  %3113 = vrot.lane.b32.xlu0 %v3107, 64
  %v3114 = vpop.permute.xlu0 %3113
  %3115 = vrot.lane.b32.xlu0 %v3108, 64
  %v3116 = vpop.permute.xlu0 %3115
  %v3119 = vmul.f32 %v3104, %v3114
  %v3120 = vmul.f32 %v3106, %v3116
  %3123 = vrot.lane.b32.xlu0 %v3119, 32
  %v3124 = vpop.permute.xlu0 %3123
  %3125 = vrot.lane.b32.xlu0 %v3120, 32
  %v3126 = vpop.permute.xlu0 %3125
  %v3129 = vadd.f32 %v3109, %v3124
  %v3130 = vadd.f32 %v3110, %v3126
  %v3131 = vtanh.pop %v3129
  %v3132 = vtanh.pop %v3130
  %3135 = vrot.lane.b32.xlu0 %v3131, 64
  %v3136 = vpop.permute.xlu0 %3135
  %3137 = vrot.lane.b32.xlu0 %v3132, 64
  %v3138 = vpop.permute.xlu0 %3137
  %v3141 = vmul.f32 %v3104, %v3136
  %v3142 = vmul.f32 %v3106, %v3138
  %3145 = vrot.lane.b32.xlu0 %v3141, 32
  %v3146 = vpop.permute.xlu0 %3145
  %3147 = vrot.lane.b32.xlu0 %v3142, 32
  %v3148 = vpop.permute.xlu0 %3147
  %s3151 = scalar_lea.vmem [#allocation5], 240
  %3152 = vst.msk [vmem:[%s3151] sm:$0xff] %vm1361, %v3146
  %3153 = vst.msk [vmem:[%s3151 + $0x8] sm:$0xff] %vm1361, %v3148
  %3154 = vst.msk [vmem:[#allocation2] sm:$0xff] %vm1361, %v3146
  %3155 = vst.msk [vmem:[#allocation2 + $0x8] sm:$0xff] %vm1361, %v3148
  %3158 = vrot.lane.b32.xlu0 %v3129, 96
  %v3159 = vpop.permute.xlu0 %3158
  %3160 = vrot.lane.b32.xlu0 %v3130, 96
  %v3161 = vpop.permute.xlu0 %3160
  %3164 = vst.msk [vmem:[#allocation3] sm:$0xff] %vm1361, %v3159
  %3165 = vst.msk [vmem:[#allocation3 + $0x8] sm:$0xff] %vm1361, %v3161
  %v3166 = vld [vmem:[#allocation5] sm:$0xff]
  %v3167 = vld [vmem:[#allocation5 + $0x8] sm:$0xff]
  %v3168 = vld [vmem:[#allocation5 + $0x10] sm:$0xff]
  %v3169 = vld [vmem:[#allocation5 + $0x18] sm:$0xff]
  %v3170 = vld [vmem:[#allocation5 + $0x20] sm:$0xff]
  %v3171 = vld [vmem:[#allocation5 + $0x28] sm:$0xff]
  %v3172 = vld [vmem:[#allocation5 + $0x30] sm:$0xff]
  %v3173 = vld [vmem:[#allocation5 + $0x38] sm:$0xff]
  %v3174 = vld [vmem:[#allocation5 + $0x40] sm:$0xff]
  %v3175 = vld [vmem:[#allocation5 + $0x48] sm:$0xff]
  %v3176 = vld [vmem:[#allocation5 + $0x50] sm:$0xff]
  %v3177 = vld [vmem:[#allocation5 + $0x58] sm:$0xff]
  %v3178 = vld [vmem:[#allocation5 + $0x60] sm:$0xff]
  %v3179 = vld [vmem:[#allocation5 + $0x68] sm:$0xff]
  %v3180 = vld [vmem:[#allocation5 + $0x70] sm:$0xff]
  %v3181 = vld [vmem:[#allocation5 + $0x78] sm:$0xff]
  %v3182 = vld [vmem:[#allocation5 + $0x80] sm:$0xff]
  %v3183 = vld [vmem:[#allocation5 + $0x88] sm:$0xff]
  %v3184 = vld [vmem:[#allocation5 + $0x90] sm:$0xff]
  %v3185 = vld [vmem:[#allocation5 + $0x98] sm:$0xff]
  %v3186 = vld [vmem:[#allocation5 + $0xa0] sm:$0xff]
  %v3187 = vld [vmem:[#allocation5 + $0xa8] sm:$0xff]
  %v3188 = vld [vmem:[#allocation5 + $0xb0] sm:$0xff]
  %v3189 = vld [vmem:[#allocation5 + $0xb8] sm:$0xff]
  %v3190 = vld [vmem:[#allocation5 + $0xc0] sm:$0xff]
  %v3191 = vld [vmem:[#allocation5 + $0xc8] sm:$0xff]
  %v3192 = vld [vmem:[#allocation5 + $0xd0] sm:$0xff]
  %v3193 = vld [vmem:[#allocation5 + $0xd8] sm:$0xff]
  %v3194 = vld [vmem:[#allocation5 + $0xe0] sm:$0xff]
  %v3195 = vld [vmem:[#allocation5 + $0xe8] sm:$0xff]
  %v3196 = vld [vmem:[#allocation5 + $0xf0] sm:$0xff]
  %v3197 = vld [vmem:[#allocation5 + $0xf8] sm:$0xff]
  %v3198 = vpack.c.bf16 %v3167, %v3166
  %v3199 = vpack.c.bf16 %v3169, %v3168
  %v3200 = vpack.c.bf16 %v3171, %v3170
  %v3201 = vpack.c.bf16 %v3173, %v3172
  %v3202 = vpack.c.bf16 %v3175, %v3174
  %v3203 = vpack.c.bf16 %v3177, %v3176
  %v3204 = vpack.c.bf16 %v3179, %v3178
  %v3205 = vpack.c.bf16 %v3181, %v3180
  %v3206 = vpack.c.bf16 %v3183, %v3182
  %v3207 = vpack.c.bf16 %v3185, %v3184
  %v3208 = vpack.c.bf16 %v3187, %v3186
  %v3209 = vpack.c.bf16 %v3189, %v3188
  %v3210 = vpack.c.bf16 %v3191, %v3190
  %v3211 = vpack.c.bf16 %v3193, %v3192
  %v3212 = vpack.c.bf16 %v3195, %v3194
  %v3213 = vpack.c.bf16 %v3197, %v3196
  %v3214 = vld [vmem:[%s4] sm:$0xf]
  %v3215 = vld [vmem:[%s4 + $0x4] sm:$0xf]
  %v3216 = vld [vmem:[%s4 + $0x8] sm:$0xf]
  %v3217 = vld [vmem:[%s4 + $0xc] sm:$0xf]
  %v3218 = vld [vmem:[%s5] sm:$0x1]
  %v3220 = vlaneseq
  %v3221 = vshrl.u32 %v3220, 7
  %v3222 = vsub.s32 0, %v3221
  %v3223 = vrot.slane %v3218, %v3222
  %v3229 = vunpack.c.l.b16 %v3214
  %v3230 = vunpack.c.l.b16 %v3215
  %v3231 = vunpack.c.l.b16 %v3216
  %v3232 = vunpack.c.l.b16 %v3217
  %v3233 = vpack.c.b16 %v3230, %v3229
  %v3234 = vpack.c.b16 %v3232, %v3231
  %v3238 = vsel %vm1361, %v3198, 0
  %v3241 = vsel %vm1361, %v3199, 0
  %v3244 = vsel %vm1361, %v3200, 0
  %v3247 = vsel %vm1361, %v3201, 0
  %v3250 = vsel %vm1361, %v3202, 0
  %v3253 = vsel %vm1361, %v3203, 0
  %v3256 = vsel %vm1361, %v3204, 0
  %v3259 = vsel %vm1361, %v3205, 0
  %v3262 = vsel %vm1361, %v3206, 0
  %v3265 = vsel %vm1361, %v3207, 0
  %v3268 = vsel %vm1361, %v3208, 0
  %v3271 = vsel %vm1361, %v3209, 0
  %v3274 = vsel %vm1361, %v3210, 0
  %v3277 = vsel %vm1361, %v3211, 0
  %v3280 = vsel %vm1361, %v3212, 0
  %v3283 = vsel %vm1361, %v3213, 0
  %3285 = vmatprep.subr.bf16.mxu0 0
  %3286 = vmatpush1.bf16.msra.mxu0 0
  %3287 = vmatprep.subr.bf16.mxu0 0
  %3288 = vmatpush1.bf16.msra.mxu0 0
  %3289 = vmatprep.subr.bf16.mxu0 0
  %3290 = vmatpush1.bf16.msra.mxu0 0
  %3291 = vmatprep.subr.bf16.mxu0 0
  %3292 = vmatpush1.bf16.msra.mxu0 0
  %3293 = vmatprep.subr.bf16.mxu0 0
  %3294 = vmatpush1.bf16.msra.mxu0 0
  %3295 = vmatprep.subr.bf16.mxu0 0
  %3296 = vmatpush1.bf16.msra.mxu0 0
  %3297 = vmatprep.subr.bf16.mxu0 0
  %3298 = vmatpush1.bf16.msra.mxu0 %v3234
  %3299 = vmatprep.subr.bf16.mxu0 0
  %3300 = vmatpush1.bf16.msra.mxu0 %v3233
  %3301 = vmatprep.subr.bf16.mxu0 0
  %3302 = vmatpush2.bf16.msra.mxu0 0
  %3303 = vmatprep.subr.bf16.mxu0 0
  %3304 = vmatpush2.bf16.msra.mxu0 0
  %3305 = vmatprep.subr.bf16.mxu0 0
  %3306 = vmatpush2.bf16.msra.mxu0 0
  %3307 = vmatprep.subr.bf16.mxu0 0
  %3308 = vmatpush2.bf16.msra.mxu0 0
  %3309 = vmatprep.subr.bf16.mxu0 0
  %3310 = vmatpush2.bf16.msra.mxu0 0
  %3311 = vmatprep.subr.bf16.mxu0 0
  %3312 = vmatpush2.bf16.msra.mxu0 0
  %3313 = vmatprep.subr.bf16.mxu0 0
  %3314 = vmatpush2.bf16.msra.mxu0 0
  %3315 = vmatprep.subr.bf16.mxu0 0
  %3316 = vmatpush2.bf16.msra.mxu0 0
  %3317 = vmatprep.mubr.bf16.mxu0 0
  %3318 = vmatmul.mubr.bf16.gmra.mxu0 %v3238
  %v3319 = vpop.f32.mrf.mxu0
  %v3320 = vadd.f32 %v3223, %v3319
  %v3321 = vpop.f32.mrf.mxu0
  %v3322 = vpop.f32.mrf.mxu0
  %v3323 = vadd.f32 %v3223, %v3322
  %v3324 = vpop.f32.mrf.mxu0
  %3325 = vmatprep.mubr.bf16.mxu0 0
  %3326 = vmatmul.mubr.bf16.gmra.mxu0 %v3241
  %v3327 = vpop.f32.mrf.mxu0
  %v3328 = vadd.f32 %v3223, %v3327
  %v3329 = vpop.f32.mrf.mxu0
  %v3330 = vpop.f32.mrf.mxu0
  %v3331 = vadd.f32 %v3223, %v3330
  %v3332 = vpop.f32.mrf.mxu0
  %3333 = vmatprep.mubr.bf16.mxu0 0
  %3334 = vmatmul.mubr.bf16.gmra.mxu0 %v3244
  %v3335 = vpop.f32.mrf.mxu0
  %v3336 = vadd.f32 %v3223, %v3335
  %v3337 = vpop.f32.mrf.mxu0
  %v3338 = vpop.f32.mrf.mxu0
  %v3339 = vadd.f32 %v3223, %v3338
  %v3340 = vpop.f32.mrf.mxu0
  %3341 = vmatprep.mubr.bf16.mxu0 0
  %3342 = vmatmul.mubr.bf16.gmra.mxu0 %v3247
  %v3343 = vpop.f32.mrf.mxu0
  %v3344 = vadd.f32 %v3223, %v3343
  %v3345 = vpop.f32.mrf.mxu0
  %v3346 = vpop.f32.mrf.mxu0
  %v3347 = vadd.f32 %v3223, %v3346
  %v3348 = vpop.f32.mrf.mxu0
  %3349 = vmatprep.mubr.bf16.mxu0 0
  %3350 = vmatmul.mubr.bf16.gmra.mxu0 %v3250
  %v3351 = vpop.f32.mrf.mxu0
  %v3352 = vadd.f32 %v3223, %v3351
  %v3353 = vpop.f32.mrf.mxu0
  %v3354 = vpop.f32.mrf.mxu0
  %v3355 = vadd.f32 %v3223, %v3354
  %v3356 = vpop.f32.mrf.mxu0
  %3357 = vmatprep.mubr.bf16.mxu0 0
  %3358 = vmatmul.mubr.bf16.gmra.mxu0 %v3253
  %v3359 = vpop.f32.mrf.mxu0
  %v3360 = vadd.f32 %v3223, %v3359
  %v3361 = vpop.f32.mrf.mxu0
  %v3362 = vpop.f32.mrf.mxu0
  %v3363 = vadd.f32 %v3223, %v3362
  %v3364 = vpop.f32.mrf.mxu0
  %3365 = vmatprep.mubr.bf16.mxu0 0
  %3366 = vmatmul.mubr.bf16.gmra.mxu0 %v3256
  %v3367 = vpop.f32.mrf.mxu0
  %v3368 = vadd.f32 %v3223, %v3367
  %v3369 = vpop.f32.mrf.mxu0
  %v3370 = vpop.f32.mrf.mxu0
  %v3371 = vadd.f32 %v3223, %v3370
  %v3372 = vpop.f32.mrf.mxu0
  %3373 = vmatprep.mubr.bf16.mxu0 0
  %3374 = vmatmul.mubr.bf16.gmra.mxu0 %v3259
  %v3375 = vpop.f32.mrf.mxu0
  %v3376 = vadd.f32 %v3223, %v3375
  %v3377 = vpop.f32.mrf.mxu0
  %v3378 = vpop.f32.mrf.mxu0
  %v3379 = vadd.f32 %v3223, %v3378
  %v3380 = vpop.f32.mrf.mxu0
  %3381 = vmatprep.mubr.bf16.mxu0 0
  %3382 = vmatmul.mubr.bf16.gmra.mxu0 %v3262
  %v3383 = vpop.f32.mrf.mxu0
  %v3384 = vadd.f32 %v3223, %v3383
  %v3385 = vpop.f32.mrf.mxu0
  %v3386 = vpop.f32.mrf.mxu0
  %v3387 = vadd.f32 %v3223, %v3386
  %v3388 = vpop.f32.mrf.mxu0
  %3389 = vmatprep.mubr.bf16.mxu0 0
  %3390 = vmatmul.mubr.bf16.gmra.mxu0 %v3265
  %v3391 = vpop.f32.mrf.mxu0
  %v3392 = vadd.f32 %v3223, %v3391
  %v3393 = vpop.f32.mrf.mxu0
  %v3394 = vpop.f32.mrf.mxu0
  %v3395 = vadd.f32 %v3223, %v3394
  %v3396 = vpop.f32.mrf.mxu0
  %3397 = vmatprep.mubr.bf16.mxu0 0
  %3398 = vmatmul.mubr.bf16.gmra.mxu0 %v3268
  %v3399 = vpop.f32.mrf.mxu0
  %v3400 = vadd.f32 %v3223, %v3399
  %v3401 = vpop.f32.mrf.mxu0
  %v3402 = vpop.f32.mrf.mxu0
  %v3403 = vadd.f32 %v3223, %v3402
  %v3404 = vpop.f32.mrf.mxu0
  %3405 = vmatprep.mubr.bf16.mxu0 0
  %3406 = vmatmul.mubr.bf16.gmra.mxu0 %v3271
  %v3407 = vpop.f32.mrf.mxu0
  %v3408 = vadd.f32 %v3223, %v3407
  %v3409 = vpop.f32.mrf.mxu0
  %v3410 = vpop.f32.mrf.mxu0
  %v3411 = vadd.f32 %v3223, %v3410
  %v3412 = vpop.f32.mrf.mxu0
  %3413 = vmatprep.mubr.bf16.mxu0 0
  %3414 = vmatmul.mubr.bf16.gmra.mxu0 %v3274
  %v3415 = vpop.f32.mrf.mxu0
  %v3416 = vadd.f32 %v3223, %v3415
  %v3417 = vpop.f32.mrf.mxu0
  %v3418 = vpop.f32.mrf.mxu0
  %v3419 = vadd.f32 %v3223, %v3418
  %v3420 = vpop.f32.mrf.mxu0
  %3421 = vmatprep.mubr.bf16.mxu0 0
  %3422 = vmatmul.mubr.bf16.gmra.mxu0 %v3277
  %v3423 = vpop.f32.mrf.mxu0
  %v3424 = vadd.f32 %v3223, %v3423
  %v3425 = vpop.f32.mrf.mxu0
  %v3426 = vpop.f32.mrf.mxu0
  %v3427 = vadd.f32 %v3223, %v3426
  %v3428 = vpop.f32.mrf.mxu0
  %3429 = vmatprep.mubr.bf16.mxu0 0
  %3430 = vmatmul.mubr.bf16.gmra.mxu0 %v3280
  %v3431 = vpop.f32.mrf.mxu0
  %v3432 = vadd.f32 %v3223, %v3431
  %v3433 = vpop.f32.mrf.mxu0
  %v3434 = vpop.f32.mrf.mxu0
  %v3435 = vadd.f32 %v3223, %v3434
  %v3436 = vpop.f32.mrf.mxu0
  %3437 = vmatprep.mubr.bf16.mxu0 0
  %3438 = vmatmul.mubr.bf16.gmra.mxu0 %v3283
  %v3439 = vpop.f32.mrf.mxu0
  %v3440 = vadd.f32 %v3223, %v3439
  %v3441 = vpop.f32.mrf.mxu0
  %v3442 = vpop.f32.mrf.mxu0
  %v3443 = vadd.f32 %v3223, %v3442
  %v3444 = vpop.f32.mrf.mxu0
  %3445 = vdwg.mxu0
  %3446 = vst.msk [vmem:[%s6] sm:$0xff] %vm996, %v3320
  %3447 = vst.msk [vmem:[%s6 + $0x8] sm:$0xff] %vm996, %v3323
  %3448 = vst.msk [vmem:[%s6 + $0x10] sm:$0xff] %vm996, %v3328
  %3449 = vst.msk [vmem:[%s6 + $0x18] sm:$0xff] %vm996, %v3331
  %3450 = vst.msk [vmem:[%s6 + $0x20] sm:$0xff] %vm996, %v3336
  %3451 = vst.msk [vmem:[%s6 + $0x28] sm:$0xff] %vm996, %v3339
  %3452 = vst.msk [vmem:[%s6 + $0x30] sm:$0xff] %vm996, %v3344
  %3453 = vst.msk [vmem:[%s6 + $0x38] sm:$0xff] %vm996, %v3347
  %3454 = vst.msk [vmem:[%s6 + $0x40] sm:$0xff] %vm996, %v3352
  %3455 = vst.msk [vmem:[%s6 + $0x48] sm:$0xff] %vm996, %v3355
  %3456 = vst.msk [vmem:[%s6 + $0x50] sm:$0xff] %vm996, %v3360
  %3457 = vst.msk [vmem:[%s6 + $0x58] sm:$0xff] %vm996, %v3363
  %3458 = vst.msk [vmem:[%s6 + $0x60] sm:$0xff] %vm996, %v3368
  %3459 = vst.msk [vmem:[%s6 + $0x68] sm:$0xff] %vm996, %v3371
  %3460 = vst.msk [vmem:[%s6 + $0x70] sm:$0xff] %vm996, %v3376
  %3461 = vst.msk [vmem:[%s6 + $0x78] sm:$0xff] %vm996, %v3379
  %3462 = vst.msk [vmem:[%s6 + $0x80] sm:$0xff] %vm996, %v3384
  %3463 = vst.msk [vmem:[%s6 + $0x88] sm:$0xff] %vm996, %v3387
  %3464 = vst.msk [vmem:[%s6 + $0x90] sm:$0xff] %vm996, %v3392
  %3465 = vst.msk [vmem:[%s6 + $0x98] sm:$0xff] %vm996, %v3395
  %3466 = vst.msk [vmem:[%s6 + $0xa0] sm:$0xff] %vm996, %v3400
  %3467 = vst.msk [vmem:[%s6 + $0xa8] sm:$0xff] %vm996, %v3403
  %3468 = vst.msk [vmem:[%s6 + $0xb0] sm:$0xff] %vm996, %v3408
  %3469 = vst.msk [vmem:[%s6 + $0xb8] sm:$0xff] %vm996, %v3411
  %3470 = vst.msk [vmem:[%s6 + $0xc0] sm:$0xff] %vm996, %v3416
  %3471 = vst.msk [vmem:[%s6 + $0xc8] sm:$0xff] %vm996, %v3419
  %3472 = vst.msk [vmem:[%s6 + $0xd0] sm:$0xff] %vm996, %v3424
  %3473 = vst.msk [vmem:[%s6 + $0xd8] sm:$0xff] %vm996, %v3427
  %3474 = vst.msk [vmem:[%s6 + $0xe0] sm:$0xff] %vm996, %v3432
  %3475 = vst.msk [vmem:[%s6 + $0xe8] sm:$0xff] %vm996, %v3435
  %3476 = vst.msk [vmem:[%s6 + $0xf0] sm:$0xff] %vm996, %v3440
  %3477 = vst.msk [vmem:[%s6 + $0xf8] sm:$0xff] %vm996, %v3443
  // Predicated region
  $region30: #{tpu_custom_call.1} parent=0 // pred_check
    _
  $region31: #{tpu_custom_call.1} parent=0 // pred_check_branch
    %3479 = sbr.rel (0) target = $region33
  $region32: #{tpu_custom_call.1} parent=0 // pred_region
    _
  $region33: #{tpu_custom_call.1} parent=0 // pred_fallthru
    _
  // Predicated region
  $region34: #{tpu_custom_call.1} parent=0 // pred_check
    _
  $region35: #{tpu_custom_call.1} parent=0 // pred_check_branch
    %3481 = sbr.rel (0) target = $region37
  $region36: #{tpu_custom_call.1} parent=0 // pred_region
    _
  $region37: #{tpu_custom_call.1} parent=0 // pred_fallthru
    _

</llo_original>
